<compile_context>
chip_gen: v6e
topology: v6e:2x2x1
jax: 0.10.0
libtpu: 0.0.40
codegen_flags: <defaults>
</compile_context>

<pallas_src>
import functools

import jax
import jax.numpy as jnp
from jax import lax
from jax.experimental import pallas as pl
from jax.experimental.pallas import tpu as pltpu

EPS = float(jnp.finfo(jnp.float32).eps)

# contract the last (pixel) dim of both operands:  A @ B^T
_DN_BT = (((1,), (1,)), ((), ()))

_TILE_N_CAP = 2048                      # pixel-tile width (multiple of 128)
_VMEM_LIMIT = 32 * 1024 * 1024          # safe on v5e/v6e/v7x

_COMPILER_PARAMS = pltpu.CompilerParams(
    dimension_semantics=("parallel", "arbitrary"),
    vmem_limit_bytes=_VMEM_LIMIT)


def _pick_tile_n(n, cap=_TILE_N_CAP):
    """Largest pixel tile <= cap that divides N and is a multiple of 128."""
    if n <= cap:
        return n
    t = (cap // 128) * 128
    while t >= 128:
        if n % t == 0:
            return t
        t -= 128
    # TODO(synk): ragged N (not a multiple of 128) falls back to a whole-image
    # block; a masked last tile would bound VMEM for such shapes too.
    return n


def _tiled_spec(rows, tile_n):
    """(B, rows, N) array tiled along pixels: block (1, rows, tile_n)."""
    return pl.BlockSpec((1, rows, tile_n), lambda b, n: (b, 0, n))


def _resident_spec(shape):
    """Small per-batch operand, resident in VMEM across the pixel-tile axis."""
    block = (1,) + tuple(shape[1:])
    nd = len(shape)

    def idx(b, n):
        return (b,) + (0,) * (nd - 1)

    return pl.BlockSpec(block, idx)


# ----------------------------------------------------------------------------
# Kernel 1: per-pixel softmax over classes (+eps) and fused weighted Gram
#           accumulation; fp / sp / psum / trace-norm are slices of the Gram.
# ----------------------------------------------------------------------------
def _stats_kernel(shifted_ref, padded_ref, pred_ref, gen_ref,
                  probs_ref, gram_ref, *, n_classes):
    @pl.when(pl.program_id(1) == 0)
    def _init():
        gram_ref[...] = jnp.zeros_like(gram_ref)

    logits = pred_ref[0] + gen_ref[0]                          # (K, TN)
    logits = logits - jnp.max(logits, axis=0, keepdims=True)
    e = jnp.exp(logits)
    probs = e / jnp.sum(e, axis=0, keepdims=True) + EPS        # (K, TN)
    probs_ref[0] = probs

    x = jnp.concatenate([shifted_ref[0], padded_ref[0]], axis=0)   # (Cx, TN)
    for k in range(n_classes):
        # G_k[a,b] = sum_p x[a,p] * probs[k,p] * x[b,p]   (one dot per class)
        g = lax.dot_general(x * probs[k:k + 1, :], x, _DN_BT,
                            preferred_element_type=jnp.float32)    # (Cx, Cx)
        gram_ref[0, k, :, :] = gram_ref[0, k, :, :] + g


def m_step_stats(shifted, padded, pred, gen, tile_n):
    B, C, N = shifted.shape
    C1 = padded.shape[1]
    K = pred.shape[1]
    Cx = C + C1
    out_shape = (
        jax.ShapeDtypeStruct((B, K, N), jnp.float32),          # probs (+eps)
        jax.ShapeDtypeStruct((B, K, Cx, Cx), jnp.float32),     # weighted Gram
    )
    return pl.pallas_call(
        functools.partial(_stats_kernel, n_classes=K),
        out_shape=out_shape,
        grid=(B, N // tile_n),
        in_specs=[_tiled_spec(C, tile_n), _tiled_spec(C1, tile_n),
                  _tiled_spec(K, tile_n), _tiled_spec(K, tile_n)],
        out_specs=(_tiled_spec(K, tile_n),
                   _resident_spec((B, K, Cx, Cx))),
        compiler_params=_COMPILER_PARAMS,
    )(shifted, padded, pred, gen)


# ----------------------------------------------------------------------------
# Kernel 2: residuals + weighted covariance accumulation (sigmas before +eps*I)
#           with probs/psum normalisation folded in-kernel.
# ----------------------------------------------------------------------------
def _sigma_kernel(shifted_ref, padded_ref, probs_ref, psum_ref, opsf_ref,
                  sig_ref, *, n_classes, n_channels):
    @pl.when(pl.program_id(1) == 0)
    def _init():
        sig_ref[...] = jnp.zeros_like(sig_ref)

    shifted = shifted_ref[0]                                   # (C,  TN)
    padded = padded_ref[0]                                     # (C1, TN)
    pn = probs_ref[0] * (1.0 / psum_ref[0])                    # (K, TN)
    # all K class predictions in a single matmul: (K*C, C1) @ (C1, TN)
    pred_all = jnp.dot(opsf_ref[0], padded,
                       preferred_element_type=jnp.float32)     # (K*C, TN)
    c = n_channels
    for k in range(n_classes):
        diff = shifted - pred_all[k * c:(k + 1) * c, :]        # (C, TN)
        s = lax.dot_general(diff * pn[k:k + 1, :], diff, _DN_BT,
                            preferred_element_type=jnp.float32)    # (C, C)
        sig_ref[0, k, :, :] = sig_ref[0, k, :, :] + s


def sigma_stats(shifted, padded, probs, psum, ops_flat, tile_n):
    B, C, N = shifted.shape
    C1 = padded.shape[1]
    K = probs.shape[1]
    out_shape = jax.ShapeDtypeStruct((B, K, C, C), jnp.float32)
    return pl.pallas_call(
        functools.partial(_sigma_kernel, n_classes=K, n_channels=C),
        out_shape=out_shape,
        grid=(B, N // tile_n),
        in_specs=[_tiled_spec(C, tile_n), _tiled_spec(C1, tile_n),
                  _tiled_spec(K, tile_n),
                  _resident_spec(psum.shape), _resident_spec(ops_flat.shape)],
        out_specs=_resident_spec(out_shape.shape),
        compiler_params=_COMPILER_PARAMS,
    )(shifted, padded, probs, psum, ops_flat)


# ----------------------------------------------------------------------------
# Kernel 3: E-step log masks. Residuals from one batched matmul, Mahalanobis
#           form as a symmetric VPU sum, rows written directly.
# ----------------------------------------------------------------------------
def _estep_kernel(shifted_ref, padded_ref, opsf_ref, siginv_ref, logdet_ref,
                  out_ref, *, n_classes, n_channels):
    shifted = shifted_ref[0]                                   # (C,  TN)
    padded = padded_ref[0]                                     # (C1, TN)
    pred_all = jnp.dot(opsf_ref[0], padded,
                       preferred_element_type=jnp.float32)     # (K*C, TN)
    ld = logdet_ref[0]                                         # (K, 1)
    c = n_channels
    for k in range(n_classes):
        diff = shifted - pred_all[k * c:(k + 1) * c, :]        # (C, TN)
        w = siginv_ref[0, k]                                   # (C, C) symmetric
        quad = jnp.zeros_like(diff[0:1, :])                    # (1, TN)
        for a in range(c):
            for b in range(a, c):
                coef = 1.0 if a == b else 2.0
                quad = quad + (coef * w[a:a + 1, b:b + 1]) * (
                    diff[a:a + 1, :] * diff[b:b + 1, :])
        out_ref[0, k:k + 1, :] = -0.5 * quad - 0.5 * ld[k:k + 1, :]


def e_step(shifted, padded, ops_flat, sig_inv, logdet, tile_n):
    B, C, N = shifted.shape
    C1 = padded.shape[1]
    K = sig_inv.shape[1]
    out_shape = jax.ShapeDtypeStruct((B, K, N), jnp.float32)
    return pl.pallas_call(
        functools.partial(_estep_kernel, n_classes=K, n_channels=C),
        out_shape=out_shape,
        grid=(B, N // tile_n),
        in_specs=[_tiled_spec(C, tile_n), _tiled_spec(C1, tile_n),
                  _resident_spec(ops_flat.shape), _resident_spec(sig_inv.shape),
                  _resident_spec(logdet.shape)],
        out_specs=_tiled_spec(K, tile_n),
        compiler_params=_COMPILER_PARAMS,
    )(shifted, padded, ops_flat, sig_inv, logdet)


# ----------------------------------------------------------------------------
# Full forward (EM loop).  Tiny per-(b,k) matrix inverse / slogdet stay in JAX.
# ----------------------------------------------------------------------------
@functools.partial(jax.jit, static_argnames=("em_steps",))
def em_mask_generator(images, shifted_images, predicted_masks, em_steps):
    B, C, H, W = images.shape
    K = predicted_masks.shape[1]
    N = H * W
    C1 = C + 1
    tile_n = _pick_tile_n(N)

    shifted = shifted_images.reshape(B, C, N).astype(jnp.float32)
    padded = jnp.concatenate(
        [images.reshape(B, C, N).astype(jnp.float32),
         jnp.ones((B, 1, N), jnp.float32)], axis=1)            # (B, C+1, N)
    pred = predicted_masks.reshape(B, K, N).astype(jnp.float32)
    gen = jnp.zeros_like(pred)

    eye_c1 = jnp.eye(C1, dtype=jnp.float32)
    eye_c = jnp.eye(C, dtype=jnp.float32)

    for _ in range(em_steps):
        probs, gram = m_step_stats(shifted, padded, pred, gen, tile_n)
        # fp / sp / psum / trace-norm are all sub-blocks of the fused Gram.
        fp = gram[:, :, :C, C:]                                # (B,K,C,C1)
        sp = gram[:, :, C:, C:]                                # (B,K,C1,C1)
        psum = gram[:, :, C + C1 - 1, C + C1 - 1][..., None]   # (B,K,1)
        norm = jnp.trace(sp, axis1=-2, axis2=-1)[:, :, None, None]
        fp_n = fp / norm
        sp_n = sp / norm + EPS * eye_c1
        # TODO(synk): tiny 4x4 / 3x3 inverse + slogdet kept as jnp.linalg glue
        # (could be folded in-kernel with closed-form cofactors).
        ops = jnp.einsum('ukab,ukbc->ukac', fp_n, jnp.linalg.inv(sp_n))
        ops_flat = ops.reshape(B, K * C, C1)

        sig_raw = sigma_stats(shifted, padded, probs, psum, ops_flat, tile_n)
        sigmas = sig_raw + EPS * eye_c
        sig_inv = jnp.linalg.inv(sigmas)
        sig_inv = 0.5 * (sig_inv + jnp.swapaxes(sig_inv, -1, -2))  # symmetrize
        logdet = jnp.linalg.slogdet(sigmas)[1][:, :, None]     # (B,K,1)

        gen = e_step(shifted, padded, ops_flat, sig_inv, logdet, tile_n)

    return gen.reshape(B, K, H, W)


# ----------------------------------------------------------------------------
# Pure-JAX reference (mirrors the PyTorch module) for a correctness check.
# ----------------------------------------------------------------------------
def reference_forward(images, shifted_images, predicted_masks, em_steps):
    B, C, H, W = images.shape
    padded = jnp.concatenate(
        [images, jnp.ones((B, 1, H, W), images.dtype)], axis=1)
    gen = jnp.zeros_like(predicted_masks)
    for _ in range(em_steps):
        probs = jax.nn.softmax(predicted_masks + gen, axis=1) + EPS
        fp = jnp.einsum('uaij,ukij,ubij->ukab', shifted_images, probs, padded)
        sp = jnp.einsum('uaij,ukij,ubij->ukab', padded, probs, padded)
        norm = jnp.einsum('ukaa->uk', sp)[:, :, None, None]
        fp_n = fp / norm
        sp_n = sp / norm + EPS * jnp.eye(C + 1)
        ops = jnp.einsum('ukab,ukbc->ukac', fp_n, jnp.linalg.inv(sp_n))
        psum = probs.sum(axis=(2, 3))[:, :, None, None]
        probs_n = probs / psum
        pred_img = jnp.einsum('ukab,ubij->kuaij', ops, padded)
        diff = shifted_images[None] - pred_img
        sigmas = (jnp.einsum('kuaij,ukij,kubij->ukab', diff, probs_n, diff)
                  + EPS * jnp.eye(C))
        sig_inv = jnp.linalg.inv(sigmas)
        logdet = jnp.linalg.slogdet(sigmas)[1]
        gen = (-0.5 * jnp.einsum('kuaij,ukab,kubij->ukij', diff, sig_inv, diff)
               - 0.5 * logdet[:, :, None, None])
    return gen


if __name__ == "__main__":
    key = jax.random.PRNGKey(0)
    k1, k2, k3 = jax.random.split(key, 3)

    B, C, H, W, K = 2, 3, 16, 16, 4
    EM_STEPS = 2

    images = jax.random.normal(k1, (B, C, H, W), jnp.float32)
    shifted_images = jax.random.normal(k2, (B, C, H, W), jnp.float32)
    predicted_masks = jax.random.normal(k3, (B, K, H, W), jnp.float32)

    out = em_mask_generator(images, shifted_images, predicted_masks, EM_STEPS)
    out = jax.block_until_ready(out)

    ref = jax.block_until_ready(
        reference_forward(images, shifted_images, predicted_masks, EM_STEPS))

    assert out.shape == (B, K, H, W), out.shape
    assert bool(jnp.all(jnp.isfinite(out)))
    assert bool(jnp.allclose(out, ref, rtol=2e-2, atol=2e-2)), (
        "max abs diff vs reference: "
        f"{float(jnp.max(jnp.abs(out - ref)))}")

    print("KERNEL_OK")
</pallas_src>

<mosaic_0001>
module attributes {stable_mosaic.version = 11 : i64} {
  func.func @_stats_kernel(%arg0: i32, %arg1: i32, %arg2: memref<1x3x256xf32, #tpu.memory_space<vmem>>, %arg3: memref<1x4x256xf32, #tpu.memory_space<vmem>>, %arg4: memref<1x4x256xf32, #tpu.memory_space<vmem>>, %arg5: memref<1x4x256xf32, #tpu.memory_space<vmem>>, %arg6: memref<1x4x256xf32, #tpu.memory_space<vmem>>, %arg7: memref<1x4x7x7xf32, #tpu.memory_space<vmem>>) attributes {dimension_semantics = [#tpu.dimension_semantics<parallel>, #tpu.dimension_semantics<arbitrary>], iteration_bounds = array<i64: 2, 1>, scalar_prefetch = 0 : i64, scratch_operands = 0 : i64, tpu.core_type = #tpu.core_type<tc>, window_params = [{transform_indices = @transform_0, window_bounds = array<i64: 1, 3, 256>}, {transform_indices = @transform_1, window_bounds = array<i64: 1, 4, 256>}, {transform_indices = @transform_2, window_bounds = array<i64: 1, 4, 256>}, {transform_indices = @transform_3, window_bounds = array<i64: 1, 4, 256>}, {transform_indices = @transform_4, window_bounds = array<i64: 1, 4, 256>}, {transform_indices = @transform_5, window_bounds = array<i64: 1, 4, 7, 7>}]} {
    %c0_i32 = arith.constant 0 : i32
    %0 = arith.cmpi eq, %arg1, %c0_i32 : i32
    %1 = arith.extui %0 : i1 to i32
    %c0_i32_0 = arith.constant 0 : i32
    %2 = arith.cmpi ne, %1, %c0_i32_0 : i32
    scf.if %2 {
      %cst_50 = arith.constant 0.000000e+00 : f32
      %67 = vector.broadcast %cst_50 : f32 to vector<1x4x7x7xf32>
      %c0_51 = arith.constant 0 : index
      %c0_52 = arith.constant 0 : index
      %c0_53 = arith.constant 0 : index
      %c0_54 = arith.constant 0 : index
      %68 = vector.load %arg7[%c0_51, %c0_52, %c0_53, %c0_54] : memref<1x4x7x7xf32, #tpu.memory_space<vmem>>, vector<1x4x7x7xf32>
      tpu.vector_store %arg7[%c0_51, %c0_52, %c0_53, %c0_54], %67 {strides = array<i32>} : memref<1x4x7x7xf32, #tpu.memory_space<vmem>>, vector<1x4x7x7xf32>,
    } else {
    }
    %c0 = arith.constant 0 : index
    %c0_1 = arith.constant 0 : index
    %c0_2 = arith.constant 0 : index
    %3 = vector.load %arg4[%c0, %c0_1, %c0_2] : memref<1x4x256xf32, #tpu.memory_space<vmem>>, vector<1x4x256xf32>
    %4 = vector.shape_cast %3 : vector<1x4x256xf32> to vector<4x256xf32>
    %c0_3 = arith.constant 0 : index
    %c0_4 = arith.constant 0 : index
    %c0_5 = arith.constant 0 : index
    %5 = vector.load %arg5[%c0_3, %c0_4, %c0_5] : memref<1x4x256xf32, #tpu.memory_space<vmem>>, vector<1x4x256xf32>
    %6 = vector.shape_cast %5 : vector<1x4x256xf32> to vector<4x256xf32>
    %7 = arith.addf %4, %6 : vector<4x256xf32>
    %cst = arith.constant dense<0xFF800000> : vector<256xf32>
    %8 = vector.multi_reduction <maximumf>, %7, %cst [0] : vector<4x256xf32> to vector<256xf32>
    %9 = vector.shape_cast %8 : vector<256xf32> to vector<1x256xf32>
    %10 = vector.broadcast %9 : vector<1x256xf32> to vector<4x256xf32>
    %11 = arith.subf %7, %10 : vector<4x256xf32>
    %12 = math.exp %11 : vector<4x256xf32>
    %cst_6 = arith.constant dense<0.000000e+00> : vector<256xf32>
    %13 = vector.multi_reduction <add>, %12, %cst_6 [0] : vector<4x256xf32> to vector<256xf32>
    %14 = vector.shape_cast %13 : vector<256xf32> to vector<1x256xf32>
    %15 = vector.broadcast %14 : vector<1x256xf32> to vector<4x256xf32>
    %16 = arith.divf %12, %15 : vector<4x256xf32>
    %cst_7 = arith.constant 1.1920929E-7 : f32
    %17 = vector.broadcast %cst_7 : f32 to vector<4x256xf32>
    %18 = arith.addf %16, %17 : vector<4x256xf32>
    %c0_8 = arith.constant 0 : index
    %c0_9 = arith.constant 0 : index
    %c0_10 = arith.constant 0 : index
    %19 = vector.load %arg6[%c0_8, %c0_9, %c0_10] : memref<1x4x256xf32, #tpu.memory_space<vmem>>, vector<1x4x256xf32>
    %20 = vector.shape_cast %19 : vector<1x4x256xf32> to vector<4x256xf32>
    %21 = vector.shape_cast %18 : vector<4x256xf32> to vector<1x4x256xf32>
    tpu.vector_store %arg6[%c0_8, %c0_9, %c0_10], %21 {strides = array<i32>} : memref<1x4x256xf32, #tpu.memory_space<vmem>>, vector<1x4x256xf32>,
    %c0_11 = arith.constant 0 : index
    %c0_12 = arith.constant 0 : index
    %c0_13 = arith.constant 0 : index
    %22 = vector.load %arg2[%c0_11, %c0_12, %c0_13] : memref<1x3x256xf32, #tpu.memory_space<vmem>>, vector<1x3x256xf32>
    %23 = vector.shape_cast %22 : vector<1x3x256xf32> to vector<3x256xf32>
    %c0_14 = arith.constant 0 : index
    %c0_15 = arith.constant 0 : index
    %c0_16 = arith.constant 0 : index
    %24 = vector.load %arg3[%c0_14, %c0_15, %c0_16] : memref<1x4x256xf32, #tpu.memory_space<vmem>>, vector<1x4x256xf32>
    %25 = vector.shape_cast %24 : vector<1x4x256xf32> to vector<4x256xf32>
    %26 = tpu.concatenate %23, %25 in 0 : vector<3x256xf32>, vector<4x256xf32> -> vector<7x256xf32>
    %27 = vector.extract_strided_slice %18 {offsets = [0, 0], sizes = [1, 256], strides = [1, 1]} : vector<4x256xf32> to vector<1x256xf32>
    %28 = vector.broadcast %27 : vector<1x256xf32> to vector<7x256xf32>
    %29 = arith.mulf %26, %28 : vector<7x256xf32>
    %cst_17 = arith.constant dense<0.000000e+00> : vector<7x7xf32>
    %30 = tpu.matmul %29, %26, %cst_17 {dimension_numbers = #tpu.dot_dimension_numbers<[1], [1], [0], [0], [0, 0, 1, 0], [], []>} : vector<7x256xf32>, vector<7x256xf32>, vector<7x7xf32> -> vector<7x7xf32>
    %c0_18 = arith.constant 0 : index
    %c0_19 = arith.constant 0 : index
    %c0_20 = arith.constant 0 : index
    %c0_21 = arith.constant 0 : index
    %31 = vector.load %arg7[%c0_18, %c0_19, %c0_20, %c0_21] : memref<1x4x7x7xf32, #tpu.memory_space<vmem>>, vector<1x1x7x7xf32>
    %32 = vector.shape_cast %31 : vector<1x1x7x7xf32> to vector<7x7xf32>
    %33 = arith.addf %32, %30 : vector<7x7xf32>
    %c0_22 = arith.constant 0 : index
    %c0_23 = arith.constant 0 : index
    %c0_24 = arith.constant 0 : index
    %c0_25 = arith.constant 0 : index
    %34 = vector.load %arg7[%c0_22, %c0_23, %c0_24, %c0_25] : memref<1x4x7x7xf32, #tpu.memory_space<vmem>>, vector<1x1x7x7xf32>
    %35 = vector.shape_cast %34 : vector<1x1x7x7xf32> to vector<7x7xf32>
    %36 = vector.shape_cast %33 : vector<7x7xf32> to vector<1x1x7x7xf32>
    tpu.vector_store %arg7[%c0_22, %c0_23, %c0_24, %c0_25], %36 {strides = array<i32>} : memref<1x4x7x7xf32, #tpu.memory_space<vmem>>, vector<1x1x7x7xf32>,
    %37 = vector.extract_strided_slice %18 {offsets = [1, 0], sizes = [1, 256], strides = [1, 1]} : vector<4x256xf32> to vector<1x256xf32>
    %38 = vector.broadcast %37 : vector<1x256xf32> to vector<7x256xf32>
    %39 = arith.mulf %26, %38 : vector<7x256xf32>
    %cst_26 = arith.constant dense<0.000000e+00> : vector<7x7xf32>
    %40 = tpu.matmul %39, %26, %cst_26 {dimension_numbers = #tpu.dot_dimension_numbers<[1], [1], [0], [0], [0, 0, 1, 0], [], []>} : vector<7x256xf32>, vector<7x256xf32>, vector<7x7xf32> -> vector<7x7xf32>
    %c0_27 = arith.constant 0 : index
    %c1 = arith.constant 1 : index
    %c0_28 = arith.constant 0 : index
    %c0_29 = arith.constant 0 : index
    %41 = vector.load %arg7[%c0_27, %c1, %c0_28, %c0_29] : memref<1x4x7x7xf32, #tpu.memory_space<vmem>>, vector<1x1x7x7xf32>
    %42 = vector.shape_cast %41 : vector<1x1x7x7xf32> to vector<7x7xf32>
    %43 = arith.addf %42, %40 : vector<7x7xf32>
    %c0_30 = arith.constant 0 : index
    %c1_31 = arith.constant 1 : index
    %c0_32 = arith.constant 0 : index
    %c0_33 = arith.constant 0 : index
    %44 = vector.load %arg7[%c0_30, %c1_31, %c0_32, %c0_33] : memref<1x4x7x7xf32, #tpu.memory_space<vmem>>, vector<1x1x7x7xf32>
    %45 = vector.shape_cast %44 : vector<1x1x7x7xf32> to vector<7x7xf32>
    %46 = vector.shape_cast %43 : vector<7x7xf32> to vector<1x1x7x7xf32>
    tpu.vector_store %arg7[%c0_30, %c1_31, %c0_32, %c0_33], %46 {strides = array<i32>} : memref<1x4x7x7xf32, #tpu.memory_space<vmem>>, vector<1x1x7x7xf32>,
    %47 = vector.extract_strided_slice %18 {offsets = [2, 0], sizes = [1, 256], strides = [1, 1]} : vector<4x256xf32> to vector<1x256xf32>
    %48 = vector.broadcast %47 : vector<1x256xf32> to vector<7x256xf32>
    %49 = arith.mulf %26, %48 : vector<7x256xf32>
    %cst_34 = arith.constant dense<0.000000e+00> : vector<7x7xf32>
    %50 = tpu.matmul %49, %26, %cst_34 {dimension_numbers = #tpu.dot_dimension_numbers<[1], [1], [0], [0], [0, 0, 1, 0], [], []>} : vector<7x256xf32>, vector<7x256xf32>, vector<7x7xf32> -> vector<7x7xf32>
    %c0_35 = arith.constant 0 : index
    %c2 = arith.constant 2 : index
    %c0_36 = arith.constant 0 : index
    %c0_37 = arith.constant 0 : index
    %51 = vector.load %arg7[%c0_35, %c2, %c0_36, %c0_37] : memref<1x4x7x7xf32, #tpu.memory_space<vmem>>, vector<1x1x7x7xf32>
    %52 = vector.shape_cast %51 : vector<1x1x7x7xf32> to vector<7x7xf32>
    %53 = arith.addf %52, %50 : vector<7x7xf32>
    %c0_38 = arith.constant 0 : index
    %c2_39 = arith.constant 2 : index
    %c0_40 = arith.constant 0 : index
    %c0_41 = arith.constant 0 : index
    %54 = vector.load %arg7[%c0_38, %c2_39, %c0_40, %c0_41] : memref<1x4x7x7xf32, #tpu.memory_space<vmem>>, vector<1x1x7x7xf32>
    %55 = vector.shape_cast %54 : vector<1x1x7x7xf32> to vector<7x7xf32>
    %56 = vector.shape_cast %53 : vector<7x7xf32> to vector<1x1x7x7xf32>
    tpu.vector_store %arg7[%c0_38, %c2_39, %c0_40, %c0_41], %56 {strides = array<i32>} : memref<1x4x7x7xf32, #tpu.memory_space<vmem>>, vector<1x1x7x7xf32>,
    %57 = vector.extract_strided_slice %18 {offsets = [3, 0], sizes = [1, 256], strides = [1, 1]} : vector<4x256xf32> to vector<1x256xf32>
    %58 = vector.broadcast %57 : vector<1x256xf32> to vector<7x256xf32>
    %59 = arith.mulf %26, %58 : vector<7x256xf32>
    %cst_42 = arith.constant dense<0.000000e+00> : vector<7x7xf32>
    %60 = tpu.matmul %59, %26, %cst_42 {dimension_numbers = #tpu.dot_dimension_numbers<[1], [1], [0], [0], [0, 0, 1, 0], [], []>} : vector<7x256xf32>, vector<7x256xf32>, vector<7x7xf32> -> vector<7x7xf32>
    %c0_43 = arith.constant 0 : index
    %c3 = arith.constant 3 : index
    %c0_44 = arith.constant 0 : index
    %c0_45 = arith.constant 0 : index
    %61 = vector.load %arg7[%c0_43, %c3, %c0_44, %c0_45] : memref<1x4x7x7xf32, #tpu.memory_space<vmem>>, vector<1x1x7x7xf32>
    %62 = vector.shape_cast %61 : vector<1x1x7x7xf32> to vector<7x7xf32>
    %63 = arith.addf %62, %60 : vector<7x7xf32>
    %c0_46 = arith.constant 0 : index
    %c3_47 = arith.constant 3 : index
    %c0_48 = arith.constant 0 : index
    %c0_49 = arith.constant 0 : index
    %64 = vector.load %arg7[%c0_46, %c3_47, %c0_48, %c0_49] : memref<1x4x7x7xf32, #tpu.memory_space<vmem>>, vector<1x1x7x7xf32>
    %65 = vector.shape_cast %64 : vector<1x1x7x7xf32> to vector<7x7xf32>
    %66 = vector.shape_cast %63 : vector<7x7xf32> to vector<1x1x7x7xf32>
    tpu.vector_store %arg7[%c0_46, %c3_47, %c0_48, %c0_49], %66 {strides = array<i32>} : memref<1x4x7x7xf32, #tpu.memory_space<vmem>>, vector<1x1x7x7xf32>,
    return
  }
  func.func @transform_0(%arg0: i32, %arg1: i32) -> (i32, i32, i32) {
    %c0_i32 = arith.constant 0 : i32
    %c0_i32_0 = arith.constant 0 : i32
    return %arg0, %c0_i32, %arg1 : i32, i32, i32
  }
  func.func @transform_1(%arg0: i32, %arg1: i32) -> (i32, i32, i32) {
    %c0_i32 = arith.constant 0 : i32
    %c0_i32_0 = arith.constant 0 : i32
    return %arg0, %c0_i32, %arg1 : i32, i32, i32
  }
  func.func @transform_2(%arg0: i32, %arg1: i32) -> (i32, i32, i32) {
    %c0_i32 = arith.constant 0 : i32
    %c0_i32_0 = arith.constant 0 : i32
    return %arg0, %c0_i32, %arg1 : i32, i32, i32
  }
  func.func @transform_3(%arg0: i32, %arg1: i32) -> (i32, i32, i32) {
    %c0_i32 = arith.constant 0 : i32
    %c0_i32_0 = arith.constant 0 : i32
    return %arg0, %c0_i32, %arg1 : i32, i32, i32
  }
  func.func @transform_4(%arg0: i32, %arg1: i32) -> (i32, i32, i32) {
    %c0_i32 = arith.constant 0 : i32
    %c0_i32_0 = arith.constant 0 : i32
    return %arg0, %c0_i32, %arg1 : i32, i32, i32
  }
  func.func @transform_5(%arg0: i32, %arg1: i32) -> (i32, i32, i32, i32) {
    %c0_i32 = arith.constant 0 : i32
    %c0_i32_0 = arith.constant 0 : i32
    %c0_i32_1 = arith.constant 0 : i32
    %c0_i32_2 = arith.constant 0 : i32
    return %arg0, %c0_i32, %c0_i32_0, %c0_i32_1 : i32, i32, i32, i32
  }
}

module attributes {stable_mosaic.version = 11 : i64} {
  func.func @_sigma_kernel(%arg0: i32, %arg1: i32, %arg2: memref<1x3x256xf32, #tpu.memory_space<vmem>>, %arg3: memref<1x4x256xf32, #tpu.memory_space<vmem>>, %arg4: memref<1x4x256xf32, #tpu.memory_space<vmem>>, %arg5: memref<1x4x1xf32, #tpu.memory_space<vmem>>, %arg6: memref<1x12x4xf32, #tpu.memory_space<vmem>>, %arg7: memref<1x4x3x3xf32, #tpu.memory_space<vmem>>) attributes {dimension_semantics = [#tpu.dimension_semantics<parallel>, #tpu.dimension_semantics<arbitrary>], iteration_bounds = array<i64: 2, 1>, scalar_prefetch = 0 : i64, scratch_operands = 0 : i64, tpu.core_type = #tpu.core_type<tc>, window_params = [{transform_indices = @transform_0, window_bounds = array<i64: 1, 3, 256>}, {transform_indices = @transform_1, window_bounds = array<i64: 1, 4, 256>}, {transform_indices = @transform_2, window_bounds = array<i64: 1, 4, 256>}, {transform_indices = @transform_3, window_bounds = array<i64: 1, 4, 1>}, {transform_indices = @transform_4, window_bounds = array<i64: 1, 12, 4>}, {transform_indices = @transform_5, window_bounds = array<i64: 1, 4, 3, 3>}]} {
    %c0_i32 = arith.constant 0 : i32
    %0 = arith.cmpi eq, %arg1, %c0_i32 : i32
    %1 = arith.extui %0 : i1 to i32
    %c0_i32_0 = arith.constant 0 : i32
    %2 = arith.cmpi ne, %1, %c0_i32_0 : i32
    scf.if %2 {
      %cst_49 = arith.constant 0.000000e+00 : f32
      %66 = vector.broadcast %cst_49 : f32 to vector<1x4x3x3xf32>
      %c0_50 = arith.constant 0 : index
      %c0_51 = arith.constant 0 : index
      %c0_52 = arith.constant 0 : index
      %c0_53 = arith.constant 0 : index
      %67 = vector.load %arg7[%c0_50, %c0_51, %c0_52, %c0_53] : memref<1x4x3x3xf32, #tpu.memory_space<vmem>>, vector<1x4x3x3xf32>
      tpu.vector_store %arg7[%c0_50, %c0_51, %c0_52, %c0_53], %66 {strides = array<i32>} : memref<1x4x3x3xf32, #tpu.memory_space<vmem>>, vector<1x4x3x3xf32>,
    } else {
    }
    %c0 = arith.constant 0 : index
    %c0_1 = arith.constant 0 : index
    %c0_2 = arith.constant 0 : index
    %3 = vector.load %arg2[%c0, %c0_1, %c0_2] : memref<1x3x256xf32, #tpu.memory_space<vmem>>, vector<1x3x256xf32>
    %4 = vector.shape_cast %3 : vector<1x3x256xf32> to vector<3x256xf32>
    %c0_3 = arith.constant 0 : index
    %c0_4 = arith.constant 0 : index
    %c0_5 = arith.constant 0 : index
    %5 = vector.load %arg3[%c0_3, %c0_4, %c0_5] : memref<1x4x256xf32, #tpu.memory_space<vmem>>, vector<1x4x256xf32>
    %6 = vector.shape_cast %5 : vector<1x4x256xf32> to vector<4x256xf32>
    %c0_6 = arith.constant 0 : index
    %c0_7 = arith.constant 0 : index
    %c0_8 = arith.constant 0 : index
    %7 = vector.load %arg4[%c0_6, %c0_7, %c0_8] : memref<1x4x256xf32, #tpu.memory_space<vmem>>, vector<1x4x256xf32>
    %8 = vector.shape_cast %7 : vector<1x4x256xf32> to vector<4x256xf32>
    %c0_9 = arith.constant 0 : index
    %c0_10 = arith.constant 0 : index
    %c0_11 = arith.constant 0 : index
    %9 = vector.load %arg5[%c0_9, %c0_10, %c0_11] : memref<1x4x1xf32, #tpu.memory_space<vmem>>, vector<1x4x1xf32>
    %10 = vector.shape_cast %9 : vector<1x4x1xf32> to vector<4x1xf32>
    %cst = arith.constant 1.000000e+00 : f32
    %11 = vector.broadcast %cst : f32 to vector<4x1xf32>
    %12 = arith.divf %11, %10 : vector<4x1xf32>
    %13 = vector.broadcast %12 : vector<4x1xf32> to vector<4x256xf32>
    %14 = arith.mulf %8, %13 : vector<4x256xf32>
    %c0_12 = arith.constant 0 : index
    %c0_13 = arith.constant 0 : index
    %c0_14 = arith.constant 0 : index
    %15 = vector.load %arg6[%c0_12, %c0_13, %c0_14] : memref<1x12x4xf32, #tpu.memory_space<vmem>>, vector<1x12x4xf32>
    %16 = vector.shape_cast %15 : vector<1x12x4xf32> to vector<12x4xf32>
    %cst_15 = arith.constant dense<0.000000e+00> : vector<12x256xf32>
    %17 = tpu.matmul %16, %6, %cst_15 {dimension_numbers = #tpu.dot_dimension_numbers<[1], [0], [0], [1], [0, 0, 1, 1], [], []>} : vector<12x4xf32>, vector<4x256xf32>, vector<12x256xf32> -> vector<12x256xf32>
    %18 = vector.extract_strided_slice %17 {offsets = [0, 0], sizes = [3, 256], strides = [1, 1]} : vector<12x256xf32> to vector<3x256xf32>
    %19 = arith.subf %4, %18 : vector<3x256xf32>
    %20 = vector.extract_strided_slice %14 {offsets = [0, 0], sizes = [1, 256], strides = [1, 1]} : vector<4x256xf32> to vector<1x256xf32>
    %21 = vector.broadcast %20 : vector<1x256xf32> to vector<3x256xf32>
    %22 = arith.mulf %19, %21 : vector<3x256xf32>
    %cst_16 = arith.constant dense<0.000000e+00> : vector<3x3xf32>
    %23 = tpu.matmul %22, %19, %cst_16 {dimension_numbers = #tpu.dot_dimension_numbers<[1], [1], [0], [0], [0, 0, 1, 0], [], []>} : vector<3x256xf32>, vector<3x256xf32>, vector<3x3xf32> -> vector<3x3xf32>
    %c0_17 = arith.constant 0 : index
    %c0_18 = arith.constant 0 : index
    %c0_19 = arith.constant 0 : index
    %c0_20 = arith.constant 0 : index
    %24 = vector.load %arg7[%c0_17, %c0_18, %c0_19, %c0_20] : memref<1x4x3x3xf32, #tpu.memory_space<vmem>>, vector<1x1x3x3xf32>
    %25 = vector.shape_cast %24 : vector<1x1x3x3xf32> to vector<3x3xf32>
    %26 = arith.addf %25, %23 : vector<3x3xf32>
    %c0_21 = arith.constant 0 : index
    %c0_22 = arith.constant 0 : index
    %c0_23 = arith.constant 0 : index
    %c0_24 = arith.constant 0 : index
    %27 = vector.load %arg7[%c0_21, %c0_22, %c0_23, %c0_24] : memref<1x4x3x3xf32, #tpu.memory_space<vmem>>, vector<1x1x3x3xf32>
    %28 = vector.shape_cast %27 : vector<1x1x3x3xf32> to vector<3x3xf32>
    %29 = vector.shape_cast %26 : vector<3x3xf32> to vector<1x1x3x3xf32>
    tpu.vector_store %arg7[%c0_21, %c0_22, %c0_23, %c0_24], %29 {strides = array<i32>} : memref<1x4x3x3xf32, #tpu.memory_space<vmem>>, vector<1x1x3x3xf32>,
    %30 = vector.extract_strided_slice %17 {offsets = [3, 0], sizes = [3, 256], strides = [1, 1]} : vector<12x256xf32> to vector<3x256xf32>
    %31 = arith.subf %4, %30 : vector<3x256xf32>
    %32 = vector.extract_strided_slice %14 {offsets = [1, 0], sizes = [1, 256], strides = [1, 1]} : vector<4x256xf32> to vector<1x256xf32>
    %33 = vector.broadcast %32 : vector<1x256xf32> to vector<3x256xf32>
    %34 = arith.mulf %31, %33 : vector<3x256xf32>
    %cst_25 = arith.constant dense<0.000000e+00> : vector<3x3xf32>
    %35 = tpu.matmul %34, %31, %cst_25 {dimension_numbers = #tpu.dot_dimension_numbers<[1], [1], [0], [0], [0, 0, 1, 0], [], []>} : vector<3x256xf32>, vector<3x256xf32>, vector<3x3xf32> -> vector<3x3xf32>
    %c0_26 = arith.constant 0 : index
    %c1 = arith.constant 1 : index
    %c0_27 = arith.constant 0 : index
    %c0_28 = arith.constant 0 : index
    %36 = vector.load %arg7[%c0_26, %c1, %c0_27, %c0_28] : memref<1x4x3x3xf32, #tpu.memory_space<vmem>>, vector<1x1x3x3xf32>
    %37 = vector.shape_cast %36 : vector<1x1x3x3xf32> to vector<3x3xf32>
    %38 = arith.addf %37, %35 : vector<3x3xf32>
    %c0_29 = arith.constant 0 : index
    %c1_30 = arith.constant 1 : index
    %c0_31 = arith.constant 0 : index
    %c0_32 = arith.constant 0 : index
    %39 = vector.load %arg7[%c0_29, %c1_30, %c0_31, %c0_32] : memref<1x4x3x3xf32, #tpu.memory_space<vmem>>, vector<1x1x3x3xf32>
    %40 = vector.shape_cast %39 : vector<1x1x3x3xf32> to vector<3x3xf32>
    %41 = vector.shape_cast %38 : vector<3x3xf32> to vector<1x1x3x3xf32>
    tpu.vector_store %arg7[%c0_29, %c1_30, %c0_31, %c0_32], %41 {strides = array<i32>} : memref<1x4x3x3xf32, #tpu.memory_space<vmem>>, vector<1x1x3x3xf32>,
    %42 = vector.extract_strided_slice %17 {offsets = [6, 0], sizes = [3, 256], strides = [1, 1]} : vector<12x256xf32> to vector<3x256xf32>
    %43 = arith.subf %4, %42 : vector<3x256xf32>
    %44 = vector.extract_strided_slice %14 {offsets = [2, 0], sizes = [1, 256], strides = [1, 1]} : vector<4x256xf32> to vector<1x256xf32>
    %45 = vector.broadcast %44 : vector<1x256xf32> to vector<3x256xf32>
    %46 = arith.mulf %43, %45 : vector<3x256xf32>
    %cst_33 = arith.constant dense<0.000000e+00> : vector<3x3xf32>
    %47 = tpu.matmul %46, %43, %cst_33 {dimension_numbers = #tpu.dot_dimension_numbers<[1], [1], [0], [0], [0, 0, 1, 0], [], []>} : vector<3x256xf32>, vector<3x256xf32>, vector<3x3xf32> -> vector<3x3xf32>
    %c0_34 = arith.constant 0 : index
    %c2 = arith.constant 2 : index
    %c0_35 = arith.constant 0 : index
    %c0_36 = arith.constant 0 : index
    %48 = vector.load %arg7[%c0_34, %c2, %c0_35, %c0_36] : memref<1x4x3x3xf32, #tpu.memory_space<vmem>>, vector<1x1x3x3xf32>
    %49 = vector.shape_cast %48 : vector<1x1x3x3xf32> to vector<3x3xf32>
    %50 = arith.addf %49, %47 : vector<3x3xf32>
    %c0_37 = arith.constant 0 : index
    %c2_38 = arith.constant 2 : index
    %c0_39 = arith.constant 0 : index
    %c0_40 = arith.constant 0 : index
    %51 = vector.load %arg7[%c0_37, %c2_38, %c0_39, %c0_40] : memref<1x4x3x3xf32, #tpu.memory_space<vmem>>, vector<1x1x3x3xf32>
    %52 = vector.shape_cast %51 : vector<1x1x3x3xf32> to vector<3x3xf32>
    %53 = vector.shape_cast %50 : vector<3x3xf32> to vector<1x1x3x3xf32>
    tpu.vector_store %arg7[%c0_37, %c2_38, %c0_39, %c0_40], %53 {strides = array<i32>} : memref<1x4x3x3xf32, #tpu.memory_space<vmem>>, vector<1x1x3x3xf32>,
    %54 = vector.extract_strided_slice %17 {offsets = [9, 0], sizes = [3, 256], strides = [1, 1]} : vector<12x256xf32> to vector<3x256xf32>
    %55 = arith.subf %4, %54 : vector<3x256xf32>
    %56 = vector.extract_strided_slice %14 {offsets = [3, 0], sizes = [1, 256], strides = [1, 1]} : vector<4x256xf32> to vector<1x256xf32>
    %57 = vector.broadcast %56 : vector<1x256xf32> to vector<3x256xf32>
    %58 = arith.mulf %55, %57 : vector<3x256xf32>
    %cst_41 = arith.constant dense<0.000000e+00> : vector<3x3xf32>
    %59 = tpu.matmul %58, %55, %cst_41 {dimension_numbers = #tpu.dot_dimension_numbers<[1], [1], [0], [0], [0, 0, 1, 0], [], []>} : vector<3x256xf32>, vector<3x256xf32>, vector<3x3xf32> -> vector<3x3xf32>
    %c0_42 = arith.constant 0 : index
    %c3 = arith.constant 3 : index
    %c0_43 = arith.constant 0 : index
    %c0_44 = arith.constant 0 : index
    %60 = vector.load %arg7[%c0_42, %c3, %c0_43, %c0_44] : memref<1x4x3x3xf32, #tpu.memory_space<vmem>>, vector<1x1x3x3xf32>
    %61 = vector.shape_cast %60 : vector<1x1x3x3xf32> to vector<3x3xf32>
    %62 = arith.addf %61, %59 : vector<3x3xf32>
    %c0_45 = arith.constant 0 : index
    %c3_46 = arith.constant 3 : index
    %c0_47 = arith.constant 0 : index
    %c0_48 = arith.constant 0 : index
    %63 = vector.load %arg7[%c0_45, %c3_46, %c0_47, %c0_48] : memref<1x4x3x3xf32, #tpu.memory_space<vmem>>, vector<1x1x3x3xf32>
    %64 = vector.shape_cast %63 : vector<1x1x3x3xf32> to vector<3x3xf32>
    %65 = vector.shape_cast %62 : vector<3x3xf32> to vector<1x1x3x3xf32>
    tpu.vector_store %arg7[%c0_45, %c3_46, %c0_47, %c0_48], %65 {strides = array<i32>} : memref<1x4x3x3xf32, #tpu.memory_space<vmem>>, vector<1x1x3x3xf32>,
    return
  }
  func.func @transform_0(%arg0: i32, %arg1: i32) -> (i32, i32, i32) {
    %c0_i32 = arith.constant 0 : i32
    %c0_i32_0 = arith.constant 0 : i32
    return %arg0, %c0_i32, %arg1 : i32, i32, i32
  }
  func.func @transform_1(%arg0: i32, %arg1: i32) -> (i32, i32, i32) {
    %c0_i32 = arith.constant 0 : i32
    %c0_i32_0 = arith.constant 0 : i32
    return %arg0, %c0_i32, %arg1 : i32, i32, i32
  }
  func.func @transform_2(%arg0: i32, %arg1: i32) -> (i32, i32, i32) {
    %c0_i32 = arith.constant 0 : i32
    %c0_i32_0 = arith.constant 0 : i32
    return %arg0, %c0_i32, %arg1 : i32, i32, i32
  }
  func.func @transform_3(%arg0: i32, %arg1: i32) -> (i32, i32, i32) {
    %c0_i32 = arith.constant 0 : i32
    %c0_i32_0 = arith.constant 0 : i32
    %c0_i32_1 = arith.constant 0 : i32
    return %arg0, %c0_i32, %c0_i32_0 : i32, i32, i32
  }
  func.func @transform_4(%arg0: i32, %arg1: i32) -> (i32, i32, i32) {
    %c0_i32 = arith.constant 0 : i32
    %c0_i32_0 = arith.constant 0 : i32
    %c0_i32_1 = arith.constant 0 : i32
    return %arg0, %c0_i32, %c0_i32_0 : i32, i32, i32
  }
  func.func @transform_5(%arg0: i32, %arg1: i32) -> (i32, i32, i32, i32) {
    %c0_i32 = arith.constant 0 : i32
    %c0_i32_0 = arith.constant 0 : i32
    %c0_i32_1 = arith.constant 0 : i32
    %c0_i32_2 = arith.constant 0 : i32
    return %arg0, %c0_i32, %c0_i32_0, %c0_i32_1 : i32, i32, i32, i32
  }
}

module attributes {stable_mosaic.version = 11 : i64} {
  func.func @_estep_kernel(%arg0: i32, %arg1: i32, %arg2: memref<1x3x256xf32, #tpu.memory_space<vmem>>, %arg3: memref<1x4x256xf32, #tpu.memory_space<vmem>>, %arg4: memref<1x12x4xf32, #tpu.memory_space<vmem>>, %arg5: memref<1x4x3x3xf32, #tpu.memory_space<vmem>>, %arg6: memref<1x4x1xf32, #tpu.memory_space<vmem>>, %arg7: memref<1x4x256xf32, #tpu.memory_space<vmem>>) attributes {dimension_semantics = [#tpu.dimension_semantics<parallel>, #tpu.dimension_semantics<arbitrary>], iteration_bounds = array<i64: 2, 1>, scalar_prefetch = 0 : i64, scratch_operands = 0 : i64, tpu.core_type = #tpu.core_type<tc>, window_params = [{transform_indices = @transform_0, window_bounds = array<i64: 1, 3, 256>}, {transform_indices = @transform_1, window_bounds = array<i64: 1, 4, 256>}, {transform_indices = @transform_2, window_bounds = array<i64: 1, 12, 4>}, {transform_indices = @transform_3, window_bounds = array<i64: 1, 4, 3, 3>}, {transform_indices = @transform_4, window_bounds = array<i64: 1, 4, 1>}, {transform_indices = @transform_5, window_bounds = array<i64: 1, 4, 256>}]} {
    %c0 = arith.constant 0 : index
    %c0_0 = arith.constant 0 : index
    %c0_1 = arith.constant 0 : index
    %0 = vector.load %arg2[%c0, %c0_0, %c0_1] : memref<1x3x256xf32, #tpu.memory_space<vmem>>, vector<1x3x256xf32>
    %1 = vector.shape_cast %0 : vector<1x3x256xf32> to vector<3x256xf32>
    %c0_2 = arith.constant 0 : index
    %c0_3 = arith.constant 0 : index
    %c0_4 = arith.constant 0 : index
    %2 = vector.load %arg3[%c0_2, %c0_3, %c0_4] : memref<1x4x256xf32, #tpu.memory_space<vmem>>, vector<1x4x256xf32>
    %3 = vector.shape_cast %2 : vector<1x4x256xf32> to vector<4x256xf32>
    %c0_5 = arith.constant 0 : index
    %c0_6 = arith.constant 0 : index
    %c0_7 = arith.constant 0 : index
    %4 = vector.load %arg4[%c0_5, %c0_6, %c0_7] : memref<1x12x4xf32, #tpu.memory_space<vmem>>, vector<1x12x4xf32>
    %5 = vector.shape_cast %4 : vector<1x12x4xf32> to vector<12x4xf32>
    %cst = arith.constant dense<0.000000e+00> : vector<12x256xf32>
    %6 = tpu.matmul %5, %3, %cst {dimension_numbers = #tpu.dot_dimension_numbers<[1], [0], [0], [1], [0, 0, 1, 1], [], []>} : vector<12x4xf32>, vector<4x256xf32>, vector<12x256xf32> -> vector<12x256xf32>
    %c0_8 = arith.constant 0 : index
    %c0_9 = arith.constant 0 : index
    %c0_10 = arith.constant 0 : index
    %7 = vector.load %arg6[%c0_8, %c0_9, %c0_10] : memref<1x4x1xf32, #tpu.memory_space<vmem>>, vector<1x4x1xf32>
    %8 = vector.shape_cast %7 : vector<1x4x1xf32> to vector<4x1xf32>
    %9 = vector.extract_strided_slice %6 {offsets = [0, 0], sizes = [3, 256], strides = [1, 1]} : vector<12x256xf32> to vector<3x256xf32>
    %10 = arith.subf %1, %9 : vector<3x256xf32>
    %c0_11 = arith.constant 0 : index
    %c0_12 = arith.constant 0 : index
    %c0_13 = arith.constant 0 : index
    %c0_14 = arith.constant 0 : index
    %11 = vector.load %arg5[%c0_11, %c0_12, %c0_13, %c0_14] : memref<1x4x3x3xf32, #tpu.memory_space<vmem>>, vector<1x1x3x3xf32>
    %12 = vector.shape_cast %11 : vector<1x1x3x3xf32> to vector<3x3xf32>
    %cst_15 = arith.constant 0.000000e+00 : f32
    %13 = vector.broadcast %cst_15 : f32 to vector<1x256xf32>
    %14 = vector.extract_strided_slice %12 {offsets = [0, 0], sizes = [1, 1], strides = [1, 1]} : vector<3x3xf32> to vector<1x1xf32>
    %cst_16 = arith.constant 1.000000e+00 : f32
    %15 = vector.broadcast %cst_16 : f32 to vector<1x1xf32>
    %16 = arith.mulf %15, %14 : vector<1x1xf32>
    %17 = vector.extract_strided_slice %10 {offsets = [0, 0], sizes = [1, 256], strides = [1, 1]} : vector<3x256xf32> to vector<1x256xf32>
    %18 = vector.extract_strided_slice %10 {offsets = [0, 0], sizes = [1, 256], strides = [1, 1]} : vector<3x256xf32> to vector<1x256xf32>
    %19 = arith.mulf %17, %18 : vector<1x256xf32>
    %20 = vector.broadcast %16 : vector<1x1xf32> to vector<1x256xf32>
    %21 = arith.mulf %20, %19 : vector<1x256xf32>
    %22 = arith.addf %13, %21 : vector<1x256xf32>
    %23 = vector.extract_strided_slice %12 {offsets = [0, 1], sizes = [1, 1], strides = [1, 1]} : vector<3x3xf32> to vector<1x1xf32>
    %cst_17 = arith.constant 2.000000e+00 : f32
    %24 = vector.broadcast %cst_17 : f32 to vector<1x1xf32>
    %25 = arith.mulf %24, %23 : vector<1x1xf32>
    %26 = vector.extract_strided_slice %10 {offsets = [0, 0], sizes = [1, 256], strides = [1, 1]} : vector<3x256xf32> to vector<1x256xf32>
    %27 = vector.extract_strided_slice %10 {offsets = [1, 0], sizes = [1, 256], strides = [1, 1]} : vector<3x256xf32> to vector<1x256xf32>
    %28 = arith.mulf %26, %27 : vector<1x256xf32>
    %29 = vector.broadcast %25 : vector<1x1xf32> to vector<1x256xf32>
    %30 = arith.mulf %29, %28 : vector<1x256xf32>
    %31 = arith.addf %22, %30 : vector<1x256xf32>
    %32 = vector.extract_strided_slice %12 {offsets = [0, 2], sizes = [1, 1], strides = [1, 1]} : vector<3x3xf32> to vector<1x1xf32>
    %cst_18 = arith.constant 2.000000e+00 : f32
    %33 = vector.broadcast %cst_18 : f32 to vector<1x1xf32>
    %34 = arith.mulf %33, %32 : vector<1x1xf32>
    %35 = vector.extract_strided_slice %10 {offsets = [0, 0], sizes = [1, 256], strides = [1, 1]} : vector<3x256xf32> to vector<1x256xf32>
    %36 = vector.extract_strided_slice %10 {offsets = [2, 0], sizes = [1, 256], strides = [1, 1]} : vector<3x256xf32> to vector<1x256xf32>
    %37 = arith.mulf %35, %36 : vector<1x256xf32>
    %38 = vector.broadcast %34 : vector<1x1xf32> to vector<1x256xf32>
    %39 = arith.mulf %38, %37 : vector<1x256xf32>
    %40 = arith.addf %31, %39 : vector<1x256xf32>
    %41 = vector.extract_strided_slice %12 {offsets = [1, 1], sizes = [1, 1], strides = [1, 1]} : vector<3x3xf32> to vector<1x1xf32>
    %cst_19 = arith.constant 1.000000e+00 : f32
    %42 = vector.broadcast %cst_19 : f32 to vector<1x1xf32>
    %43 = arith.mulf %42, %41 : vector<1x1xf32>
    %44 = vector.extract_strided_slice %10 {offsets = [1, 0], sizes = [1, 256], strides = [1, 1]} : vector<3x256xf32> to vector<1x256xf32>
    %45 = vector.extract_strided_slice %10 {offsets = [1, 0], sizes = [1, 256], strides = [1, 1]} : vector<3x256xf32> to vector<1x256xf32>
    %46 = arith.mulf %44, %45 : vector<1x256xf32>
    %47 = vector.broadcast %43 : vector<1x1xf32> to vector<1x256xf32>
    %48 = arith.mulf %47, %46 : vector<1x256xf32>
    %49 = arith.addf %40, %48 : vector<1x256xf32>
    %50 = vector.extract_strided_slice %12 {offsets = [1, 2], sizes = [1, 1], strides = [1, 1]} : vector<3x3xf32> to vector<1x1xf32>
    %cst_20 = arith.constant 2.000000e+00 : f32
    %51 = vector.broadcast %cst_20 : f32 to vector<1x1xf32>
    %52 = arith.mulf %51, %50 : vector<1x1xf32>
    %53 = vector.extract_strided_slice %10 {offsets = [1, 0], sizes = [1, 256], strides = [1, 1]} : vector<3x256xf32> to vector<1x256xf32>
    %54 = vector.extract_strided_slice %10 {offsets = [2, 0], sizes = [1, 256], strides = [1, 1]} : vector<3x256xf32> to vector<1x256xf32>
    %55 = arith.mulf %53, %54 : vector<1x256xf32>
    %56 = vector.broadcast %52 : vector<1x1xf32> to vector<1x256xf32>
    %57 = arith.mulf %56, %55 : vector<1x256xf32>
    %58 = arith.addf %49, %57 : vector<1x256xf32>
    %59 = vector.extract_strided_slice %12 {offsets = [2, 2], sizes = [1, 1], strides = [1, 1]} : vector<3x3xf32> to vector<1x1xf32>
    %cst_21 = arith.constant 1.000000e+00 : f32
    %60 = vector.broadcast %cst_21 : f32 to vector<1x1xf32>
    %61 = arith.mulf %60, %59 : vector<1x1xf32>
    %62 = vector.extract_strided_slice %10 {offsets = [2, 0], sizes = [1, 256], strides = [1, 1]} : vector<3x256xf32> to vector<1x256xf32>
    %63 = vector.extract_strided_slice %10 {offsets = [2, 0], sizes = [1, 256], strides = [1, 1]} : vector<3x256xf32> to vector<1x256xf32>
    %64 = arith.mulf %62, %63 : vector<1x256xf32>
    %65 = vector.broadcast %61 : vector<1x1xf32> to vector<1x256xf32>
    %66 = arith.mulf %65, %64 : vector<1x256xf32>
    %67 = arith.addf %58, %66 : vector<1x256xf32>
    %cst_22 = arith.constant -5.000000e-01 : f32
    %68 = vector.broadcast %cst_22 : f32 to vector<1x256xf32>
    %69 = arith.mulf %68, %67 : vector<1x256xf32>
    %70 = vector.extract_strided_slice %8 {offsets = [0, 0], sizes = [1, 1], strides = [1, 1]} : vector<4x1xf32> to vector<1x1xf32>
    %cst_23 = arith.constant 5.000000e-01 : f32
    %71 = vector.broadcast %cst_23 : f32 to vector<1x1xf32>
    %72 = arith.mulf %71, %70 : vector<1x1xf32>
    %73 = vector.broadcast %72 : vector<1x1xf32> to vector<1x256xf32>
    %74 = arith.subf %69, %73 : vector<1x256xf32>
    %c0_24 = arith.constant 0 : index
    %c0_25 = arith.constant 0 : index
    %c0_26 = arith.constant 0 : index
    %75 = vector.load %arg7[%c0_24, %c0_25, %c0_26] : memref<1x4x256xf32, #tpu.memory_space<vmem>>, vector<1x1x256xf32>
    %76 = vector.shape_cast %75 : vector<1x1x256xf32> to vector<1x256xf32>
    %77 = vector.shape_cast %74 : vector<1x256xf32> to vector<1x1x256xf32>
    tpu.vector_store %arg7[%c0_24, %c0_25, %c0_26], %77 {strides = array<i32>} : memref<1x4x256xf32, #tpu.memory_space<vmem>>, vector<1x1x256xf32>,
    %78 = vector.extract_strided_slice %6 {offsets = [3, 0], sizes = [3, 256], strides = [1, 1]} : vector<12x256xf32> to vector<3x256xf32>
    %79 = arith.subf %1, %78 : vector<3x256xf32>
    %c0_27 = arith.constant 0 : index
    %c1 = arith.constant 1 : index
    %c0_28 = arith.constant 0 : index
    %c0_29 = arith.constant 0 : index
    %80 = vector.load %arg5[%c0_27, %c1, %c0_28, %c0_29] : memref<1x4x3x3xf32, #tpu.memory_space<vmem>>, vector<1x1x3x3xf32>
    %81 = vector.shape_cast %80 : vector<1x1x3x3xf32> to vector<3x3xf32>
    %cst_30 = arith.constant 0.000000e+00 : f32
    %82 = vector.broadcast %cst_30 : f32 to vector<1x256xf32>
    %83 = vector.extract_strided_slice %81 {offsets = [0, 0], sizes = [1, 1], strides = [1, 1]} : vector<3x3xf32> to vector<1x1xf32>
    %cst_31 = arith.constant 1.000000e+00 : f32
    %84 = vector.broadcast %cst_31 : f32 to vector<1x1xf32>
    %85 = arith.mulf %84, %83 : vector<1x1xf32>
    %86 = vector.extract_strided_slice %79 {offsets = [0, 0], sizes = [1, 256], strides = [1, 1]} : vector<3x256xf32> to vector<1x256xf32>
    %87 = vector.extract_strided_slice %79 {offsets = [0, 0], sizes = [1, 256], strides = [1, 1]} : vector<3x256xf32> to vector<1x256xf32>
    %88 = arith.mulf %86, %87 : vector<1x256xf32>
    %89 = vector.broadcast %85 : vector<1x1xf32> to vector<1x256xf32>
    %90 = arith.mulf %89, %88 : vector<1x256xf32>
    %91 = arith.addf %82, %90 : vector<1x256xf32>
    %92 = vector.extract_strided_slice %81 {offsets = [0, 1], sizes = [1, 1], strides = [1, 1]} : vector<3x3xf32> to vector<1x1xf32>
    %cst_32 = arith.constant 2.000000e+00 : f32
    %93 = vector.broadcast %cst_32 : f32 to vector<1x1xf32>
    %94 = arith.mulf %93, %92 : vector<1x1xf32>
    %95 = vector.extract_strided_slice %79 {offsets = [0, 0], sizes = [1, 256], strides = [1, 1]} : vector<3x256xf32> to vector<1x256xf32>
    %96 = vector.extract_strided_slice %79 {offsets = [1, 0], sizes = [1, 256], strides = [1, 1]} : vector<3x256xf32> to vector<1x256xf32>
    %97 = arith.mulf %95, %96 : vector<1x256xf32>
    %98 = vector.broadcast %94 : vector<1x1xf32> to vector<1x256xf32>
    %99 = arith.mulf %98, %97 : vector<1x256xf32>
    %100 = arith.addf %91, %99 : vector<1x256xf32>
    %101 = vector.extract_strided_slice %81 {offsets = [0, 2], sizes = [1, 1], strides = [1, 1]} : vector<3x3xf32> to vector<1x1xf32>
    %cst_33 = arith.constant 2.000000e+00 : f32
    %102 = vector.broadcast %cst_33 : f32 to vector<1x1xf32>
    %103 = arith.mulf %102, %101 : vector<1x1xf32>
    %104 = vector.extract_strided_slice %79 {offsets = [0, 0], sizes = [1, 256], strides = [1, 1]} : vector<3x256xf32> to vector<1x256xf32>
    %105 = vector.extract_strided_slice %79 {offsets = [2, 0], sizes = [1, 256], strides = [1, 1]} : vector<3x256xf32> to vector<1x256xf32>
    %106 = arith.mulf %104, %105 : vector<1x256xf32>
    %107 = vector.broadcast %103 : vector<1x1xf32> to vector<1x256xf32>
    %108 = arith.mulf %107, %106 : vector<1x256xf32>
    %109 = arith.addf %100, %108 : vector<1x256xf32>
    %110 = vector.extract_strided_slice %81 {offsets = [1, 1], sizes = [1, 1], strides = [1, 1]} : vector<3x3xf32> to vector<1x1xf32>
    %cst_34 = arith.constant 1.000000e+00 : f32
    %111 = vector.broadcast %cst_34 : f32 to vector<1x1xf32>
    %112 = arith.mulf %111, %110 : vector<1x1xf32>
    %113 = vector.extract_strided_slice %79 {offsets = [1, 0], sizes = [1, 256], strides = [1, 1]} : vector<3x256xf32> to vector<1x256xf32>
    %114 = vector.extract_strided_slice %79 {offsets = [1, 0], sizes = [1, 256], strides = [1, 1]} : vector<3x256xf32> to vector<1x256xf32>
    %115 = arith.mulf %113, %114 : vector<1x256xf32>
    %116 = vector.broadcast %112 : vector<1x1xf32> to vector<1x256xf32>
    %117 = arith.mulf %116, %115 : vector<1x256xf32>
    %118 = arith.addf %109, %117 : vector<1x256xf32>
    %119 = vector.extract_strided_slice %81 {offsets = [1, 2], sizes = [1, 1], strides = [1, 1]} : vector<3x3xf32> to vector<1x1xf32>
    %cst_35 = arith.constant 2.000000e+00 : f32
    %120 = vector.broadcast %cst_35 : f32 to vector<1x1xf32>
    %121 = arith.mulf %120, %119 : vector<1x1xf32>
    %122 = vector.extract_strided_slice %79 {offsets = [1, 0], sizes = [1, 256], strides = [1, 1]} : vector<3x256xf32> to vector<1x256xf32>
    %123 = vector.extract_strided_slice %79 {offsets = [2, 0], sizes = [1, 256], strides = [1, 1]} : vector<3x256xf32> to vector<1x256xf32>
    %124 = arith.mulf %122, %123 : vector<1x256xf32>
    %125 = vector.broadcast %121 : vector<1x1xf32> to vector<1x256xf32>
    %126 = arith.mulf %125, %124 : vector<1x256xf32>
    %127 = arith.addf %118, %126 : vector<1x256xf32>
    %128 = vector.extract_strided_slice %81 {offsets = [2, 2], sizes = [1, 1], strides = [1, 1]} : vector<3x3xf32> to vector<1x1xf32>
    %cst_36 = arith.constant 1.000000e+00 : f32
    %129 = vector.broadcast %cst_36 : f32 to vector<1x1xf32>
    %130 = arith.mulf %129, %128 : vector<1x1xf32>
    %131 = vector.extract_strided_slice %79 {offsets = [2, 0], sizes = [1, 256], strides = [1, 1]} : vector<3x256xf32> to vector<1x256xf32>
    %132 = vector.extract_strided_slice %79 {offsets = [2, 0], sizes = [1, 256], strides = [1, 1]} : vector<3x256xf32> to vector<1x256xf32>
    %133 = arith.mulf %131, %132 : vector<1x256xf32>
    %134 = vector.broadcast %130 : vector<1x1xf32> to vector<1x256xf32>
    %135 = arith.mulf %134, %133 : vector<1x256xf32>
    %136 = arith.addf %127, %135 : vector<1x256xf32>
    %cst_37 = arith.constant -5.000000e-01 : f32
    %137 = vector.broadcast %cst_37 : f32 to vector<1x256xf32>
    %138 = arith.mulf %137, %136 : vector<1x256xf32>
    %139 = vector.extract_strided_slice %8 {offsets = [1, 0], sizes = [1, 1], strides = [1, 1]} : vector<4x1xf32> to vector<1x1xf32>
    %cst_38 = arith.constant 5.000000e-01 : f32
    %140 = vector.broadcast %cst_38 : f32 to vector<1x1xf32>
    %141 = arith.mulf %140, %139 : vector<1x1xf32>
    %142 = vector.broadcast %141 : vector<1x1xf32> to vector<1x256xf32>
    %143 = arith.subf %138, %142 : vector<1x256xf32>
    %c0_39 = arith.constant 0 : index
    %c1_40 = arith.constant 1 : index
    %c0_41 = arith.constant 0 : index
    %144 = vector.load %arg7[%c0_39, %c1_40, %c0_41] : memref<1x4x256xf32, #tpu.memory_space<vmem>>, vector<1x1x256xf32>
    %145 = vector.shape_cast %144 : vector<1x1x256xf32> to vector<1x256xf32>
    %146 = vector.shape_cast %143 : vector<1x256xf32> to vector<1x1x256xf32>
    tpu.vector_store %arg7[%c0_39, %c1_40, %c0_41], %146 {strides = array<i32>} : memref<1x4x256xf32, #tpu.memory_space<vmem>>, vector<1x1x256xf32>,
    %147 = vector.extract_strided_slice %6 {offsets = [6, 0], sizes = [3, 256], strides = [1, 1]} : vector<12x256xf32> to vector<3x256xf32>
    %148 = arith.subf %1, %147 : vector<3x256xf32>
    %c0_42 = arith.constant 0 : index
    %c2 = arith.constant 2 : index
    %c0_43 = arith.constant 0 : index
    %c0_44 = arith.constant 0 : index
    %149 = vector.load %arg5[%c0_42, %c2, %c0_43, %c0_44] : memref<1x4x3x3xf32, #tpu.memory_space<vmem>>, vector<1x1x3x3xf32>
    %150 = vector.shape_cast %149 : vector<1x1x3x3xf32> to vector<3x3xf32>
    %cst_45 = arith.constant 0.000000e+00 : f32
    %151 = vector.broadcast %cst_45 : f32 to vector<1x256xf32>
    %152 = vector.extract_strided_slice %150 {offsets = [0, 0], sizes = [1, 1], strides = [1, 1]} : vector<3x3xf32> to vector<1x1xf32>
    %cst_46 = arith.constant 1.000000e+00 : f32
    %153 = vector.broadcast %cst_46 : f32 to vector<1x1xf32>
    %154 = arith.mulf %153, %152 : vector<1x1xf32>
    %155 = vector.extract_strided_slice %148 {offsets = [0, 0], sizes = [1, 256], strides = [1, 1]} : vector<3x256xf32> to vector<1x256xf32>
    %156 = vector.extract_strided_slice %148 {offsets = [0, 0], sizes = [1, 256], strides = [1, 1]} : vector<3x256xf32> to vector<1x256xf32>
    %157 = arith.mulf %155, %156 : vector<1x256xf32>
    %158 = vector.broadcast %154 : vector<1x1xf32> to vector<1x256xf32>
    %159 = arith.mulf %158, %157 : vector<1x256xf32>
    %160 = arith.addf %151, %159 : vector<1x256xf32>
    %161 = vector.extract_strided_slice %150 {offsets = [0, 1], sizes = [1, 1], strides = [1, 1]} : vector<3x3xf32> to vector<1x1xf32>
    %cst_47 = arith.constant 2.000000e+00 : f32
    %162 = vector.broadcast %cst_47 : f32 to vector<1x1xf32>
    %163 = arith.mulf %162, %161 : vector<1x1xf32>
    %164 = vector.extract_strided_slice %148 {offsets = [0, 0], sizes = [1, 256], strides = [1, 1]} : vector<3x256xf32> to vector<1x256xf32>
    %165 = vector.extract_strided_slice %148 {offsets = [1, 0], sizes = [1, 256], strides = [1, 1]} : vector<3x256xf32> to vector<1x256xf32>
    %166 = arith.mulf %164, %165 : vector<1x256xf32>
    %167 = vector.broadcast %163 : vector<1x1xf32> to vector<1x256xf32>
    %168 = arith.mulf %167, %166 : vector<1x256xf32>
    %169 = arith.addf %160, %168 : vector<1x256xf32>
    %170 = vector.extract_strided_slice %150 {offsets = [0, 2], sizes = [1, 1], strides = [1, 1]} : vector<3x3xf32> to vector<1x1xf32>
    %cst_48 = arith.constant 2.000000e+00 : f32
    %171 = vector.broadcast %cst_48 : f32 to vector<1x1xf32>
    %172 = arith.mulf %171, %170 : vector<1x1xf32>
    %173 = vector.extract_strided_slice %148 {offsets = [0, 0], sizes = [1, 256], strides = [1, 1]} : vector<3x256xf32> to vector<1x256xf32>
    %174 = vector.extract_strided_slice %148 {offsets = [2, 0], sizes = [1, 256], strides = [1, 1]} : vector<3x256xf32> to vector<1x256xf32>
    %175 = arith.mulf %173, %174 : vector<1x256xf32>
    %176 = vector.broadcast %172 : vector<1x1xf32> to vector<1x256xf32>
    %177 = arith.mulf %176, %175 : vector<1x256xf32>
    %178 = arith.addf %169, %177 : vector<1x256xf32>
    %179 = vector.extract_strided_slice %150 {offsets = [1, 1], sizes = [1, 1], strides = [1, 1]} : vector<3x3xf32> to vector<1x1xf32>
    %cst_49 = arith.constant 1.000000e+00 : f32
    %180 = vector.broadcast %cst_49 : f32 to vector<1x1xf32>
    %181 = arith.mulf %180, %179 : vector<1x1xf32>
    %182 = vector.extract_strided_slice %148 {offsets = [1, 0], sizes = [1, 256], strides = [1, 1]} : vector<3x256xf32> to vector<1x256xf32>
    %183 = vector.extract_strided_slice %148 {offsets = [1, 0], sizes = [1, 256], strides = [1, 1]} : vector<3x256xf32> to vector<1x256xf32>
    %184 = arith.mulf %182, %183 : vector<1x256xf32>
    %185 = vector.broadcast %181 : vector<1x1xf32> to vector<1x256xf32>
    %186 = arith.mulf %185, %184 : vector<1x256xf32>
    %187 = arith.addf %178, %186 : vector<1x256xf32>
    %188 = vector.extract_strided_slice %150 {offsets = [1, 2], sizes = [1, 1], strides = [1, 1]} : vector<3x3xf32> to vector<1x1xf32>
    %cst_50 = arith.constant 2.000000e+00 : f32
    %189 = vector.broadcast %cst_50 : f32 to vector<1x1xf32>
    %190 = arith.mulf %189, %188 : vector<1x1xf32>
    %191 = vector.extract_strided_slice %148 {offsets = [1, 0], sizes = [1, 256], strides = [1, 1]} : vector<3x256xf32> to vector<1x256xf32>
    %192 = vector.extract_strided_slice %148 {offsets = [2, 0], sizes = [1, 256], strides = [1, 1]} : vector<3x256xf32> to vector<1x256xf32>
    %193 = arith.mulf %191, %192 : vector<1x256xf32>
    %194 = vector.broadcast %190 : vector<1x1xf32> to vector<1x256xf32>
    %195 = arith.mulf %194, %193 : vector<1x256xf32>
    %196 = arith.addf %187, %195 : vector<1x256xf32>
    %197 = vector.extract_strided_slice %150 {offsets = [2, 2], sizes = [1, 1], strides = [1, 1]} : vector<3x3xf32> to vector<1x1xf32>
    %cst_51 = arith.constant 1.000000e+00 : f32
    %198 = vector.broadcast %cst_51 : f32 to vector<1x1xf32>
    %199 = arith.mulf %198, %197 : vector<1x1xf32>
    %200 = vector.extract_strided_slice %148 {offsets = [2, 0], sizes = [1, 256], strides = [1, 1]} : vector<3x256xf32> to vector<1x256xf32>
    %201 = vector.extract_strided_slice %148 {offsets = [2, 0], sizes = [1, 256], strides = [1, 1]} : vector<3x256xf32> to vector<1x256xf32>
    %202 = arith.mulf %200, %201 : vector<1x256xf32>
    %203 = vector.broadcast %199 : vector<1x1xf32> to vector<1x256xf32>
    %204 = arith.mulf %203, %202 : vector<1x256xf32>
    %205 = arith.addf %196, %204 : vector<1x256xf32>
    %cst_52 = arith.constant -5.000000e-01 : f32
    %206 = vector.broadcast %cst_52 : f32 to vector<1x256xf32>
    %207 = arith.mulf %206, %205 : vector<1x256xf32>
    %208 = vector.extract_strided_slice %8 {offsets = [2, 0], sizes = [1, 1], strides = [1, 1]} : vector<4x1xf32> to vector<1x1xf32>
    %cst_53 = arith.constant 5.000000e-01 : f32
    %209 = vector.broadcast %cst_53 : f32 to vector<1x1xf32>
    %210 = arith.mulf %209, %208 : vector<1x1xf32>
    %211 = vector.broadcast %210 : vector<1x1xf32> to vector<1x256xf32>
    %212 = arith.subf %207, %211 : vector<1x256xf32>
    %c0_54 = arith.constant 0 : index
    %c2_55 = arith.constant 2 : index
    %c0_56 = arith.constant 0 : index
    %213 = vector.load %arg7[%c0_54, %c2_55, %c0_56] : memref<1x4x256xf32, #tpu.memory_space<vmem>>, vector<1x1x256xf32>
    %214 = vector.shape_cast %213 : vector<1x1x256xf32> to vector<1x256xf32>
    %215 = vector.shape_cast %212 : vector<1x256xf32> to vector<1x1x256xf32>
    tpu.vector_store %arg7[%c0_54, %c2_55, %c0_56], %215 {strides = array<i32>} : memref<1x4x256xf32, #tpu.memory_space<vmem>>, vector<1x1x256xf32>,
    %216 = vector.extract_strided_slice %6 {offsets = [9, 0], sizes = [3, 256], strides = [1, 1]} : vector<12x256xf32> to vector<3x256xf32>
    %217 = arith.subf %1, %216 : vector<3x256xf32>
    %c0_57 = arith.constant 0 : index
    %c3 = arith.constant 3 : index
    %c0_58 = arith.constant 0 : index
    %c0_59 = arith.constant 0 : index
    %218 = vector.load %arg5[%c0_57, %c3, %c0_58, %c0_59] : memref<1x4x3x3xf32, #tpu.memory_space<vmem>>, vector<1x1x3x3xf32>
    %219 = vector.shape_cast %218 : vector<1x1x3x3xf32> to vector<3x3xf32>
    %cst_60 = arith.constant 0.000000e+00 : f32
    %220 = vector.broadcast %cst_60 : f32 to vector<1x256xf32>
    %221 = vector.extract_strided_slice %219 {offsets = [0, 0], sizes = [1, 1], strides = [1, 1]} : vector<3x3xf32> to vector<1x1xf32>
    %cst_61 = arith.constant 1.000000e+00 : f32
    %222 = vector.broadcast %cst_61 : f32 to vector<1x1xf32>
    %223 = arith.mulf %222, %221 : vector<1x1xf32>
    %224 = vector.extract_strided_slice %217 {offsets = [0, 0], sizes = [1, 256], strides = [1, 1]} : vector<3x256xf32> to vector<1x256xf32>
    %225 = vector.extract_strided_slice %217 {offsets = [0, 0], sizes = [1, 256], strides = [1, 1]} : vector<3x256xf32> to vector<1x256xf32>
    %226 = arith.mulf %224, %225 : vector<1x256xf32>
    %227 = vector.broadcast %223 : vector<1x1xf32> to vector<1x256xf32>
    %228 = arith.mulf %227, %226 : vector<1x256xf32>
    %229 = arith.addf %220, %228 : vector<1x256xf32>
    %230 = vector.extract_strided_slice %219 {offsets = [0, 1], sizes = [1, 1], strides = [1, 1]} : vector<3x3xf32> to vector<1x1xf32>
    %cst_62 = arith.constant 2.000000e+00 : f32
    %231 = vector.broadcast %cst_62 : f32 to vector<1x1xf32>
    %232 = arith.mulf %231, %230 : vector<1x1xf32>
    %233 = vector.extract_strided_slice %217 {offsets = [0, 0], sizes = [1, 256], strides = [1, 1]} : vector<3x256xf32> to vector<1x256xf32>
    %234 = vector.extract_strided_slice %217 {offsets = [1, 0], sizes = [1, 256], strides = [1, 1]} : vector<3x256xf32> to vector<1x256xf32>
    %235 = arith.mulf %233, %234 : vector<1x256xf32>
    %236 = vector.broadcast %232 : vector<1x1xf32> to vector<1x256xf32>
    %237 = arith.mulf %236, %235 : vector<1x256xf32>
    %238 = arith.addf %229, %237 : vector<1x256xf32>
    %239 = vector.extract_strided_slice %219 {offsets = [0, 2], sizes = [1, 1], strides = [1, 1]} : vector<3x3xf32> to vector<1x1xf32>
    %cst_63 = arith.constant 2.000000e+00 : f32
    %240 = vector.broadcast %cst_63 : f32 to vector<1x1xf32>
    %241 = arith.mulf %240, %239 : vector<1x1xf32>
    %242 = vector.extract_strided_slice %217 {offsets = [0, 0], sizes = [1, 256], strides = [1, 1]} : vector<3x256xf32> to vector<1x256xf32>
    %243 = vector.extract_strided_slice %217 {offsets = [2, 0], sizes = [1, 256], strides = [1, 1]} : vector<3x256xf32> to vector<1x256xf32>
    %244 = arith.mulf %242, %243 : vector<1x256xf32>
    %245 = vector.broadcast %241 : vector<1x1xf32> to vector<1x256xf32>
    %246 = arith.mulf %245, %244 : vector<1x256xf32>
    %247 = arith.addf %238, %246 : vector<1x256xf32>
    %248 = vector.extract_strided_slice %219 {offsets = [1, 1], sizes = [1, 1], strides = [1, 1]} : vector<3x3xf32> to vector<1x1xf32>
    %cst_64 = arith.constant 1.000000e+00 : f32
    %249 = vector.broadcast %cst_64 : f32 to vector<1x1xf32>
    %250 = arith.mulf %249, %248 : vector<1x1xf32>
    %251 = vector.extract_strided_slice %217 {offsets = [1, 0], sizes = [1, 256], strides = [1, 1]} : vector<3x256xf32> to vector<1x256xf32>
    %252 = vector.extract_strided_slice %217 {offsets = [1, 0], sizes = [1, 256], strides = [1, 1]} : vector<3x256xf32> to vector<1x256xf32>
    %253 = arith.mulf %251, %252 : vector<1x256xf32>
    %254 = vector.broadcast %250 : vector<1x1xf32> to vector<1x256xf32>
    %255 = arith.mulf %254, %253 : vector<1x256xf32>
    %256 = arith.addf %247, %255 : vector<1x256xf32>
    %257 = vector.extract_strided_slice %219 {offsets = [1, 2], sizes = [1, 1], strides = [1, 1]} : vector<3x3xf32> to vector<1x1xf32>
    %cst_65 = arith.constant 2.000000e+00 : f32
    %258 = vector.broadcast %cst_65 : f32 to vector<1x1xf32>
    %259 = arith.mulf %258, %257 : vector<1x1xf32>
    %260 = vector.extract_strided_slice %217 {offsets = [1, 0], sizes = [1, 256], strides = [1, 1]} : vector<3x256xf32> to vector<1x256xf32>
    %261 = vector.extract_strided_slice %217 {offsets = [2, 0], sizes = [1, 256], strides = [1, 1]} : vector<3x256xf32> to vector<1x256xf32>
    %262 = arith.mulf %260, %261 : vector<1x256xf32>
    %263 = vector.broadcast %259 : vector<1x1xf32> to vector<1x256xf32>
    %264 = arith.mulf %263, %262 : vector<1x256xf32>
    %265 = arith.addf %256, %264 : vector<1x256xf32>
    %266 = vector.extract_strided_slice %219 {offsets = [2, 2], sizes = [1, 1], strides = [1, 1]} : vector<3x3xf32> to vector<1x1xf32>
    %cst_66 = arith.constant 1.000000e+00 : f32
    %267 = vector.broadcast %cst_66 : f32 to vector<1x1xf32>
    %268 = arith.mulf %267, %266 : vector<1x1xf32>
    %269 = vector.extract_strided_slice %217 {offsets = [2, 0], sizes = [1, 256], strides = [1, 1]} : vector<3x256xf32> to vector<1x256xf32>
    %270 = vector.extract_strided_slice %217 {offsets = [2, 0], sizes = [1, 256], strides = [1, 1]} : vector<3x256xf32> to vector<1x256xf32>
    %271 = arith.mulf %269, %270 : vector<1x256xf32>
    %272 = vector.broadcast %268 : vector<1x1xf32> to vector<1x256xf32>
    %273 = arith.mulf %272, %271 : vector<1x256xf32>
    %274 = arith.addf %265, %273 : vector<1x256xf32>
    %cst_67 = arith.constant -5.000000e-01 : f32
    %275 = vector.broadcast %cst_67 : f32 to vector<1x256xf32>
    %276 = arith.mulf %275, %274 : vector<1x256xf32>
    %277 = vector.extract_strided_slice %8 {offsets = [3, 0], sizes = [1, 1], strides = [1, 1]} : vector<4x1xf32> to vector<1x1xf32>
    %cst_68 = arith.constant 5.000000e-01 : f32
    %278 = vector.broadcast %cst_68 : f32 to vector<1x1xf32>
    %279 = arith.mulf %278, %277 : vector<1x1xf32>
    %280 = vector.broadcast %279 : vector<1x1xf32> to vector<1x256xf32>
    %281 = arith.subf %276, %280 : vector<1x256xf32>
    %c0_69 = arith.constant 0 : index
    %c3_70 = arith.constant 3 : index
    %c0_71 = arith.constant 0 : index
    %282 = vector.load %arg7[%c0_69, %c3_70, %c0_71] : memref<1x4x256xf32, #tpu.memory_space<vmem>>, vector<1x1x256xf32>
    %283 = vector.shape_cast %282 : vector<1x1x256xf32> to vector<1x256xf32>
    %284 = vector.shape_cast %281 : vector<1x256xf32> to vector<1x1x256xf32>
    tpu.vector_store %arg7[%c0_69, %c3_70, %c0_71], %284 {strides = array<i32>} : memref<1x4x256xf32, #tpu.memory_space<vmem>>, vector<1x1x256xf32>,
    return
  }
  func.func @transform_0(%arg0: i32, %arg1: i32) -> (i32, i32, i32) {
    %c0_i32 = arith.constant 0 : i32
    %c0_i32_0 = arith.constant 0 : i32
    return %arg0, %c0_i32, %arg1 : i32, i32, i32
  }
  func.func @transform_1(%arg0: i32, %arg1: i32) -> (i32, i32, i32) {
    %c0_i32 = arith.constant 0 : i32
    %c0_i32_0 = arith.constant 0 : i32
    return %arg0, %c0_i32, %arg1 : i32, i32, i32
  }
  func.func @transform_2(%arg0: i32, %arg1: i32) -> (i32, i32, i32) {
    %c0_i32 = arith.constant 0 : i32
    %c0_i32_0 = arith.constant 0 : i32
    %c0_i32_1 = arith.constant 0 : i32
    return %arg0, %c0_i32, %c0_i32_0 : i32, i32, i32
  }
  func.func @transform_3(%arg0: i32, %arg1: i32) -> (i32, i32, i32, i32) {
    %c0_i32 = arith.constant 0 : i32
    %c0_i32_0 = arith.constant 0 : i32
    %c0_i32_1 = arith.constant 0 : i32
    %c0_i32_2 = arith.constant 0 : i32
    return %arg0, %c0_i32, %c0_i32_0, %c0_i32_1 : i32, i32, i32, i32
  }
  func.func @transform_4(%arg0: i32, %arg1: i32) -> (i32, i32, i32) {
    %c0_i32 = arith.constant 0 : i32
    %c0_i32_0 = arith.constant 0 : i32
    %c0_i32_1 = arith.constant 0 : i32
    return %arg0, %c0_i32, %c0_i32_0 : i32, i32, i32
  }
  func.func @transform_5(%arg0: i32, %arg1: i32) -> (i32, i32, i32) {
    %c0_i32 = arith.constant 0 : i32
    %c0_i32_0 = arith.constant 0 : i32
    return %arg0, %c0_i32, %arg1 : i32, i32, i32
  }
}

</mosaic_0001>

<llo_original>
// kernel: custom-call.60
$region0: #{custom-call.60}
  %s0 = inlined_call_operand.vmem [shape: f32[2,4,4,4], index: 0, kind: input, shape index: {}]
  %s1 = inlined_call_operand.vmem [shape: f32[2,4,4,4], index: 1, kind: output, shape index: {0}]
  %s2 = inlined_call_operand.hbm [shape: s32[2,4,4], index: 2, kind: output, shape index: {1}]
  %s3 = inlined_call_operand.vmem [shape: s32[2,4,4], index: 3, kind: output, shape index: {2}]
  %4 = xla_tuple %s1, %s2, %s3
  $region1: #{custom-call.60} parent=0
    #allocation0 [shape = 'u8[4096]{0}', space=vmem, size = 0x1000, scoped, tag = 'operand span for operand 0']
    #allocation1 [shape = 'u8[4096]{0}', space=vmem, size = 0x1000, scoped, tag = 'packed  for operand 0']
    #allocation2 [shape = 'u8[4096]{0}', space=vmem, size = 0x1000, scoped, tag = 'operand span for operand 1']
    #allocation3 [shape = 'u8[4096]{0}', space=vmem, size = 0x1000, scoped, tag = 'packed  for operand 1']
    #allocation4 [shape = 'u8[4096]{0}', space=vmem, size = 0x1000, scoped, tag = 'operand span for operand 2']
    #allocation5 [shape = 'u8[4096]{0}', space=vmem, size = 0x1000, scoped, tag = 'packed  for operand 2']
    #allocation6 [shape = 's32[2]{0}', space=sflag, size = 0x8, scoped, tag = 'scoped memory for custom-call.60']
    #allocation7 [shape = 'u8[4096]{0}', space=vmem, size = 0x1000, scoped, tag = 'operand span for operand 3']
    #allocation8 [shape = 'u8[4096]{0}', space=vmem, size = 0x1000, scoped, tag = 'packed  for operand 3']
    %5 = vsyncpa [#allocation6], 0
    %s6 = scalar_lea.sflag [#allocation6], 1
    %7 = vsyncpa %s6, 0
    loop: start=0, step=1, limit=10
    $region2: #{custom-call.60} parent=1 // loop_pre_header
      _
    $region3: #{custom-call.60} parent=1 // loop_header
      %s9 = sphi 0, %s13
      %p10 = scmp.ge.s32.totalorder %s9, 10
      %s16 = sphi 0, %s28
      %s17 = sphi 0, %s24
      %s18 = sphi 0, %s16
      %s19 = sphi 0, %s17
      %s20 = sphi 0, %s18
      %s21 = sphi 0, %s19
      %s35 = sphi 0, %s37
      %s38 = sphi 0, %s35
      %s39 = sphi 0, %s38
      %s55 = sphi 0, %s39
      %s65 = sphi 0, %s67
      %s68 = sphi 0, %s65
      %s69 = sphi 0, %s68
      %s85 = sphi 0, %s69
    $region4: #{custom-call.60} parent=1 // loop_header_branch
      %12 = sbr.rel (%p10) target = $region8
    $region5: #{custom-call.60} parent=1 // loop_body
      %s14 = ssub.s32 %s9, 1
      %s15 = ssub.s32 %s9, 2
      %s22 = sadd.s32 1, %s17
      %p23 = scmp.ge.s32.totalorder %s22, 4
      %s24 = scalar_select %p23, 0, %s22
      %s25 = sadd.s32 1, %s16
      %s26 = scalar_select %p23, %s25, %s16
      %p27 = scmp.ge.s32.totalorder %s26, 2
      %s28 = scalar_select %p27, 0, %s26
      %s29 = sshrl.u32 %s17, 3
      %s30 = sshrl.u32 %s24, 3
      %s31 = ssub.s32 %s16, %s28
      %s32 = ssub.s32 %s29, %s30
      %s33 = sor.u32 %s31, %s32
      %p34 = scmp.eq.s32.totalorder %s33, 0
      %s36 = sadd.s32 %s35, 1
      %s37 = scalar_select %p34, %s35, %s36
      %p40 = pneg %p34
      %p41 = scmp.eq.s32.totalorder %s9, 7
      %p42 = por %p40, %p41
      %p43 = scmp.ne.s32.totalorder %s35, %s38
      %p44 = scmp.eq.s32.totalorder %s9, 0
      %p45 = por %p43, %p44
      %p46 = scmp.ne.s32.totalorder %s35, %s38
      %p47 = scmp.eq.s32.totalorder %s14, 7
      %p48 = por %p46, %p47
      %p49 = scmp.ne.s32.totalorder %s38, %s39
      %p50 = scmp.eq.s32.totalorder %s14, 0
      %p51 = por %p49, %p50
      %p52 = scmp.ne.s32.totalorder %s38, %s39
      %p53 = scmp.eq.s32.totalorder %s15, 7
      %p54 = por %p52, %p53
      %p56 = scmp.ne.s32.totalorder %s39, %s55
      %p57 = scmp.eq.s32.totalorder %s15, 0
      %p58 = por %p56, %p57
      %s59 = sshrl.u32 %s17, 3
      %s60 = sshrl.u32 %s24, 3
      %s61 = ssub.s32 %s16, %s28
      %s62 = ssub.s32 %s59, %s60
      %s63 = sor.u32 %s61, %s62
      %p64 = scmp.eq.s32.totalorder %s63, 0
      %s66 = sadd.s32 %s65, 1
      %s67 = scalar_select %p64, %s65, %s66
      %p70 = pneg %p64
      %p71 = scmp.eq.s32.totalorder %s9, 7
      %p72 = por %p70, %p71
      %p73 = scmp.ne.s32.totalorder %s65, %s68
      %p74 = scmp.eq.s32.totalorder %s9, 0
      %p75 = por %p73, %p74
      %p76 = scmp.ne.s32.totalorder %s65, %s68
      %p77 = scmp.eq.s32.totalorder %s14, 7
      %p78 = por %p76, %p77
      %p79 = scmp.ne.s32.totalorder %s68, %s69
      %p80 = scmp.eq.s32.totalorder %s14, 0
      %p81 = por %p79, %p80
      %p82 = scmp.ne.s32.totalorder %s68, %s69
      %p83 = scmp.eq.s32.totalorder %s15, 7
      %p84 = por %p82, %p83
      %p86 = scmp.ne.s32.totalorder %s69, %s85
      %p87 = scmp.eq.s32.totalorder %s15, 0
      %p88 = por %p86, %p87
      %p89 = scmp.le.s32.totalorder 1, %s9
      %p90 = scmp.lt.s32.totalorder %s9, 9
      %p91 = pnand %p89, %p90
      %p92 = pneg %p91
      // Predicated region
      $region9: #{custom-call.60} parent=5 // pred_check
        _
      $region10: #{custom-call.60} parent=5 // pred_check_branch
        %94 = sbr.rel (%p91) target = $region12
      $region11: #{custom-call.60} parent=5 // pred_region
        %s95 = ssub.s32 %s9, 1
      $region12: #{custom-call.60} parent=5 // pred_fallthru
        _
      %p96 = scmp.lt.s32.totalorder %s9, 8
      // Predicated region
      $region13: #{custom-call.60} parent=5 // pred_check
        %p97 = pneg %p96
      $region14: #{custom-call.60} parent=5 // pred_check_branch
        %99 = sbr.rel (%p97) target = $region16
      $region15: #{custom-call.60} parent=5 // pred_region
        %s100 = sand.u32 %s9, 1
        %s101 = sand.u32 %s9, 1
        %s102 = smul.addr %s101, 4
        %s103 = scalar_lea.vmem [#allocation1], %s102
        %s104 = smul.addr %s16, 4
        %s105 = sadd.s32 %s17, %s104
        %s106 = smul.addr %s105, 4
        %s107 = scalar_lea.vmem %s0, %s106
        // Predicated region
        $region17: #{custom-call.60} parent=15 // pred_check
          _
        $region18: #{custom-call.60} parent=15 // pred_check_branch
          %109 = sbr.rel (0) target = $region20
        $region19: #{custom-call.60} parent=15 // pred_region
          // Predicated region
          $region21: #{custom-call.60} parent=19 // pred_check
            _
          $region22: #{custom-call.60} parent=19 // pred_check_branch
            %111 = sbr.rel target = $region24
          $region23: #{custom-call.60} parent=19 // pred_region
            // Predicated region
            $region36: #{custom-call.60} parent=23 // pred_check
              _
            $region37: #{custom-call.60} parent=23 // pred_check_branch
              %127 = sbr.rel (0) target = $region39
            $region38: #{custom-call.60} parent=23 // pred_region
              %s129 = ssub.s32 16, 1
              loop: start=0, step=1, limit=1
              $region40: #{custom-call.60} parent=38 // loop_pre_header
                _
              $region41: #{custom-call.60} parent=38 // loop_header
                %s131 = sphi 0, %s135
                %p132 = scmp.ge.s32.totalorder %s131, 1
                %s136 = sphi %s107, %s107
                %s137 = sphi %s103, %s103
              $region42: #{custom-call.60} parent=38 // loop_header_branch
                %134 = sbr.rel (%p132) target = $region46
              $region43: #{custom-call.60} parent=38 // loop_body
                %v138 = vld [vmem:[%s136] sm:%s129]
                %139 = vst [vmem:[%s137] sm:%s129] %v138
              $region44: #{custom-call.60} parent=38 // loop_footer
                %s135 = sadd.s32 1, %s131
              $region45: #{custom-call.60} parent=38 // loop_footer_branch
                %130 = sbr.rel target = $region41
              $region46: #{custom-call.60} parent=38 // loop_exit
                _
            $region39: #{custom-call.60} parent=23 // pred_fallthru
              _
          $region24: #{custom-call.60} parent=19 // pred_fallthru
            _
          // Predicated region
          $region25: #{custom-call.60} parent=19 // pred_check
            _
          $region26: #{custom-call.60} parent=19 // pred_check_branch
            %113 = sbr.rel (0) target = $region28
          $region27: #{custom-call.60} parent=19 // pred_region
            %s115 = ssub.s32 16, 1
            loop: start=0, step=1, limit=1
            $region29: #{custom-call.60} parent=27 // loop_pre_header
              _
            $region30: #{custom-call.60} parent=27 // loop_header
              %s117 = sphi 0, %s121
              %p118 = scmp.ge.s32.totalorder %s117, 1
              %s122 = sphi %s107, %s107
              %s123 = sphi %s103, %s103
            $region31: #{custom-call.60} parent=27 // loop_header_branch
              %120 = sbr.rel (%p118) target = $region35
            $region32: #{custom-call.60} parent=27 // loop_body
              %v124 = vld [vmem:[%s122] sm:%s115]
              %125 = vst [vmem:[%s123] sm:%s115] %v124
            $region33: #{custom-call.60} parent=27 // loop_footer
              %s121 = sadd.s32 1, %s117
            $region34: #{custom-call.60} parent=27 // loop_footer_branch
              %116 = sbr.rel target = $region30
            $region35: #{custom-call.60} parent=27 // loop_exit
              _
          $region28: #{custom-call.60} parent=19 // pred_fallthru
            _
        $region20: #{custom-call.60} parent=15 // pred_fallthru
          _
        %140 = vnop
      $region16: #{custom-call.60} parent=5 // pred_fallthru
        _
      %p141 = scmp.le.s32.totalorder 1, %s9
      %p142 = scmp.lt.s32.totalorder %s9, 9
      %p143 = pnand %p141, %p142
      %p144 = pneg %p143
      // Predicated region
      $region47: #{custom-call.60} parent=5 // pred_check
        _
      $region48: #{custom-call.60} parent=5 // pred_check_branch
        %146 = sbr.rel (%p143) target = $region50
      $region49: #{custom-call.60} parent=5 // pred_region
        #allocation9 [shape = 's32[4,128]{1,0}', space=vmem, size = 0x1000, scoped, tag = 'scratch for permutations']
        %s147 = ssub.s32 %s9, 1
        %s148 = sand.u32 %s14, 1
        %s149 = sand.u32 %s14, 1
        %s150 = smul.addr %s149, 4
        %s151 = scalar_lea.vmem [#allocation1], %s150
        %s152 = sand.u32 %s14, 1
        %s153 = sand.u32 %s14, 1
        %s154 = smul.addr %s153, 4
        %s155 = scalar_lea.vmem [#allocation1], %s154
        %s156 = sand.u32 %s14, 1
        %s157 = sand.u32 %s14, 1
        %s158 = smul.addr %s157, 4
        %s159 = scalar_lea.vmem [#allocation3], %s158
        %p160 = pneg %p51
        %p161 = pneg %p48
        %s162 = sand.u32 %s38, 1
        %s163 = scalar_lea.sflag [#allocation6], %s162
        %s164 = sand.u32 %s38, 1
        %s165 = smul.addr %s164, 4
        %s166 = scalar_lea.vmem [#allocation5], %s165
        %p167 = pneg %p81
        %p168 = pneg %p78
        %s169 = sand.u32 %s68, 1
        %s170 = sand.u32 %s68, 1
        %s171 = smul.addr %s170, 4
        %s172 = scalar_lea.vmem [#allocation8], %s171
        %s174 = sshll.u32 1, 4
        %s175 = ssub.s32 %s174, 1
        %v176 = vld [vmem:[%s155] sm:%s175]
        %177 = vst [vmem:[#allocation0] sm:%s175] %v176
        %s178 = sshrl.u32 %s19, 3
        %s179 = sshrl.u32 %s19, 3
        %v180 = vld [vmem:[#allocation0] sm:$0xff]
        %181 = vst [vmem:[#allocation2] sm:$0xff] %v180
        %s182 = sand.u32 %s19, 7
        %s183 = scalar_lea.vmem [#allocation4], %s182
        %s184 = sand.u32 %s19, 7
        %s185 = scalar_lea.vmem [#allocation7], %s184
        %186 = vst [vmem:[%s183] sm:$0x1] 0
        %v187 = vlaneseq
        %v188 = vshrl.u32 %v187, 7
        %v189 = vmov %v188
        %191 = vst [vmem:[#allocation9] sm:$0xff] %v189
        loop: start=0, step=1, limit=4
        $region52: #{custom-call.60} parent=49 // loop_pre_header
          _
        $region53: #{custom-call.60} parent=49 // loop_header
          %s193 = sphi 0, %s197
          %p194 = scmp.ge.s32.totalorder %s193, 4
        $region54: #{custom-call.60} parent=49 // loop_header_branch
          %196 = sbr.rel (%p194) target = $region58
        $region55: #{custom-call.60} parent=49 // loop_body
          %v198 = vstv %s193
          %v199 = vlaneseq
          %v200 = vshrl.u32 %v199, 7
          %v201 = vmov %v200
          %v202 = vld [vmem:[#allocation2] sm:$0xff]
          %v203 = vand.u32 2147483647, %v202
          %v205 = vstv %s193
          %vm206 = vcmp.ge.s32.totalorder %v201, %v205
          %vm207 = vcmp.lt.s32.totalorder %v201, 4
          %vm208 = vmand %vm206, %vm207
          %vm209 = vcmp.lt.f32.partialorder -inf, %v203
          %vm210 = vmand %vm208, %vm209
          %v211 = vsel %vm210, %v201, %v198
          %v212 = vsel %vm210, %v203, -inf
          %v213 = vrot.slane %v212, 1
          %v214 = vrot.slane %v211, 1
          %vm215 = vcmp.ge.f32.partialorder %v213, %v212
          %v216 = vsel %vm215, %v213, %v212
          %v217 = vsel %vm215, %v214, %v211
          %v218 = vrot.slane %v213, 1
          %v219 = vrot.slane %v214, 1
          %vm220 = vcmp.ge.f32.partialorder %v218, %v216
          %v221 = vsel %vm220, %v218, %v216
          %v222 = vsel %vm220, %v219, %v217
          %v223 = vrot.slane %v218, 1
          %v224 = vrot.slane %v219, 1
          %vm225 = vcmp.ge.f32.partialorder %v223, %v221
          %v226 = vsel %vm225, %v223, %v221
          %v227 = vsel %vm225, %v224, %v222
          %v228 = vrot.slane %v223, 1
          %v229 = vrot.slane %v224, 1
          %vm230 = vcmp.ge.f32.partialorder %v228, %v226
          %v231 = vsel %vm230, %v228, %v226
          %v232 = vsel %vm230, %v229, %v227
          %v233 = vrot.slane %v228, 1
          %v234 = vrot.slane %v229, 1
          %vm235 = vcmp.ge.f32.partialorder %v233, %v231
          %v236 = vsel %vm235, %v233, %v231
          %v237 = vsel %vm235, %v234, %v232
          %v238 = vrot.slane %v233, 1
          %v239 = vrot.slane %v234, 1
          %vm240 = vcmp.ge.f32.partialorder %v238, %v236
          %v241 = vsel %vm240, %v238, %v236
          %v242 = vsel %vm240, %v239, %v237
          %v243 = vrot.slane %v238, 1
          %v244 = vrot.slane %v239, 1
          %vm245 = vcmp.ge.f32.partialorder %v243, %v241
          %v246 = vsel %vm245, %v243, %v241
          %v247 = vsel %vm245, %v244, %v242
          %s248 = ssub.s32 128, %s193
          %249 = vrot.lane.b32.xlu0 %v247, %s248
          %v250 = vpop.permute.xlu0 %249
          %s251 = vtos %v250
          %v252 = vstv %s193
          %v253 = vlaneseq
          %v254 = vand.u32 %v253, 127
          %vm255 = vcmp.eq.s32.totalorder %v254, %v252
          %v256 = vstv %s251
          %v257 = vld [vmem:[%s183] ss:$0 sm:$0xff]
          %v258 = vsel %vm255, %v256, %v257
          %259 = vst [vmem:[%s183] sm:$0x1] %v258
          %s260 = scalar_lea.vmem [#allocation2], %s193
          %s261 = scalar_lea.vmem [#allocation2], %s251
          %v262 = vld [vmem:[%s260] ss:$0 sm:$0xff]
          %v263 = vld [vmem:[%s261] ss:$0 sm:$0xff]
          %264 = vst [vmem:[%s261] sm:$0x1] %v262
          %265 = vst [vmem:[%s260] sm:$0x1] %v263
          %s266 = scalar_lea.vmem [#allocation9], %s193
          %s267 = scalar_lea.vmem [#allocation9], %s251
          %v268 = vld [vmem:[%s266] ss:$0 sm:$0xff]
          %v269 = vld [vmem:[%s267] ss:$0 sm:$0xff]
          %270 = vst [vmem:[%s267] sm:$0x1] %v268
          %271 = vst [vmem:[%s266] sm:$0x1] %v269
          %vm272 = vcmp.ne.f32.partialorder %v263, 0.0
          %vm273 = vmand %vm255, %vm272
          %v274 = vsel %vm273, %v263, 1.0
          %v275 = vlaneseq
          %v276 = vand.u32 %v275, 127
          %v277 = vstv %s193
          %vm278 = vcmp.gt.s32.totalorder %v276, %v277
          %v279 = vsel %vm278, %v263, 0.0
          %v280 = vlaneseq
          %v281 = vshrl.u32 %v280, 7
          %v282 = vmov %v281
          %v283 = vld [vmem:[#allocation2] sm:$0xff]
          %v285 = vstv %s193
          %vm286 = vcmp.gt.s32.totalorder %v282, %v285
          %v287 = vsel %vm286, %v274, 1.0
          %v288 = vrcp.pop %v287
          %v289 = vmul.f32 %v283, %v288
          %vm290 = vmand %vm286, %vm255
          %v291 = vsel %vm290, %v289, 0.0
          %292 = vadd.xlane.f32.xlu0 %v291
          %v293 = vpop.xlane.xlu0 %292
          %v294 = vmul.f32 %v293, %v279
          %v295 = vsub.f32 %v289, %v294
          %296 = vst [vmem:[#allocation2] sm:$0xff] %v295
        $region56: #{custom-call.60} parent=49 // loop_footer
          %s197 = sadd.s32 1, %s193
        $region57: #{custom-call.60} parent=49 // loop_footer_branch
          %192 = sbr.rel target = $region53
        $region58: #{custom-call.60} parent=49 // loop_exit
          _
        %v297 = vld [vmem:[#allocation9] sm:$0xff]
        %s298 = scalar_lea.vmem [#allocation9], 8
        %s299 = scalar_lea.vmem [#allocation9], 16
        %s300 = scalar_lea.vmem [#allocation9], 24
        %s301 = scalar_lea.vmem [#allocation9], 32
        %s302 = scalar_lea.vmem [#allocation9], 40
        %s303 = scalar_lea.vmem [#allocation9], 48
        %s304 = scalar_lea.vmem [#allocation9], 56
        %s305 = scalar_lea.vmem [#allocation9], 64
        %s306 = scalar_lea.vmem [#allocation9], 72
        %s307 = scalar_lea.vmem [#allocation9], 80
        %s308 = scalar_lea.vmem [#allocation9], 88
        %s309 = scalar_lea.vmem [#allocation9], 96
        %s310 = scalar_lea.vmem [#allocation9], 104
        %s311 = scalar_lea.vmem [#allocation9], 112
        %s312 = scalar_lea.vmem [#allocation9], 120
        %313 = vxpose.xlu0.b32.start [1/16] %v297, 128
        %314 = vxpose.xlu0.b32.cont [2/16] 0, 128
        %315 = vxpose.xlu0.b32.cont [3/16] 0, 128
        %316 = vxpose.xlu0.b32.cont [4/16] 0, 128
        %317 = vxpose.xlu0.b32.cont [5/16] 0, 128
        %318 = vxpose.xlu0.b32.cont [6/16] 0, 128
        %319 = vxpose.xlu0.b32.cont [7/16] 0, 128
        %320 = vxpose.xlu0.b32.cont [8/16] 0, 128
        %321 = vxpose.xlu0.b32.cont [9/16] 0, 128
        %322 = vxpose.xlu0.b32.cont [10/16] 0, 128
        %323 = vxpose.xlu0.b32.cont [11/16] 0, 128
        %324 = vxpose.xlu0.b32.cont [12/16] 0, 128
        %325 = vxpose.xlu0.b32.cont [13/16] 0, 128
        %326 = vxpose.xlu0.b32.cont [14/16] 0, 128
        %327 = vxpose.xlu0.b32.cont [15/16] 0, 128
        %328 = vxpose.xlu0.b32.end [16/16] 0, 128
        %v329 = vpop.trf.xlu0
        %v330 = vpop.trf.xlu0
        %v331 = vpop.trf.xlu0
        %v332 = vpop.trf.xlu0
        %v333 = vpop.trf.xlu0
        %v334 = vpop.trf.xlu0
        %v335 = vpop.trf.xlu0
        %v336 = vpop.trf.xlu0
        %v337 = vpop.trf.xlu0
        %v338 = vpop.trf.xlu0
        %v339 = vpop.trf.xlu0
        %v340 = vpop.trf.xlu0
        %v341 = vpop.trf.xlu0
        %v342 = vpop.trf.xlu0
        %v343 = vpop.trf.xlu0
        %v344 = vpop.trf.xlu0
        %345 = vst [vmem:[%s185] sm:$0x1] %v329
        %s347 = sshll.u32 1, 4
        %s348 = ssub.s32 %s347, 1
        %v350 = vld [vmem:[#allocation2] sm:%s348]
        %s351 = sshll.u32 1, 4
        %s352 = ssub.s32 %s351, 1
        %353 = vst [vmem:[%s159] sm:%s352] %v350
        %s355 = sshll.u32 1, 4
        %s356 = ssub.s32 %s355, 1
        %v358 = vld [vmem:[#allocation4] sm:%s356]
        %s359 = sshll.u32 1, 4
        %s360 = ssub.s32 %s359, 1
        %361 = vst [vmem:[%s166] sm:%s360] %v358
        %s363 = sshll.u32 1, 4
        %s364 = ssub.s32 %s363, 1
        %v366 = vld [vmem:[#allocation7] sm:%s364]
        %s367 = sshll.u32 1, 4
        %s368 = ssub.s32 %s367, 1
        %369 = vst [vmem:[%s172] sm:%s368] %v366
        %s370 = sand.u32 %s14, 1
        %s371 = sand.u32 %s14, 1
        %s372 = smul.addr %s371, 4
        %s373 = scalar_lea.vmem [#allocation3], %s372
        %s374 = sand.u32 %s38, 1
        %s375 = scalar_lea.sflag [#allocation6], %s374
        %s376 = sand.u32 %s38, 1
        %s377 = smul.addr %s376, 4
        %s378 = scalar_lea.vmem [#allocation5], %s377
        %s379 = sand.u32 %s68, 1
        %s380 = sand.u32 %s68, 1
        %s381 = smul.addr %s380, 4
        %s382 = scalar_lea.vmem [#allocation8], %s381
        %s383 = smul.addr %s18, 4
        %s384 = sadd.s32 %s19, %s383
        %s385 = smul.addr %s384, 4
        %s386 = scalar_lea.vmem %s1, %s385
        // Predicated region
        $region59: #{custom-call.60} parent=49 // pred_check
          _
        $region60: #{custom-call.60} parent=49 // pred_check_branch
          %388 = sbr.rel (0) target = $region62
        $region61: #{custom-call.60} parent=49 // pred_region
          // Predicated region
          $region63: #{custom-call.60} parent=61 // pred_check
            _
          $region64: #{custom-call.60} parent=61 // pred_check_branch
            %390 = sbr.rel target = $region66
          $region65: #{custom-call.60} parent=61 // pred_region
            // Predicated region
            $region78: #{custom-call.60} parent=65 // pred_check
              _
            $region79: #{custom-call.60} parent=65 // pred_check_branch
              %406 = sbr.rel (0) target = $region81
            $region80: #{custom-call.60} parent=65 // pred_region
              %s408 = ssub.s32 16, 1
              loop: start=0, step=1, limit=1
              $region82: #{custom-call.60} parent=80 // loop_pre_header
                _
              $region83: #{custom-call.60} parent=80 // loop_header
                %s410 = sphi 0, %s414
                %p411 = scmp.ge.s32.totalorder %s410, 1
                %s415 = sphi %s373, %s373
                %s416 = sphi %s386, %s386
              $region84: #{custom-call.60} parent=80 // loop_header_branch
                %413 = sbr.rel (%p411) target = $region88
              $region85: #{custom-call.60} parent=80 // loop_body
                %v417 = vld [vmem:[%s415] sm:%s408]
                %418 = vst [vmem:[%s416] sm:%s408] %v417
              $region86: #{custom-call.60} parent=80 // loop_footer
                %s414 = sadd.s32 1, %s410
              $region87: #{custom-call.60} parent=80 // loop_footer_branch
                %409 = sbr.rel target = $region83
              $region88: #{custom-call.60} parent=80 // loop_exit
                _
            $region81: #{custom-call.60} parent=65 // pred_fallthru
              _
          $region66: #{custom-call.60} parent=61 // pred_fallthru
            _
          // Predicated region
          $region67: #{custom-call.60} parent=61 // pred_check
            _
          $region68: #{custom-call.60} parent=61 // pred_check_branch
            %392 = sbr.rel (0) target = $region70
          $region69: #{custom-call.60} parent=61 // pred_region
            %s394 = ssub.s32 16, 1
            loop: start=0, step=1, limit=1
            $region71: #{custom-call.60} parent=69 // loop_pre_header
              _
            $region72: #{custom-call.60} parent=69 // loop_header
              %s396 = sphi 0, %s400
              %p397 = scmp.ge.s32.totalorder %s396, 1
              %s401 = sphi %s373, %s373
              %s402 = sphi %s386, %s386
            $region73: #{custom-call.60} parent=69 // loop_header_branch
              %399 = sbr.rel (%p397) target = $region77
            $region74: #{custom-call.60} parent=69 // loop_body
              %v403 = vld [vmem:[%s401] sm:%s394]
              %404 = vst [vmem:[%s402] sm:%s394] %v403
            $region75: #{custom-call.60} parent=69 // loop_footer
              %s400 = sadd.s32 1, %s396
            $region76: #{custom-call.60} parent=69 // loop_footer_branch
              %395 = sbr.rel target = $region72
            $region77: #{custom-call.60} parent=69 // loop_exit
              _
          $region70: #{custom-call.60} parent=61 // pred_fallthru
            _
        $region62: #{custom-call.60} parent=49 // pred_fallthru
          _
        %419 = vnop
        // Predicated region
        $region89: #{custom-call.60} parent=49 // pred_check
          %p420 = pneg %p48
        $region90: #{custom-call.60} parent=49 // pred_check_branch
          %422 = sbr.rel (%p420) target = $region92
        $region91: #{custom-call.60} parent=49 // pred_region
          %s423 = sshrl.u32 %s19, 3
          %s425 = ssub.s32 64, 64
          %426 = vsyncadd %s375, %s425
          %s427 = sadd.s32 %s423, %s18
          %s428 = smul.addr %s427, 64
          %s429 = scalar_lea.hbm %s2, %s428
          %s431 = sshll.u32 %s378, 4
          %s432 = int_to_ptr.vmem [resolvable:$true] %s431
          %434 = dma.vmem_to_hbm [thread:$0]  %s432, 64, %s429, %s375
        $region92: #{custom-call.60} parent=49 // pred_fallthru
          _
        // Predicated region
        $region93: #{custom-call.60} parent=49 // pred_check
          %p435 = pneg %p78
        $region94: #{custom-call.60} parent=49 // pred_check_branch
          %437 = sbr.rel (%p435) target = $region96
        $region95: #{custom-call.60} parent=49 // pred_region
          %s438 = sshrl.u32 %s19, 3
          %s439 = sadd.s32 %s438, %s18
          %s440 = smul.addr %s439, 4
          %s441 = scalar_lea.vmem %s3, %s440
          // Predicated region
          $region97: #{custom-call.60} parent=95 // pred_check
            _
          $region98: #{custom-call.60} parent=95 // pred_check_branch
            %443 = sbr.rel (0) target = $region100
          $region99: #{custom-call.60} parent=95 // pred_region
            // Predicated region
            $region101: #{custom-call.60} parent=99 // pred_check
              _
            $region102: #{custom-call.60} parent=99 // pred_check_branch
              %445 = sbr.rel target = $region104
            $region103: #{custom-call.60} parent=99 // pred_region
              // Predicated region
              $region116: #{custom-call.60} parent=103 // pred_check
                _
              $region117: #{custom-call.60} parent=103 // pred_check_branch
                %461 = sbr.rel (0) target = $region119
              $region118: #{custom-call.60} parent=103 // pred_region
                %s463 = ssub.s32 16, 1
                loop: start=0, step=1, limit=1
                $region120: #{custom-call.60} parent=118 // loop_pre_header
                  _
                $region121: #{custom-call.60} parent=118 // loop_header
                  %s465 = sphi 0, %s469
                  %p466 = scmp.ge.s32.totalorder %s465, 1
                  %s470 = sphi %s382, %s382
                  %s471 = sphi %s441, %s441
                $region122: #{custom-call.60} parent=118 // loop_header_branch
                  %468 = sbr.rel (%p466) target = $region126
                $region123: #{custom-call.60} parent=118 // loop_body
                  %v472 = vld [vmem:[%s470] sm:%s463]
                  %473 = vst [vmem:[%s471] sm:%s463] %v472
                $region124: #{custom-call.60} parent=118 // loop_footer
                  %s469 = sadd.s32 1, %s465
                $region125: #{custom-call.60} parent=118 // loop_footer_branch
                  %464 = sbr.rel target = $region121
                $region126: #{custom-call.60} parent=118 // loop_exit
                  _
              $region119: #{custom-call.60} parent=103 // pred_fallthru
                _
            $region104: #{custom-call.60} parent=99 // pred_fallthru
              _
            // Predicated region
            $region105: #{custom-call.60} parent=99 // pred_check
              _
            $region106: #{custom-call.60} parent=99 // pred_check_branch
              %447 = sbr.rel (0) target = $region108
            $region107: #{custom-call.60} parent=99 // pred_region
              %s449 = ssub.s32 16, 1
              loop: start=0, step=1, limit=1
              $region109: #{custom-call.60} parent=107 // loop_pre_header
                _
              $region110: #{custom-call.60} parent=107 // loop_header
                %s451 = sphi 0, %s455
                %p452 = scmp.ge.s32.totalorder %s451, 1
                %s456 = sphi %s382, %s382
                %s457 = sphi %s441, %s441
              $region111: #{custom-call.60} parent=107 // loop_header_branch
                %454 = sbr.rel (%p452) target = $region115
              $region112: #{custom-call.60} parent=107 // loop_body
                %v458 = vld [vmem:[%s456] sm:%s449]
                %459 = vst [vmem:[%s457] sm:%s449] %v458
              $region113: #{custom-call.60} parent=107 // loop_footer
                %s455 = sadd.s32 1, %s451
              $region114: #{custom-call.60} parent=107 // loop_footer_branch
                %450 = sbr.rel target = $region110
              $region115: #{custom-call.60} parent=107 // loop_exit
                _
            $region108: #{custom-call.60} parent=99 // pred_fallthru
              _
          $region100: #{custom-call.60} parent=95 // pred_fallthru
            _
          %474 = vnop
        $region96: #{custom-call.60} parent=49 // pred_fallthru
          _
      $region50: #{custom-call.60} parent=5 // pred_fallthru
        _
      %p475 = scmp.le.s32.totalorder 2, %s9
      // Predicated region
      $region127: #{custom-call.60} parent=5 // pred_check
        %p476 = pneg %p475
      $region128: #{custom-call.60} parent=5 // pred_check_branch
        %478 = sbr.rel (%p476) target = $region130
      $region129: #{custom-call.60} parent=5 // pred_region
        %s479 = ssub.s32 %s9, 2
        %s480 = sand.u32 %s15, 1
        %s481 = sand.u32 %s15, 1
        %s482 = smul.addr %s481, 4
        %s483 = scalar_lea.vmem [#allocation3], %s482
        // Predicated region
        $region131: #{custom-call.60} parent=129 // pred_check
          %p484 = pneg %p54
        $region132: #{custom-call.60} parent=129 // pred_check_branch
          %486 = sbr.rel (%p484) target = $region134
        $region133: #{custom-call.60} parent=129 // pred_region
          %s487 = sand.u32 %s39, 1
          %s488 = scalar_lea.sflag [#allocation6], %s487
          %s489 = sand.u32 %s39, 1
          %s490 = smul.addr %s489, 4
          %s491 = scalar_lea.vmem [#allocation5], %s490
          %492 = dma.done %s488, 64
        $region134: #{custom-call.60} parent=129 // pred_fallthru
          _
        // Predicated region
        $region135: #{custom-call.60} parent=129 // pred_check
          %p493 = pneg %p84
        $region136: #{custom-call.60} parent=129 // pred_check_branch
          %495 = sbr.rel (%p493) target = $region138
        $region137: #{custom-call.60} parent=129 // pred_region
          %s496 = sand.u32 %s69, 1
          %s497 = sand.u32 %s69, 1
          %s498 = smul.addr %s497, 4
          %s499 = scalar_lea.vmem [#allocation8], %s498
        $region138: #{custom-call.60} parent=129 // pred_fallthru
          _
      $region130: #{custom-call.60} parent=5 // pred_fallthru
        _
    $region6: #{custom-call.60} parent=1 // loop_footer
      %s13 = sadd.s32 1, %s9
    $region7: #{custom-call.60} parent=1 // loop_footer_branch
      %8 = sbr.rel target = $region3
    $region8: #{custom-call.60} parent=1 // loop_exit
      _
    %500 = vsyncpa [#allocation6], 1
    %s501 = scalar_lea.sflag [#allocation6], 1
    %502 = vsyncpa %s501, 1

// kernel: custom-call.62
$region0: #{custom-call.62}
  %s0 = inlined_call_operand.vmem [shape: f32[2,4,1,4,4], index: 0, kind: input, shape index: {}]
  %s1 = inlined_call_operand.vmem [shape: f32[2,4,1,4,4], index: 1, kind: output, shape index: {}]
  $region1: #{custom-call.62} parent=0
    #allocation0 [shape = 'u8[4096]{0}', space=vmem, size = 0x1000, scoped, tag = 'operand span for operand 0']
    #allocation1 [shape = 'u8[4096]{0}', space=vmem, size = 0x1000, scoped, tag = 'packed  for operand 0']
    #allocation2 [shape = 'u8[4096]{0}', space=vmem, size = 0x1000, scoped, tag = 'operand span for operand 1']
    #allocation3 [shape = 'u8[4096]{0}', space=vmem, size = 0x1000, scoped, tag = 'packed  for operand 1']
    loop: start=0, step=1, limit=10
    $region2: #{custom-call.62} parent=1 // loop_pre_header
      _
    $region3: #{custom-call.62} parent=1 // loop_header
      %s3 = sphi 0, %s7
      %p4 = scmp.ge.s32.totalorder %s3, 10
      %s10 = sphi 0, %s43
      %s11 = sphi 0, %s39
      %s12 = sphi 0, %s35
      %s13 = sphi 0, %s31
      %s14 = sphi 0, %s27
      %s15 = sphi 0, %s10
      %s16 = sphi 0, %s11
      %s17 = sphi 0, %s12
      %s18 = sphi 0, %s13
      %s19 = sphi 0, %s14
      %s20 = sphi 0, %s15
      %s21 = sphi 0, %s16
      %s22 = sphi 0, %s17
      %s23 = sphi 0, %s18
      %s24 = sphi 0, %s19
    $region4: #{custom-call.62} parent=1 // loop_header_branch
      %6 = sbr.rel (%p4) target = $region8
    $region5: #{custom-call.62} parent=1 // loop_body
      %s8 = ssub.s32 %s3, 1
      %s9 = ssub.s32 %s3, 2
      %s25 = sadd.s32 1, %s14
      %p26 = scmp.ge.s32.totalorder %s25, 1
      %s27 = scalar_select %p26, 0, %s25
      %s28 = sadd.s32 1, %s13
      %s29 = scalar_select %p26, %s28, %s13
      %p30 = scmp.ge.s32.totalorder %s29, 1
      %s31 = scalar_select %p30, 0, %s29
      %s32 = sadd.s32 1, %s12
      %s33 = scalar_select %p30, %s32, %s12
      %p34 = scmp.ge.s32.totalorder %s33, 1
      %s35 = scalar_select %p34, 0, %s33
      %s36 = sadd.s32 1, %s11
      %s37 = scalar_select %p34, %s36, %s11
      %p38 = scmp.ge.s32.totalorder %s37, 4
      %s39 = scalar_select %p38, 0, %s37
      %s40 = sadd.s32 1, %s10
      %s41 = scalar_select %p38, %s40, %s10
      %p42 = scmp.ge.s32.totalorder %s41, 2
      %s43 = scalar_select %p42, 0, %s41
      %p44 = scmp.le.s32.totalorder 1, %s3
      %p45 = scmp.lt.s32.totalorder %s3, 9
      %p46 = pnand %p44, %p45
      %p47 = pneg %p46
      // Predicated region
      $region9: #{custom-call.62} parent=5 // pred_check
        _
      $region10: #{custom-call.62} parent=5 // pred_check_branch
        %49 = sbr.rel (%p46) target = $region12
      $region11: #{custom-call.62} parent=5 // pred_region
        %s50 = ssub.s32 %s3, 1
      $region12: #{custom-call.62} parent=5 // pred_fallthru
        _
      %p51 = scmp.lt.s32.totalorder %s3, 8
      // Predicated region
      $region13: #{custom-call.62} parent=5 // pred_check
        %p52 = pneg %p51
      $region14: #{custom-call.62} parent=5 // pred_check_branch
        %54 = sbr.rel (%p52) target = $region16
      $region15: #{custom-call.62} parent=5 // pred_region
        %s55 = sand.u32 %s3, 1
        %s56 = sand.u32 %s3, 1
        %s57 = smul.addr %s56, 4
        %s58 = scalar_lea.vmem [#allocation1], %s57
        %s59 = sadd.s32 %s14, %s13
        %s60 = sadd.s32 %s59, %s12
        %s61 = sadd.s32 %s60, %s11
        %s62 = smul.addr %s10, 4
        %s63 = sadd.s32 %s61, %s62
        %s64 = smul.addr %s63, 4
        %s65 = scalar_lea.vmem %s0, %s64
        // Predicated region
        $region17: #{custom-call.62} parent=15 // pred_check
          _
        $region18: #{custom-call.62} parent=15 // pred_check_branch
          %67 = sbr.rel (0) target = $region20
        $region19: #{custom-call.62} parent=15 // pred_region
          // Predicated region
          $region21: #{custom-call.62} parent=19 // pred_check
            _
          $region22: #{custom-call.62} parent=19 // pred_check_branch
            %69 = sbr.rel target = $region24
          $region23: #{custom-call.62} parent=19 // pred_region
            // Predicated region
            $region36: #{custom-call.62} parent=23 // pred_check
              _
            $region37: #{custom-call.62} parent=23 // pred_check_branch
              %85 = sbr.rel (0) target = $region39
            $region38: #{custom-call.62} parent=23 // pred_region
              %s87 = ssub.s32 16, 1
              loop: start=0, step=1, limit=1
              $region40: #{custom-call.62} parent=38 // loop_pre_header
                _
              $region41: #{custom-call.62} parent=38 // loop_header
                %s89 = sphi 0, %s93
                %p90 = scmp.ge.s32.totalorder %s89, 1
                %s94 = sphi %s65, %s65
                %s95 = sphi %s58, %s58
              $region42: #{custom-call.62} parent=38 // loop_header_branch
                %92 = sbr.rel (%p90) target = $region46
              $region43: #{custom-call.62} parent=38 // loop_body
                %v96 = vld [vmem:[%s94] sm:%s87]
                %97 = vst [vmem:[%s95] sm:%s87] %v96
              $region44: #{custom-call.62} parent=38 // loop_footer
                %s93 = sadd.s32 1, %s89
              $region45: #{custom-call.62} parent=38 // loop_footer_branch
                %88 = sbr.rel target = $region41
              $region46: #{custom-call.62} parent=38 // loop_exit
                _
            $region39: #{custom-call.62} parent=23 // pred_fallthru
              _
          $region24: #{custom-call.62} parent=19 // pred_fallthru
            _
          // Predicated region
          $region25: #{custom-call.62} parent=19 // pred_check
            _
          $region26: #{custom-call.62} parent=19 // pred_check_branch
            %71 = sbr.rel (0) target = $region28
          $region27: #{custom-call.62} parent=19 // pred_region
            %s73 = ssub.s32 16, 1
            loop: start=0, step=1, limit=1
            $region29: #{custom-call.62} parent=27 // loop_pre_header
              _
            $region30: #{custom-call.62} parent=27 // loop_header
              %s75 = sphi 0, %s79
              %p76 = scmp.ge.s32.totalorder %s75, 1
              %s80 = sphi %s65, %s65
              %s81 = sphi %s58, %s58
            $region31: #{custom-call.62} parent=27 // loop_header_branch
              %78 = sbr.rel (%p76) target = $region35
            $region32: #{custom-call.62} parent=27 // loop_body
              %v82 = vld [vmem:[%s80] sm:%s73]
              %83 = vst [vmem:[%s81] sm:%s73] %v82
            $region33: #{custom-call.62} parent=27 // loop_footer
              %s79 = sadd.s32 1, %s75
            $region34: #{custom-call.62} parent=27 // loop_footer_branch
              %74 = sbr.rel target = $region30
            $region35: #{custom-call.62} parent=27 // loop_exit
              _
          $region28: #{custom-call.62} parent=19 // pred_fallthru
            _
        $region20: #{custom-call.62} parent=15 // pred_fallthru
          _
        %98 = vnop
      $region16: #{custom-call.62} parent=5 // pred_fallthru
        _
      %p99 = scmp.le.s32.totalorder 1, %s3
      %p100 = scmp.lt.s32.totalorder %s3, 9
      %p101 = pnand %p99, %p100
      %p102 = pneg %p101
      // Predicated region
      $region47: #{custom-call.62} parent=5 // pred_check
        _
      $region48: #{custom-call.62} parent=5 // pred_check_branch
        %104 = sbr.rel (%p101) target = $region50
      $region49: #{custom-call.62} parent=5 // pred_region
        #allocation4 [shape = 'f32[4,4]{1,0}', space=vmem, size = 0x1000, scoped, tag = 'rescaled input a']
        %s105 = ssub.s32 %s3, 1
        %s106 = sand.u32 %s8, 1
        %s107 = sand.u32 %s8, 1
        %s108 = smul.addr %s107, 4
        %s109 = scalar_lea.vmem [#allocation1], %s108
        %s110 = sand.u32 %s8, 1
        %s111 = sand.u32 %s8, 1
        %s112 = smul.addr %s111, 4
        %s113 = scalar_lea.vmem [#allocation1], %s112
        %s114 = sand.u32 %s8, 1
        %s115 = sand.u32 %s8, 1
        %s116 = smul.addr %s115, 4
        %s117 = scalar_lea.vmem [#allocation3], %s116
        %s119 = sshll.u32 1, 4
        %s120 = ssub.s32 %s119, 1
        %v121 = vld [vmem:[%s113] sm:%s120]
        %122 = vst [vmem:[#allocation0] sm:%s120] %v121
        %v123 = vlaneseq
        %v124 = vand.u32 %v123, 127
        %vm125 = vcmp.lt.s32.totalorder %v124, 4
        %v126 = vlaneseq
        %v127 = vshrl.u32 %v126, 7
        %vm129 = vcmp.eq.s32.totalorder %v127, %v124
        %v130 = vld [vmem:[#allocation0] sm:$0xff]
        %v131 = vsel %vm129, %v130, 0.0
        %132 = vadd.xlane.f32.xlu0 %v131
        %v133 = vpop.xlane.xlu0 %132
        %vm134 = vcmp.ge.s32.totalorder %v127, %v124
        %vm135 = vmand %vm134, %vm125
        %v136 = vsel %vm135, %v130, 0.0
        %v137 = vrcp.pop %v133
        %v138 = vmul.f32 %v136, %v137
        %139 = vst [vmem:[#allocation4] sm:$0xff] %v138
        %v140 = vlaneseq
        %v141 = vand.u32 %v140, 127
        %v142 = vlaneseq
        %v143 = vshrl.u32 %v142, 7
        %vm145 = vcmp.eq.s32.totalorder %v141, %v143
        %v146 = vlaneseq
        %v147 = vand.u32 %v146, 127
        %vm148 = vcmp.eq.s32.totalorder %v147, 0
        %v149 = vsel %vm148, 1.0, -1.0
        %v150 = vsel %vm145, %v149, 0.0
        %s151 = scalar_lea.vmem [#allocation4], 1
        %v152 = vld [vmem:[%s151] ss:$0 sm:$0xff]
        %v153 = vxor.u32 %v152, 2147483648
        %v154 = vlaneseq
        %v155 = vand.u32 %v154, 127
        %vm156 = vcmp.eq.s32.totalorder %v155, 1
        %v157 = vmul.f32 %v153, %v150
        %158 = vadd.xlane.f32.xlu0 %v157
        %v159 = vpop.xlane.xlu0 %158
        %v160 = vsel %vm156, %v159, %v150
        %s161 = scalar_lea.vmem [#allocation4], 2
        %v162 = vld [vmem:[%s161] ss:$0 sm:$0xff]
        %v163 = vxor.u32 %v162, 2147483648
        %v164 = vlaneseq
        %v165 = vand.u32 %v164, 127
        %vm166 = vcmp.eq.s32.totalorder %v165, 2
        %v167 = vmul.f32 %v163, %v160
        %168 = vadd.xlane.f32.xlu0 %v167
        %v169 = vpop.xlane.xlu0 %168
        %v170 = vsel %vm166, %v169, %v160
        %s171 = scalar_lea.vmem [#allocation4], 3
        %v172 = vld [vmem:[%s171] ss:$0 sm:$0xff]
        %v173 = vxor.u32 %v172, 2147483648
        %v174 = vlaneseq
        %v175 = vand.u32 %v174, 127
        %vm176 = vcmp.eq.s32.totalorder %v175, 3
        %v177 = vmul.f32 %v173, %v170
        %178 = vadd.xlane.f32.xlu0 %v177
        %v179 = vpop.xlane.xlu0 %178
        %v180 = vsel %vm176, %v179, %v170
        %v181 = vrcp.pop %v133
        %v182 = vmul.f32 %v180, %v181
        %vm183 = vweird.f32 %v133
        %v184 = vsel %vm183, %v180, %v182
        %185 = vst [vmem:[#allocation2] sm:$0xff] %v184
        %s187 = sshll.u32 1, 4
        %s188 = ssub.s32 %s187, 1
        %v190 = vld [vmem:[#allocation2] sm:%s188]
        %s191 = sshll.u32 1, 4
        %s192 = ssub.s32 %s191, 1
        %193 = vst [vmem:[%s117] sm:%s192] %v190
        %s194 = sand.u32 %s8, 1
        %s195 = sand.u32 %s8, 1
        %s196 = smul.addr %s195, 4
        %s197 = scalar_lea.vmem [#allocation3], %s196
        %s198 = sadd.s32 %s19, %s18
        %s199 = sadd.s32 %s198, %s17
        %s200 = sadd.s32 %s199, %s16
        %s201 = smul.addr %s15, 4
        %s202 = sadd.s32 %s200, %s201
        %s203 = smul.addr %s202, 4
        %s204 = scalar_lea.vmem %s1, %s203
        // Predicated region
        $region51: #{custom-call.62} parent=49 // pred_check
          _
        $region52: #{custom-call.62} parent=49 // pred_check_branch
          %206 = sbr.rel (0) target = $region54
        $region53: #{custom-call.62} parent=49 // pred_region
          // Predicated region
          $region55: #{custom-call.62} parent=53 // pred_check
            _
          $region56: #{custom-call.62} parent=53 // pred_check_branch
            %208 = sbr.rel target = $region58
          $region57: #{custom-call.62} parent=53 // pred_region
            // Predicated region
            $region70: #{custom-call.62} parent=57 // pred_check
              _
            $region71: #{custom-call.62} parent=57 // pred_check_branch
              %224 = sbr.rel (0) target = $region73
            $region72: #{custom-call.62} parent=57 // pred_region
              %s226 = ssub.s32 16, 1
              loop: start=0, step=1, limit=1
              $region74: #{custom-call.62} parent=72 // loop_pre_header
                _
              $region75: #{custom-call.62} parent=72 // loop_header
                %s228 = sphi 0, %s232
                %p229 = scmp.ge.s32.totalorder %s228, 1
                %s233 = sphi %s197, %s197
                %s234 = sphi %s204, %s204
              $region76: #{custom-call.62} parent=72 // loop_header_branch
                %231 = sbr.rel (%p229) target = $region80
              $region77: #{custom-call.62} parent=72 // loop_body
                %v235 = vld [vmem:[%s233] sm:%s226]
                %236 = vst [vmem:[%s234] sm:%s226] %v235
              $region78: #{custom-call.62} parent=72 // loop_footer
                %s232 = sadd.s32 1, %s228
              $region79: #{custom-call.62} parent=72 // loop_footer_branch
                %227 = sbr.rel target = $region75
              $region80: #{custom-call.62} parent=72 // loop_exit
                _
            $region73: #{custom-call.62} parent=57 // pred_fallthru
              _
          $region58: #{custom-call.62} parent=53 // pred_fallthru
            _
          // Predicated region
          $region59: #{custom-call.62} parent=53 // pred_check
            _
          $region60: #{custom-call.62} parent=53 // pred_check_branch
            %210 = sbr.rel (0) target = $region62
          $region61: #{custom-call.62} parent=53 // pred_region
            %s212 = ssub.s32 16, 1
            loop: start=0, step=1, limit=1
            $region63: #{custom-call.62} parent=61 // loop_pre_header
              _
            $region64: #{custom-call.62} parent=61 // loop_header
              %s214 = sphi 0, %s218
              %p215 = scmp.ge.s32.totalorder %s214, 1
              %s219 = sphi %s197, %s197
              %s220 = sphi %s204, %s204
            $region65: #{custom-call.62} parent=61 // loop_header_branch
              %217 = sbr.rel (%p215) target = $region69
            $region66: #{custom-call.62} parent=61 // loop_body
              %v221 = vld [vmem:[%s219] sm:%s212]
              %222 = vst [vmem:[%s220] sm:%s212] %v221
            $region67: #{custom-call.62} parent=61 // loop_footer
              %s218 = sadd.s32 1, %s214
            $region68: #{custom-call.62} parent=61 // loop_footer_branch
              %213 = sbr.rel target = $region64
            $region69: #{custom-call.62} parent=61 // loop_exit
              _
          $region62: #{custom-call.62} parent=53 // pred_fallthru
            _
        $region54: #{custom-call.62} parent=49 // pred_fallthru
          _
        %237 = vnop
      $region50: #{custom-call.62} parent=5 // pred_fallthru
        _
      %p238 = scmp.le.s32.totalorder 2, %s3
      // Predicated region
      $region81: #{custom-call.62} parent=5 // pred_check
        %p239 = pneg %p238
      $region82: #{custom-call.62} parent=5 // pred_check_branch
        %241 = sbr.rel (%p239) target = $region84
      $region83: #{custom-call.62} parent=5 // pred_region
        %s242 = ssub.s32 %s3, 2
        %s243 = sand.u32 %s9, 1
        %s244 = sand.u32 %s9, 1
        %s245 = smul.addr %s244, 4
        %s246 = scalar_lea.vmem [#allocation3], %s245
      $region84: #{custom-call.62} parent=5 // pred_fallthru
        _
    $region6: #{custom-call.62} parent=1 // loop_footer
      %s7 = sadd.s32 1, %s3
    $region7: #{custom-call.62} parent=1 // loop_footer_branch
      %2 = sbr.rel target = $region3
    $region8: #{custom-call.62} parent=1 // loop_exit
      _

// kernel: custom-call.61
$region0: #{custom-call.61}
  %s0 = inlined_call_operand.vmem [shape: f32[2,4,1,4,4], index: 0, kind: input, shape index: {}]
  %s1 = inlined_call_operand.vmem [shape: f32[2,4,1,4,4], index: 1, kind: output, shape index: {}]
  $region1: #{custom-call.61} parent=0
    #allocation0 [shape = 'u8[4096]{0}', space=vmem, size = 0x1000, scoped, tag = 'operand span for operand 0']
    #allocation1 [shape = 'u8[4096]{0}', space=vmem, size = 0x1000, scoped, tag = 'packed  for operand 0']
    #allocation2 [shape = 'u8[4096]{0}', space=vmem, size = 0x1000, scoped, tag = 'operand span for operand 1']
    #allocation3 [shape = 'u8[4096]{0}', space=vmem, size = 0x1000, scoped, tag = 'packed  for operand 1']
    loop: start=0, step=1, limit=10
    $region2: #{custom-call.61} parent=1 // loop_pre_header
      _
    $region3: #{custom-call.61} parent=1 // loop_header
      %s3 = sphi 0, %s7
      %p4 = scmp.ge.s32.totalorder %s3, 10
      %s10 = sphi 0, %s43
      %s11 = sphi 0, %s39
      %s12 = sphi 0, %s35
      %s13 = sphi 0, %s31
      %s14 = sphi 0, %s27
      %s15 = sphi 0, %s10
      %s16 = sphi 0, %s11
      %s17 = sphi 0, %s12
      %s18 = sphi 0, %s13
      %s19 = sphi 0, %s14
      %s20 = sphi 0, %s15
      %s21 = sphi 0, %s16
      %s22 = sphi 0, %s17
      %s23 = sphi 0, %s18
      %s24 = sphi 0, %s19
    $region4: #{custom-call.61} parent=1 // loop_header_branch
      %6 = sbr.rel (%p4) target = $region8
    $region5: #{custom-call.61} parent=1 // loop_body
      %s8 = ssub.s32 %s3, 1
      %s9 = ssub.s32 %s3, 2
      %s25 = sadd.s32 1, %s14
      %p26 = scmp.ge.s32.totalorder %s25, 1
      %s27 = scalar_select %p26, 0, %s25
      %s28 = sadd.s32 1, %s13
      %s29 = scalar_select %p26, %s28, %s13
      %p30 = scmp.ge.s32.totalorder %s29, 1
      %s31 = scalar_select %p30, 0, %s29
      %s32 = sadd.s32 1, %s12
      %s33 = scalar_select %p30, %s32, %s12
      %p34 = scmp.ge.s32.totalorder %s33, 1
      %s35 = scalar_select %p34, 0, %s33
      %s36 = sadd.s32 1, %s11
      %s37 = scalar_select %p34, %s36, %s11
      %p38 = scmp.ge.s32.totalorder %s37, 4
      %s39 = scalar_select %p38, 0, %s37
      %s40 = sadd.s32 1, %s10
      %s41 = scalar_select %p38, %s40, %s10
      %p42 = scmp.ge.s32.totalorder %s41, 2
      %s43 = scalar_select %p42, 0, %s41
      %p44 = scmp.le.s32.totalorder 1, %s3
      %p45 = scmp.lt.s32.totalorder %s3, 9
      %p46 = pnand %p44, %p45
      %p47 = pneg %p46
      // Predicated region
      $region9: #{custom-call.61} parent=5 // pred_check
        _
      $region10: #{custom-call.61} parent=5 // pred_check_branch
        %49 = sbr.rel (%p46) target = $region12
      $region11: #{custom-call.61} parent=5 // pred_region
        %s50 = ssub.s32 %s3, 1
      $region12: #{custom-call.61} parent=5 // pred_fallthru
        _
      %p51 = scmp.lt.s32.totalorder %s3, 8
      // Predicated region
      $region13: #{custom-call.61} parent=5 // pred_check
        %p52 = pneg %p51
      $region14: #{custom-call.61} parent=5 // pred_check_branch
        %54 = sbr.rel (%p52) target = $region16
      $region15: #{custom-call.61} parent=5 // pred_region
        %s55 = sand.u32 %s3, 1
        %s56 = sand.u32 %s3, 1
        %s57 = smul.addr %s56, 4
        %s58 = scalar_lea.vmem [#allocation1], %s57
        %s59 = sadd.s32 %s14, %s13
        %s60 = sadd.s32 %s59, %s12
        %s61 = sadd.s32 %s60, %s11
        %s62 = smul.addr %s10, 4
        %s63 = sadd.s32 %s61, %s62
        %s64 = smul.addr %s63, 4
        %s65 = scalar_lea.vmem %s0, %s64
        // Predicated region
        $region17: #{custom-call.61} parent=15 // pred_check
          _
        $region18: #{custom-call.61} parent=15 // pred_check_branch
          %67 = sbr.rel (0) target = $region20
        $region19: #{custom-call.61} parent=15 // pred_region
          // Predicated region
          $region21: #{custom-call.61} parent=19 // pred_check
            _
          $region22: #{custom-call.61} parent=19 // pred_check_branch
            %69 = sbr.rel target = $region24
          $region23: #{custom-call.61} parent=19 // pred_region
            // Predicated region
            $region36: #{custom-call.61} parent=23 // pred_check
              _
            $region37: #{custom-call.61} parent=23 // pred_check_branch
              %85 = sbr.rel (0) target = $region39
            $region38: #{custom-call.61} parent=23 // pred_region
              %s87 = ssub.s32 16, 1
              loop: start=0, step=1, limit=1
              $region40: #{custom-call.61} parent=38 // loop_pre_header
                _
              $region41: #{custom-call.61} parent=38 // loop_header
                %s89 = sphi 0, %s93
                %p90 = scmp.ge.s32.totalorder %s89, 1
                %s94 = sphi %s65, %s65
                %s95 = sphi %s58, %s58
              $region42: #{custom-call.61} parent=38 // loop_header_branch
                %92 = sbr.rel (%p90) target = $region46
              $region43: #{custom-call.61} parent=38 // loop_body
                %v96 = vld [vmem:[%s94] sm:%s87]
                %97 = vst [vmem:[%s95] sm:%s87] %v96
              $region44: #{custom-call.61} parent=38 // loop_footer
                %s93 = sadd.s32 1, %s89
              $region45: #{custom-call.61} parent=38 // loop_footer_branch
                %88 = sbr.rel target = $region41
              $region46: #{custom-call.61} parent=38 // loop_exit
                _
            $region39: #{custom-call.61} parent=23 // pred_fallthru
              _
          $region24: #{custom-call.61} parent=19 // pred_fallthru
            _
          // Predicated region
          $region25: #{custom-call.61} parent=19 // pred_check
            _
          $region26: #{custom-call.61} parent=19 // pred_check_branch
            %71 = sbr.rel (0) target = $region28
          $region27: #{custom-call.61} parent=19 // pred_region
            %s73 = ssub.s32 16, 1
            loop: start=0, step=1, limit=1
            $region29: #{custom-call.61} parent=27 // loop_pre_header
              _
            $region30: #{custom-call.61} parent=27 // loop_header
              %s75 = sphi 0, %s79
              %p76 = scmp.ge.s32.totalorder %s75, 1
              %s80 = sphi %s65, %s65
              %s81 = sphi %s58, %s58
            $region31: #{custom-call.61} parent=27 // loop_header_branch
              %78 = sbr.rel (%p76) target = $region35
            $region32: #{custom-call.61} parent=27 // loop_body
              %v82 = vld [vmem:[%s80] sm:%s73]
              %83 = vst [vmem:[%s81] sm:%s73] %v82
            $region33: #{custom-call.61} parent=27 // loop_footer
              %s79 = sadd.s32 1, %s75
            $region34: #{custom-call.61} parent=27 // loop_footer_branch
              %74 = sbr.rel target = $region30
            $region35: #{custom-call.61} parent=27 // loop_exit
              _
          $region28: #{custom-call.61} parent=19 // pred_fallthru
            _
        $region20: #{custom-call.61} parent=15 // pred_fallthru
          _
        %98 = vnop
      $region16: #{custom-call.61} parent=5 // pred_fallthru
        _
      %p99 = scmp.le.s32.totalorder 1, %s3
      %p100 = scmp.lt.s32.totalorder %s3, 9
      %p101 = pnand %p99, %p100
      %p102 = pneg %p101
      // Predicated region
      $region47: #{custom-call.61} parent=5 // pred_check
        _
      $region48: #{custom-call.61} parent=5 // pred_check_branch
        %104 = sbr.rel (%p101) target = $region50
      $region49: #{custom-call.61} parent=5 // pred_region
        #allocation4 [shape = 'f32[4,4]{1,0}', space=vmem, size = 0x1000, scoped, tag = 'rescaled input a']
        %s105 = ssub.s32 %s3, 1
        %s106 = sand.u32 %s8, 1
        %s107 = sand.u32 %s8, 1
        %s108 = smul.addr %s107, 4
        %s109 = scalar_lea.vmem [#allocation1], %s108
        %s110 = sand.u32 %s8, 1
        %s111 = sand.u32 %s8, 1
        %s112 = smul.addr %s111, 4
        %s113 = scalar_lea.vmem [#allocation1], %s112
        %s114 = sand.u32 %s8, 1
        %s115 = sand.u32 %s8, 1
        %s116 = smul.addr %s115, 4
        %s117 = scalar_lea.vmem [#allocation3], %s116
        %s119 = sshll.u32 1, 4
        %s120 = ssub.s32 %s119, 1
        %v121 = vld [vmem:[%s113] sm:%s120]
        %122 = vst [vmem:[#allocation0] sm:%s120] %v121
        %v123 = vlaneseq
        %v124 = vand.u32 %v123, 127
        %vm125 = vcmp.lt.s32.totalorder %v124, 4
        %v126 = vlaneseq
        %v127 = vshrl.u32 %v126, 7
        %vm129 = vcmp.eq.s32.totalorder %v127, %v124
        %v130 = vld [vmem:[#allocation0] sm:$0xff]
        %v131 = vsel %vm129, %v130, 0.0
        %132 = vadd.xlane.f32.xlu0 %v131
        %v133 = vpop.xlane.xlu0 %132
        %vm134 = vcmp.le.s32.totalorder %v127, %v124
        %vm135 = vmand %vm134, %vm125
        %v136 = vsel %vm135, %v130, 0.0
        %v137 = vrcp.pop %v133
        %v138 = vmul.f32 %v136, %v137
        %139 = vst [vmem:[#allocation4] sm:$0xff] %v138
        %v140 = vlaneseq
        %v141 = vand.u32 %v140, 127
        %v142 = vlaneseq
        %v143 = vshrl.u32 %v142, 7
        %vm145 = vcmp.eq.s32.totalorder %v141, %v143
        %v146 = vlaneseq
        %v147 = vand.u32 %v146, 127
        %vm148 = vcmp.eq.s32.totalorder %v147, 3
        %v149 = vsel %vm148, 1.0, -1.0
        %v150 = vsel %vm145, %v149, 0.0
        %s151 = scalar_lea.vmem [#allocation4], 2
        %v152 = vld [vmem:[%s151] ss:$0 sm:$0xff]
        %v153 = vxor.u32 %v152, 2147483648
        %v154 = vlaneseq
        %v155 = vand.u32 %v154, 127
        %vm156 = vcmp.eq.s32.totalorder %v155, 2
        %v157 = vmul.f32 %v153, %v150
        %158 = vadd.xlane.f32.xlu0 %v157
        %v159 = vpop.xlane.xlu0 %158
        %v160 = vsel %vm156, %v159, %v150
        %s161 = scalar_lea.vmem [#allocation4], 1
        %v162 = vld [vmem:[%s161] ss:$0 sm:$0xff]
        %v163 = vxor.u32 %v162, 2147483648
        %v164 = vlaneseq
        %v165 = vand.u32 %v164, 127
        %vm166 = vcmp.eq.s32.totalorder %v165, 1
        %v167 = vmul.f32 %v163, %v160
        %168 = vadd.xlane.f32.xlu0 %v167
        %v169 = vpop.xlane.xlu0 %168
        %v170 = vsel %vm166, %v169, %v160
        %v171 = vld [vmem:[#allocation4] ss:$0 sm:$0xff]
        %v172 = vxor.u32 %v171, 2147483648
        %v173 = vlaneseq
        %v174 = vand.u32 %v173, 127
        %vm175 = vcmp.eq.s32.totalorder %v174, 0
        %v176 = vmul.f32 %v172, %v170
        %177 = vadd.xlane.f32.xlu0 %v176
        %v178 = vpop.xlane.xlu0 %177
        %v179 = vsel %vm175, %v178, %v170
        %v180 = vrcp.pop %v133
        %v181 = vmul.f32 %v179, %v180
        %vm182 = vweird.f32 %v133
        %v183 = vsel %vm182, %v179, %v181
        %184 = vst [vmem:[#allocation2] sm:$0xff] %v183
        %s186 = sshll.u32 1, 4
        %s187 = ssub.s32 %s186, 1
        %v189 = vld [vmem:[#allocation2] sm:%s187]
        %s190 = sshll.u32 1, 4
        %s191 = ssub.s32 %s190, 1
        %192 = vst [vmem:[%s117] sm:%s191] %v189
        %s193 = sand.u32 %s8, 1
        %s194 = sand.u32 %s8, 1
        %s195 = smul.addr %s194, 4
        %s196 = scalar_lea.vmem [#allocation3], %s195
        %s197 = sadd.s32 %s19, %s18
        %s198 = sadd.s32 %s197, %s17
        %s199 = sadd.s32 %s198, %s16
        %s200 = smul.addr %s15, 4
        %s201 = sadd.s32 %s199, %s200
        %s202 = smul.addr %s201, 4
        %s203 = scalar_lea.vmem %s1, %s202
        // Predicated region
        $region51: #{custom-call.61} parent=49 // pred_check
          _
        $region52: #{custom-call.61} parent=49 // pred_check_branch
          %205 = sbr.rel (0) target = $region54
        $region53: #{custom-call.61} parent=49 // pred_region
          // Predicated region
          $region55: #{custom-call.61} parent=53 // pred_check
            _
          $region56: #{custom-call.61} parent=53 // pred_check_branch
            %207 = sbr.rel target = $region58
          $region57: #{custom-call.61} parent=53 // pred_region
            // Predicated region
            $region70: #{custom-call.61} parent=57 // pred_check
              _
            $region71: #{custom-call.61} parent=57 // pred_check_branch
              %223 = sbr.rel (0) target = $region73
            $region72: #{custom-call.61} parent=57 // pred_region
              %s225 = ssub.s32 16, 1
              loop: start=0, step=1, limit=1
              $region74: #{custom-call.61} parent=72 // loop_pre_header
                _
              $region75: #{custom-call.61} parent=72 // loop_header
                %s227 = sphi 0, %s231
                %p228 = scmp.ge.s32.totalorder %s227, 1
                %s232 = sphi %s196, %s196
                %s233 = sphi %s203, %s203
              $region76: #{custom-call.61} parent=72 // loop_header_branch
                %230 = sbr.rel (%p228) target = $region80
              $region77: #{custom-call.61} parent=72 // loop_body
                %v234 = vld [vmem:[%s232] sm:%s225]
                %235 = vst [vmem:[%s233] sm:%s225] %v234
              $region78: #{custom-call.61} parent=72 // loop_footer
                %s231 = sadd.s32 1, %s227
              $region79: #{custom-call.61} parent=72 // loop_footer_branch
                %226 = sbr.rel target = $region75
              $region80: #{custom-call.61} parent=72 // loop_exit
                _
            $region73: #{custom-call.61} parent=57 // pred_fallthru
              _
          $region58: #{custom-call.61} parent=53 // pred_fallthru
            _
          // Predicated region
          $region59: #{custom-call.61} parent=53 // pred_check
            _
          $region60: #{custom-call.61} parent=53 // pred_check_branch
            %209 = sbr.rel (0) target = $region62
          $region61: #{custom-call.61} parent=53 // pred_region
            %s211 = ssub.s32 16, 1
            loop: start=0, step=1, limit=1
            $region63: #{custom-call.61} parent=61 // loop_pre_header
              _
            $region64: #{custom-call.61} parent=61 // loop_header
              %s213 = sphi 0, %s217
              %p214 = scmp.ge.s32.totalorder %s213, 1
              %s218 = sphi %s196, %s196
              %s219 = sphi %s203, %s203
            $region65: #{custom-call.61} parent=61 // loop_header_branch
              %216 = sbr.rel (%p214) target = $region69
            $region66: #{custom-call.61} parent=61 // loop_body
              %v220 = vld [vmem:[%s218] sm:%s211]
              %221 = vst [vmem:[%s219] sm:%s211] %v220
            $region67: #{custom-call.61} parent=61 // loop_footer
              %s217 = sadd.s32 1, %s213
            $region68: #{custom-call.61} parent=61 // loop_footer_branch
              %212 = sbr.rel target = $region64
            $region69: #{custom-call.61} parent=61 // loop_exit
              _
          $region62: #{custom-call.61} parent=53 // pred_fallthru
            _
        $region54: #{custom-call.61} parent=49 // pred_fallthru
          _
        %236 = vnop
      $region50: #{custom-call.61} parent=5 // pred_fallthru
        _
      %p237 = scmp.le.s32.totalorder 2, %s3
      // Predicated region
      $region81: #{custom-call.61} parent=5 // pred_check
        %p238 = pneg %p237
      $region82: #{custom-call.61} parent=5 // pred_check_branch
        %240 = sbr.rel (%p238) target = $region84
      $region83: #{custom-call.61} parent=5 // pred_region
        %s241 = ssub.s32 %s3, 2
        %s242 = sand.u32 %s9, 1
        %s243 = sand.u32 %s9, 1
        %s244 = smul.addr %s243, 4
        %s245 = scalar_lea.vmem [#allocation3], %s244
      $region84: #{custom-call.61} parent=5 // pred_fallthru
        _
    $region6: #{custom-call.61} parent=1 // loop_footer
      %s7 = sadd.s32 1, %s3
    $region7: #{custom-call.61} parent=1 // loop_footer_branch
      %2 = sbr.rel target = $region3
    $region8: #{custom-call.61} parent=1 // loop_exit
      _

// kernel: em_mask_generator.6
$region0: #{em_mask_generator.6}
  #allocation0 [shape = 'u32[]', space=smem, size = 0x4, offset = 0x4, fixed_abs, tag = 'smem constant byte address 0x4 - core index']
  #allocation1 [shape = 'u32[144,128]{1,0:T(1,128)}', space=vmem, size = 0x12000, scoped, tag = 'internal scratch']
  %s0 = inlined_call_operand.vmem [shape: f32[2,3,256], index: 0, kind: input, shape index: {}]
  %s1 = inlined_call_operand.vmem [shape: f32[2,4,256], index: 1, kind: input, shape index: {}]
  %s2 = inlined_call_operand.vmem [shape: f32[2,4,256], index: 2, kind: input, shape index: {}]
  %s3 = inlined_call_operand.vmem [shape: f32[2,4,256], index: 3, kind: input, shape index: {}]
  %s4 = inlined_call_operand.vmem [shape: f32[2,4,256], index: 4, kind: output, shape index: {0}]
  %s5 = inlined_call_operand.vmem [shape: f32[2,4,7,7], index: 5, kind: output, shape index: {1}]
  %6 = xla_tuple %s4, %s5
  %s7 = sld [smem:[#allocation0]]
  $region61: #{em_mask_generator.6} parent=0
    _
  %s9 = ssub.s32 1, %s7
  %s10 = scalar_select 0, %s9, %s7
  loop: start=0, step=1, limit=4
  $region2: #{em_mask_generator.6} parent=0 // loop_pre_header
    _
  $region3: #{em_mask_generator.6} parent=0 // loop_header
    %s12 = sphi 0, %s16
    %p13 = scmp.ge.s32.totalorder %s12, 4
    %s19 = sphi 0, %s31
    %s20 = sphi 0, %s27
    %s21 = sphi 0, %s19
    %s22 = sphi 0, %s20
    %s23 = sphi 0, %s21
    %s24 = sphi 0, %s22
    %s36 = sphi 0, %s38
    %s39 = sphi 0, %s36
    %s40 = sphi 0, %s39
    %s56 = sphi 0, %s40
    %s64 = sphi 0, %s66
    %s67 = sphi 0, %s64
    %s68 = sphi 0, %s67
    %s84 = sphi 0, %s68
    %s92 = sphi 0, %s94
    %s95 = sphi 0, %s92
    %s96 = sphi 0, %s95
    %s112 = sphi 0, %s96
    %s120 = sphi 0, %s122
    %s123 = sphi 0, %s120
    %s124 = sphi 0, %s123
    %s140 = sphi 0, %s124
    %s148 = sphi 0, %s150
    %s151 = sphi 0, %s148
    %s152 = sphi 0, %s151
    %s168 = sphi 0, %s152
    %s174 = sphi 0, %s176
    %s177 = sphi 0, %s174
    %s178 = sphi 0, %s177
    %s194 = sphi 0, %s178
  $region4: #{em_mask_generator.6} parent=0 // loop_header_branch
    %15 = sbr.rel (%p13) target = $region8
  $region5: #{em_mask_generator.6} parent=0 // loop_body
    %s17 = ssub.s32 %s12, 1
    %s18 = ssub.s32 %s12, 2
    %s25 = sadd.s32 1, %s20
    %p26 = scmp.ge.s32.totalorder %s25, 1
    %s27 = scalar_select %p26, 0, %s25
    %s28 = sadd.s32 1, %s19
    %s29 = scalar_select %p26, %s28, %s19
    %p30 = scmp.ge.s32.totalorder %s29, 2
    %s31 = scalar_select %p30, 0, %s29
    %s32 = ssub.s32 %s19, %s31
    %s33 = ssub.s32 %s20, %s27
    %s34 = sor.u32 %s32, %s33
    %p35 = scmp.eq.s32.totalorder %s34, 0
    %s37 = sadd.s32 %s36, 1
    %s38 = scalar_select %p35, %s36, %s37
    %p41 = pneg %p35
    %p42 = scmp.eq.s32.totalorder %s12, 1
    %p43 = por %p41, %p42
    %p44 = scmp.ne.s32.totalorder %s36, %s39
    %p45 = scmp.eq.s32.totalorder %s12, 0
    %p46 = por %p44, %p45
    %p47 = scmp.ne.s32.totalorder %s36, %s39
    %p48 = scmp.eq.s32.totalorder %s17, 1
    %p49 = por %p47, %p48
    %p50 = scmp.ne.s32.totalorder %s39, %s40
    %p51 = scmp.eq.s32.totalorder %s17, 0
    %p52 = por %p50, %p51
    %p53 = scmp.ne.s32.totalorder %s39, %s40
    %p54 = scmp.eq.s32.totalorder %s18, 1
    %p55 = por %p53, %p54
    %p57 = scmp.ne.s32.totalorder %s40, %s56
    %p58 = scmp.eq.s32.totalorder %s18, 0
    %p59 = por %p57, %p58
    %s60 = ssub.s32 %s19, %s31
    %s61 = ssub.s32 %s20, %s27
    %s62 = sor.u32 %s60, %s61
    %p63 = scmp.eq.s32.totalorder %s62, 0
    %s65 = sadd.s32 %s64, 1
    %s66 = scalar_select %p63, %s64, %s65
    %p69 = pneg %p63
    %p70 = scmp.eq.s32.totalorder %s12, 1
    %p71 = por %p69, %p70
    %p72 = scmp.ne.s32.totalorder %s64, %s67
    %p73 = scmp.eq.s32.totalorder %s12, 0
    %p74 = por %p72, %p73
    %p75 = scmp.ne.s32.totalorder %s64, %s67
    %p76 = scmp.eq.s32.totalorder %s17, 1
    %p77 = por %p75, %p76
    %p78 = scmp.ne.s32.totalorder %s67, %s68
    %p79 = scmp.eq.s32.totalorder %s17, 0
    %p80 = por %p78, %p79
    %p81 = scmp.ne.s32.totalorder %s67, %s68
    %p82 = scmp.eq.s32.totalorder %s18, 1
    %p83 = por %p81, %p82
    %p85 = scmp.ne.s32.totalorder %s68, %s84
    %p86 = scmp.eq.s32.totalorder %s18, 0
    %p87 = por %p85, %p86
    %s88 = ssub.s32 %s19, %s31
    %s89 = ssub.s32 %s20, %s27
    %s90 = sor.u32 %s88, %s89
    %p91 = scmp.eq.s32.totalorder %s90, 0
    %s93 = sadd.s32 %s92, 1
    %s94 = scalar_select %p91, %s92, %s93
    %p97 = pneg %p91
    %p98 = scmp.eq.s32.totalorder %s12, 1
    %p99 = por %p97, %p98
    %p100 = scmp.ne.s32.totalorder %s92, %s95
    %p101 = scmp.eq.s32.totalorder %s12, 0
    %p102 = por %p100, %p101
    %p103 = scmp.ne.s32.totalorder %s92, %s95
    %p104 = scmp.eq.s32.totalorder %s17, 1
    %p105 = por %p103, %p104
    %p106 = scmp.ne.s32.totalorder %s95, %s96
    %p107 = scmp.eq.s32.totalorder %s17, 0
    %p108 = por %p106, %p107
    %p109 = scmp.ne.s32.totalorder %s95, %s96
    %p110 = scmp.eq.s32.totalorder %s18, 1
    %p111 = por %p109, %p110
    %p113 = scmp.ne.s32.totalorder %s96, %s112
    %p114 = scmp.eq.s32.totalorder %s18, 0
    %p115 = por %p113, %p114
    %s116 = ssub.s32 %s19, %s31
    %s117 = ssub.s32 %s20, %s27
    %s118 = sor.u32 %s116, %s117
    %p119 = scmp.eq.s32.totalorder %s118, 0
    %s121 = sadd.s32 %s120, 1
    %s122 = scalar_select %p119, %s120, %s121
    %p125 = pneg %p119
    %p126 = scmp.eq.s32.totalorder %s12, 1
    %p127 = por %p125, %p126
    %p128 = scmp.ne.s32.totalorder %s120, %s123
    %p129 = scmp.eq.s32.totalorder %s12, 0
    %p130 = por %p128, %p129
    %p131 = scmp.ne.s32.totalorder %s120, %s123
    %p132 = scmp.eq.s32.totalorder %s17, 1
    %p133 = por %p131, %p132
    %p134 = scmp.ne.s32.totalorder %s123, %s124
    %p135 = scmp.eq.s32.totalorder %s17, 0
    %p136 = por %p134, %p135
    %p137 = scmp.ne.s32.totalorder %s123, %s124
    %p138 = scmp.eq.s32.totalorder %s18, 1
    %p139 = por %p137, %p138
    %p141 = scmp.ne.s32.totalorder %s124, %s140
    %p142 = scmp.eq.s32.totalorder %s18, 0
    %p143 = por %p141, %p142
    %s144 = ssub.s32 %s19, %s31
    %s145 = ssub.s32 %s20, %s27
    %s146 = sor.u32 %s144, %s145
    %p147 = scmp.eq.s32.totalorder %s146, 0
    %s149 = sadd.s32 %s148, 1
    %s150 = scalar_select %p147, %s148, %s149
    %p153 = pneg %p147
    %p154 = scmp.eq.s32.totalorder %s12, 1
    %p155 = por %p153, %p154
    %p156 = scmp.ne.s32.totalorder %s148, %s151
    %p157 = scmp.eq.s32.totalorder %s12, 0
    %p158 = por %p156, %p157
    %p159 = scmp.ne.s32.totalorder %s148, %s151
    %p160 = scmp.eq.s32.totalorder %s17, 1
    %p161 = por %p159, %p160
    %p162 = scmp.ne.s32.totalorder %s151, %s152
    %p163 = scmp.eq.s32.totalorder %s17, 0
    %p164 = por %p162, %p163
    %p165 = scmp.ne.s32.totalorder %s151, %s152
    %p166 = scmp.eq.s32.totalorder %s18, 1
    %p167 = por %p165, %p166
    %p169 = scmp.ne.s32.totalorder %s152, %s168
    %p170 = scmp.eq.s32.totalorder %s18, 0
    %p171 = por %p169, %p170
    %s172 = ssub.s32 %s19, %s31
    %p173 = scmp.eq.s32.totalorder %s172, 0
    %s175 = sadd.s32 %s174, 1
    %s176 = scalar_select %p173, %s174, %s175
    %p179 = pneg %p173
    %p180 = scmp.eq.s32.totalorder %s12, 1
    %p181 = por %p179, %p180
    %p182 = scmp.ne.s32.totalorder %s174, %s177
    %p183 = scmp.eq.s32.totalorder %s12, 0
    %p184 = por %p182, %p183
    %p185 = scmp.ne.s32.totalorder %s174, %s177
    %p186 = scmp.eq.s32.totalorder %s17, 1
    %p187 = por %p185, %p186
    %p188 = scmp.ne.s32.totalorder %s177, %s178
    %p189 = scmp.eq.s32.totalorder %s17, 0
    %p190 = por %p188, %p189
    %p191 = scmp.ne.s32.totalorder %s177, %s178
    %p192 = scmp.eq.s32.totalorder %s18, 1
    %p193 = por %p191, %p192
    %p195 = scmp.ne.s32.totalorder %s178, %s194
    %p196 = scmp.eq.s32.totalorder %s18, 0
    %p197 = por %p195, %p196
    %p198 = scmp.le.s32.totalorder 1, %s12
    %p199 = scmp.lt.s32.totalorder %s12, 3
    %p200 = pnand %p198, %p199
    %p201 = pneg %p200
    // Predicated region
    $region9: #{em_mask_generator.6} parent=5 // pred_check
      _
    $region10: #{em_mask_generator.6} parent=5 // pred_check_branch
      %203 = sbr.rel (%p200) target = $region12
    $region11: #{em_mask_generator.6} parent=5 // pred_region
      %s204 = ssub.s32 %s12, 1
    $region12: #{em_mask_generator.6} parent=5 // pred_fallthru
      _
    %p205 = scmp.lt.s32.totalorder %s12, 2
    // Predicated region
    $region13: #{em_mask_generator.6} parent=5 // pred_check
      %p206 = pneg %p205
    $region14: #{em_mask_generator.6} parent=5 // pred_check_branch
      %208 = sbr.rel (%p206) target = $region16
    $region15: #{em_mask_generator.6} parent=5 // pred_region
      // Predicated region
      $region17: #{em_mask_generator.6} parent=15 // pred_check
        %p209 = pneg %p46
      $region18: #{em_mask_generator.6} parent=15 // pred_check_branch
        %211 = sbr.rel (%p209) target = $region20
      $region19: #{em_mask_generator.6} parent=15 // pred_region
        %s212 = smul.u32 2, %s20
        %p213 = scmp.lt.s32.totalorder %s19, 1
        %s214 = scalar_select %p213, %s19, 1
        %p215 = scmp.lt.s32.totalorder %s212, 1
        %s216 = scalar_select %p215, %s212, 1
        %s217 = smul.addr %s214, 2
        %s218 = sadd.s32 %s216, %s217
        %s219 = smul.addr %s218, 4
        %s220 = scalar_lea.vmem %s0, %s219
        %s221 = smul.u32 2, %s20
      $region20: #{em_mask_generator.6} parent=15 // pred_fallthru
        _
      // Predicated region
      $region21: #{em_mask_generator.6} parent=15 // pred_check
        %p222 = pneg %p74
      $region22: #{em_mask_generator.6} parent=15 // pred_check_branch
        %224 = sbr.rel (%p222) target = $region24
      $region23: #{em_mask_generator.6} parent=15 // pred_region
        %s225 = smul.u32 2, %s20
        %p226 = scmp.lt.s32.totalorder %s19, 1
        %s227 = scalar_select %p226, %s19, 1
        %p228 = scmp.lt.s32.totalorder %s225, 1
        %s229 = scalar_select %p228, %s225, 1
        %s230 = smul.addr %s227, 2
        %s231 = sadd.s32 %s229, %s230
        %s232 = smul.addr %s231, 4
        %s233 = scalar_lea.vmem %s1, %s232
        %s234 = smul.u32 2, %s20
      $region24: #{em_mask_generator.6} parent=15 // pred_fallthru
        _
      // Predicated region
      $region25: #{em_mask_generator.6} parent=15 // pred_check
        %p235 = pneg %p102
      $region26: #{em_mask_generator.6} parent=15 // pred_check_branch
        %237 = sbr.rel (%p235) target = $region28
      $region27: #{em_mask_generator.6} parent=15 // pred_region
        %s238 = smul.u32 2, %s20
        %p239 = scmp.lt.s32.totalorder %s19, 1
        %s240 = scalar_select %p239, %s19, 1
        %p241 = scmp.lt.s32.totalorder %s238, 1
        %s242 = scalar_select %p241, %s238, 1
        %s243 = smul.addr %s240, 2
        %s244 = sadd.s32 %s242, %s243
        %s245 = smul.addr %s244, 4
        %s246 = scalar_lea.vmem %s2, %s245
        %s247 = smul.u32 2, %s20
      $region28: #{em_mask_generator.6} parent=15 // pred_fallthru
        _
      // Predicated region
      $region29: #{em_mask_generator.6} parent=15 // pred_check
        %p248 = pneg %p130
      $region30: #{em_mask_generator.6} parent=15 // pred_check_branch
        %250 = sbr.rel (%p248) target = $region32
      $region31: #{em_mask_generator.6} parent=15 // pred_region
        %s251 = smul.u32 2, %s20
        %p252 = scmp.lt.s32.totalorder %s19, 1
        %s253 = scalar_select %p252, %s19, 1
        %p254 = scmp.lt.s32.totalorder %s251, 1
        %s255 = scalar_select %p254, %s251, 1
        %s256 = smul.addr %s253, 2
        %s257 = sadd.s32 %s255, %s256
        %s258 = smul.addr %s257, 4
        %s259 = scalar_lea.vmem %s3, %s258
        %s260 = smul.u32 2, %s20
      $region32: #{em_mask_generator.6} parent=15 // pred_fallthru
        _
    $region16: #{em_mask_generator.6} parent=5 // pred_fallthru
      _
    %p261 = scmp.le.s32.totalorder 1, %s12
    %p262 = scmp.lt.s32.totalorder %s12, 3
    %p263 = pnand %p261, %p262
    %p264 = pneg %p263
    // Predicated region
    $region33: #{em_mask_generator.6} parent=5 // pred_check
      _
    $region34: #{em_mask_generator.6} parent=5 // pred_check_branch
      %266 = sbr.rel (%p263) target = $region36
    $region35: #{em_mask_generator.6} parent=5 // pred_region
      %s267 = ssub.s32 %s12, 1
      %s268 = smul.u32 2, %s22
      %p269 = scmp.lt.s32.totalorder %s21, 1
      %s270 = scalar_select %p269, %s21, 1
      %p271 = scmp.lt.s32.totalorder %s268, 1
      %s272 = scalar_select %p271, %s268, 1
      %s273 = smul.addr %s270, 2
      %s274 = sadd.s32 %s272, %s273
      %s275 = smul.addr %s274, 4
      %s276 = scalar_lea.vmem %s0, %s275
      %p277 = pneg %p52
      %p278 = pneg %p49
      %s279 = smul.u32 2, %s22
      %p280 = scmp.lt.s32.totalorder %s21, 1
      %s281 = scalar_select %p280, %s21, 1
      %p282 = scmp.lt.s32.totalorder %s279, 1
      %s283 = scalar_select %p282, %s279, 1
      %s284 = smul.addr %s281, 2
      %s285 = sadd.s32 %s283, %s284
      %s286 = smul.addr %s285, 4
      %s287 = scalar_lea.vmem %s1, %s286
      %p288 = pneg %p80
      %p289 = pneg %p77
      %s290 = smul.u32 2, %s22
      %p291 = scmp.lt.s32.totalorder %s21, 1
      %s292 = scalar_select %p291, %s21, 1
      %p293 = scmp.lt.s32.totalorder %s290, 1
      %s294 = scalar_select %p293, %s290, 1
      %s295 = smul.addr %s292, 2
      %s296 = sadd.s32 %s294, %s295
      %s297 = smul.addr %s296, 4
      %s298 = scalar_lea.vmem %s2, %s297
      %p299 = pneg %p108
      %p300 = pneg %p105
      %s301 = smul.u32 2, %s22
      %p302 = scmp.lt.s32.totalorder %s21, 1
      %s303 = scalar_select %p302, %s21, 1
      %p304 = scmp.lt.s32.totalorder %s301, 1
      %s305 = scalar_select %p304, %s301, 1
      %s306 = smul.addr %s303, 2
      %s307 = sadd.s32 %s305, %s306
      %s308 = smul.addr %s307, 4
      %s309 = scalar_lea.vmem %s3, %s308
      %p310 = pneg %p136
      %p311 = pneg %p133
      %p312 = pneg %p164
      %p313 = pneg %p161
      %s314 = smul.u32 2, %s22
      %p315 = scmp.lt.s32.totalorder %s21, 1
      %s316 = scalar_select %p315, %s21, 1
      %p317 = scmp.lt.s32.totalorder %s314, 1
      %s318 = scalar_select %p317, %s314, 1
      %s319 = smul.addr %s316, 2
      %s320 = sadd.s32 %s318, %s319
      %s321 = smul.addr %s320, 4
      %s322 = scalar_lea.vmem %s4, %s321
      %p323 = pneg %p190
      %p324 = pneg %p187
      %p325 = scmp.lt.s32.totalorder %s21, 1
      %s326 = scalar_select %p325, %s21, 1
      %s327 = smul.addr %s326, 4
      %s328 = smul.addr %s327, 8
      %s329 = scalar_lea.vmem %s5, %s328
      %s330 = smul.u32 2, %s22
      %p331 = scmp.lt.s32.totalorder %s21, 1
      %s332 = scalar_select %p331, %s21, 1
      %p333 = scmp.lt.s32.totalorder %s330, 1
      %s334 = scalar_select %p333, %s330, 1
      %s335 = smul.addr %s332, 2
      %s336 = sadd.s32 %s334, %s335
      %s337 = smul.addr %s336, 4
      %s338 = scalar_lea.vmem %s0, %s337
      %s339 = smul.u32 2, %s22
      %s340 = smul.u32 2, %s22
      %p341 = scmp.lt.s32.totalorder %s21, 1
      %s342 = scalar_select %p341, %s21, 1
      %p343 = scmp.lt.s32.totalorder %s340, 1
      %s344 = scalar_select %p343, %s340, 1
      %s345 = smul.addr %s342, 2
      %s346 = sadd.s32 %s344, %s345
      %s347 = smul.addr %s346, 4
      %s348 = scalar_lea.vmem %s1, %s347
      %s349 = smul.u32 2, %s22
      %s350 = smul.u32 2, %s22
      %p351 = scmp.lt.s32.totalorder %s21, 1
      %s352 = scalar_select %p351, %s21, 1
      %p353 = scmp.lt.s32.totalorder %s350, 1
      %s354 = scalar_select %p353, %s350, 1
      %s355 = smul.addr %s352, 2
      %s356 = sadd.s32 %s354, %s355
      %s357 = smul.addr %s356, 4
      %s358 = scalar_lea.vmem %s2, %s357
      %s359 = smul.u32 2, %s22
      %s360 = smul.u32 2, %s22
      %p361 = scmp.lt.s32.totalorder %s21, 1
      %s362 = scalar_select %p361, %s21, 1
      %p363 = scmp.lt.s32.totalorder %s360, 1
      %s364 = scalar_select %p363, %s360, 1
      %s365 = smul.addr %s362, 2
      %s366 = sadd.s32 %s364, %s365
      %s367 = smul.addr %s366, 4
      %s368 = scalar_lea.vmem %s3, %s367
      %s369 = smul.u32 2, %s22
      %s370 = smul.u32 2, %s22
      %p371 = scmp.lt.s32.totalorder %s21, 1
      %s372 = scalar_select %p371, %s21, 1
      %p373 = scmp.lt.s32.totalorder %s370, 1
      %s374 = scalar_select %p373, %s370, 1
      %s375 = smul.addr %s372, 2
      %s376 = sadd.s32 %s374, %s375
      %s377 = smul.addr %s376, 4
      %s378 = scalar_lea.vmem %s4, %s377
      %s379 = smul.u32 2, %s22
      %p380 = scmp.lt.s32.totalorder %s21, 1
      %s381 = scalar_select %p380, %s21, 1
      %s382 = smul.addr %s381, 4
      %s383 = smul.addr %s382, 8
      %s384 = scalar_lea.vmem %s5, %s383
      %p385 = scmp.eq.s32.totalorder %s22, 0
      // Predicated region
      $region37: #{em_mask_generator.6} parent=35 // pred_check
        %p386 = pneg %p385
      $region38: #{em_mask_generator.6} parent=35 // pred_check_branch
        %388 = sbr.rel (%p386) target = $region40
      $region39: #{em_mask_generator.6} parent=35 // pred_region
        %vm389 = vcmask 55296
        %390 = vst.msk [vmem:[%s384] sm:$0x7f] %vm389, 0.0
        %391 = vst.msk [vmem:[%s384 + $0x8] sm:$0x7f] %vm389, 0.0
        %392 = vst.msk [vmem:[%s384 + $0x10] sm:$0x7f] %vm389, 0.0
        %393 = vst.msk [vmem:[%s384 + $0x18] sm:$0x7f] %vm389, 0.0
      $region40: #{em_mask_generator.6} parent=35 // pred_fallthru
        _
      %v394 = vld [vmem:[%s358] sm:$0xff]
      %v395 = vld [vmem:[%s368] sm:$0xff]
      %v396 = vadd.f32 %v394, %v395
      %v398 = vcombine.high %v396, %v396
      %vm400 = vcmask 1043456
      %v401 = vsel %vm400, %v396, -inf
      %v402 = vrot.slane %v401, 4
      %v403 = vmax.f32 %v401, %v402
      %v404 = vrot.slane %v403, 2
      %v405 = vmax.f32 %v403, %v404
      %v406 = vrot.slane %v405, 1
      %v407 = vmax.f32 %v405, %v406
      %v408 = vsel %vm400, %v398, -inf
      %v409 = vrot.slane %v408, 4
      %v410 = vmax.f32 %v408, %v409
      %v411 = vrot.slane %v410, 2
      %v412 = vmax.f32 %v410, %v411
      %v413 = vrot.slane %v412, 1
      %v414 = vmax.f32 %v412, %v413
      %v417 = vcombine.low %v407, %v414
      %v419 = vsub.f32 %v396, %v417
      %v420 = vmul.f32 %v419, 1.442695
      %v421 = vpow.pop %v420
      %v423 = vcombine.high %v421, %v421
      %v425 = vsel %vm400, %v421, 0.0
      %v426 = vrot.slane %v425, 4
      %v427 = vadd.f32 %v425, %v426
      %v428 = vrot.slane %v427, 2
      %v429 = vadd.f32 %v427, %v428
      %v430 = vrot.slane %v429, 1
      %v431 = vadd.f32 %v429, %v430
      %v432 = vsel %vm400, %v423, 0.0
      %v433 = vrot.slane %v432, 4
      %v434 = vadd.f32 %v432, %v433
      %v435 = vrot.slane %v434, 2
      %v436 = vadd.f32 %v434, %v435
      %v437 = vrot.slane %v436, 1
      %v438 = vadd.f32 %v436, %v437
      %v441 = vcombine.low %v431, %v438
      %v443 = vrcp.pop %v441
      %v444 = vmul.f32 %v421, %v443
      %v445 = vadd.f32 %v444, 1.1920929e-07
      %446 = vst [vmem:[%s378] sm:$0xff] %v445
      %v447 = vld [vmem:[%s338] sm:$0x77]
      %v448 = vld [vmem:[%s348] sm:$0xff]
      %v450 = vcombine.high %v447, %v447
      %v453 = vcombine.high %v448, %v448
      %v454 = vrot.slane %v448, 5
      %v455 = vrot.slane %v453, 5
      %vm458 = vcmask 1042432
      %v459 = vsel %vm458, %v447, %v454
      %v460 = vsel %vm458, %v450, %v455
      %v462 = vlaneseq
      %v463 = vshrl.u32 %v462, 7
      %v464 = vsub.s32 0, %v463
      %v465 = vrot.slane %v445, %v464
      %v466 = vlaneseq
      %v467 = vshrl.u32 %v466, 7
      %v468 = vsub.s32 4, %v467
      %v469 = vrot.slane %v445, %v468
      %v472 = vlaneseq
      %v473 = vshrl.u32 %v472, 7
      %v474 = vsub.s32 0, %v473
      %v475 = vrot.slane %v465, %v474
      %v476 = vlaneseq
      %v477 = vshrl.u32 %v476, 7
      %v478 = vsub.s32 0, %v477
      %v479 = vrot.slane %v469, %v478
      %v480 = vmul.f32 %v459, %v475
      %v481 = vmul.f32 %v460, %v479
      %482 = vmatprep.subr.mxu0 0.0
      %483 = vmatpush1.xpose.msra.mxu0 0.0
      %484 = vmatprep.subr.mxu0 0.0
      %485 = vmatpush1.xpose.msra.mxu0 0.0
      %486 = vmatprep.subr.mxu0 0.0
      %487 = vmatpush1.xpose.msra.mxu0 0.0
      %488 = vmatprep.subr.mxu0 0.0
      %489 = vmatpush1.xpose.msra.mxu0 0.0
      %490 = vmatprep.subr.mxu0 0.0
      %491 = vmatpush1.xpose.msra.mxu0 0.0
      %492 = vmatprep.subr.mxu0 0.0
      %493 = vmatpush1.xpose.msra.mxu0 0.0
      %494 = vmatprep.subr.mxu0 0.0
      %495 = vmatpush1.xpose.msra.mxu0 0.0
      %496 = vmatprep.subr.mxu0 0.0
      %497 = vmatpush1.xpose.msra.mxu0 0.0
      %498 = vmatprep.subr.mxu0 0.0
      %499 = vmatpush1.xpose.msra.mxu0 0.0
      %500 = vmatprep.subr.mxu0 0.0
      %501 = vmatpush1.xpose.msra.mxu0 0.0
      %502 = vmatprep.subr.mxu0 0.0
      %503 = vmatpush1.xpose.msra.mxu0 0.0
      %504 = vmatprep.subr.mxu0 0.0
      %505 = vmatpush1.xpose.msra.mxu0 0.0
      %506 = vmatprep.subr.mxu0 0.0
      %507 = vmatpush1.xpose.msra.mxu0 0.0
      %508 = vmatprep.subr.mxu0 0.0
      %509 = vmatpush1.xpose.msra.mxu0 0.0
      %510 = vmatprep.subr.mxu0 0.0
      %511 = vmatpush1.xpose.msra.mxu0 0.0
      %512 = vmatprep.subr.mxu0 %v460
      %513 = vmatpush1.xpose.msra.mxu0 %v459
      %514 = vmatprep.subr.mxu0 0.0
      %515 = vmatpush2.xpose.msra.mxu0 0.0
      %516 = vmatprep.subr.mxu0 0.0
      %517 = vmatpush2.xpose.msra.mxu0 0.0
      %518 = vmatprep.subr.mxu0 0.0
      %519 = vmatpush2.xpose.msra.mxu0 0.0
      %520 = vmatprep.subr.mxu0 0.0
      %521 = vmatpush2.xpose.msra.mxu0 0.0
      %522 = vmatprep.subr.mxu0 0.0
      %523 = vmatpush2.xpose.msra.mxu0 0.0
      %524 = vmatprep.subr.mxu0 0.0
      %525 = vmatpush2.xpose.msra.mxu0 0.0
      %526 = vmatprep.subr.mxu0 0.0
      %527 = vmatpush2.xpose.msra.mxu0 0.0
      %528 = vmatprep.subr.mxu0 0.0
      %529 = vmatpush2.xpose.msra.mxu0 0.0
      %530 = vmatprep.subr.mxu0 0.0
      %531 = vmatpush2.xpose.msra.mxu0 0.0
      %532 = vmatprep.subr.mxu0 0.0
      %533 = vmatpush2.xpose.msra.mxu0 0.0
      %534 = vmatprep.subr.mxu0 0.0
      %535 = vmatpush2.xpose.msra.mxu0 0.0
      %536 = vmatprep.subr.mxu0 0.0
      %537 = vmatpush2.xpose.msra.mxu0 0.0
      %538 = vmatprep.subr.mxu0 0.0
      %539 = vmatpush2.xpose.msra.mxu0 0.0
      %540 = vmatprep.subr.mxu0 0.0
      %541 = vmatpush2.xpose.msra.mxu0 0.0
      %542 = vmatprep.subr.mxu0 0.0
      %543 = vmatpush2.xpose.msra.mxu0 0.0
      %544 = vmatprep.subr.mxu0 0.0
      %545 = vmatpush2.xpose.msra.mxu0 0.0
      %546 = vmatprep.mubr.f32.mxu0 %v481
      %547 = vmatmul.mubr.f32.gmra.mxu0 %v480
      %v548 = vpop.f32.mrf.mxu0
      %v549 = vadd.f32 0.0, %v548
      %v550 = vpop.f32.mrf.mxu0
      %551 = vdwg.mxu0
      %v552 = vld [vmem:[%s384] sm:$0x7f]
      %v553 = vadd.f32 %v552, %v549
      %vm554 = vcmask 55296
      %555 = vst.msk [vmem:[%s384] sm:$0x7f] %vm554, %v553
      %v556 = vlaneseq
      %v557 = vshrl.u32 %v556, 7
      %v558 = vsub.s32 1, %v557
      %v559 = vrot.slane %v445, %v558
      %v560 = vlaneseq
      %v561 = vshrl.u32 %v560, 7
      %v562 = vsub.s32 5, %v561
      %v563 = vrot.slane %v445, %v562
      %v566 = vlaneseq
      %v567 = vshrl.u32 %v566, 7
      %v568 = vsub.s32 1, %v567
      %v569 = vrot.slane %v559, %v568
      %v570 = vlaneseq
      %v571 = vshrl.u32 %v570, 7
      %v572 = vsub.s32 1, %v571
      %v573 = vrot.slane %v563, %v572
      %v574 = vmul.f32 %v459, %v569
      %v575 = vmul.f32 %v460, %v573
      %576 = vmatprep.subr.mxu0 0.0
      %577 = vmatpush1.xpose.msra.mxu0 0.0
      %578 = vmatprep.subr.mxu0 0.0
      %579 = vmatpush1.xpose.msra.mxu0 0.0
      %580 = vmatprep.subr.mxu0 0.0
      %581 = vmatpush1.xpose.msra.mxu0 0.0
      %582 = vmatprep.subr.mxu0 0.0
      %583 = vmatpush1.xpose.msra.mxu0 0.0
      %584 = vmatprep.subr.mxu0 0.0
      %585 = vmatpush1.xpose.msra.mxu0 0.0
      %586 = vmatprep.subr.mxu0 0.0
      %587 = vmatpush1.xpose.msra.mxu0 0.0
      %588 = vmatprep.subr.mxu0 0.0
      %589 = vmatpush1.xpose.msra.mxu0 0.0
      %590 = vmatprep.subr.mxu0 0.0
      %591 = vmatpush1.xpose.msra.mxu0 0.0
      %592 = vmatprep.subr.mxu0 0.0
      %593 = vmatpush1.xpose.msra.mxu0 0.0
      %594 = vmatprep.subr.mxu0 0.0
      %595 = vmatpush1.xpose.msra.mxu0 0.0
      %596 = vmatprep.subr.mxu0 0.0
      %597 = vmatpush1.xpose.msra.mxu0 0.0
      %598 = vmatprep.subr.mxu0 0.0
      %599 = vmatpush1.xpose.msra.mxu0 0.0
      %600 = vmatprep.subr.mxu0 0.0
      %601 = vmatpush1.xpose.msra.mxu0 0.0
      %602 = vmatprep.subr.mxu0 0.0
      %603 = vmatpush1.xpose.msra.mxu0 0.0
      %604 = vmatprep.subr.mxu0 0.0
      %605 = vmatpush1.xpose.msra.mxu0 0.0
      %606 = vmatprep.subr.mxu0 %v460
      %607 = vmatpush1.xpose.msra.mxu0 %v459
      %608 = vmatprep.subr.mxu0 0.0
      %609 = vmatpush2.xpose.msra.mxu0 0.0
      %610 = vmatprep.subr.mxu0 0.0
      %611 = vmatpush2.xpose.msra.mxu0 0.0
      %612 = vmatprep.subr.mxu0 0.0
      %613 = vmatpush2.xpose.msra.mxu0 0.0
      %614 = vmatprep.subr.mxu0 0.0
      %615 = vmatpush2.xpose.msra.mxu0 0.0
      %616 = vmatprep.subr.mxu0 0.0
      %617 = vmatpush2.xpose.msra.mxu0 0.0
      %618 = vmatprep.subr.mxu0 0.0
      %619 = vmatpush2.xpose.msra.mxu0 0.0
      %620 = vmatprep.subr.mxu0 0.0
      %621 = vmatpush2.xpose.msra.mxu0 0.0
      %622 = vmatprep.subr.mxu0 0.0
      %623 = vmatpush2.xpose.msra.mxu0 0.0
      %624 = vmatprep.subr.mxu0 0.0
      %625 = vmatpush2.xpose.msra.mxu0 0.0
      %626 = vmatprep.subr.mxu0 0.0
      %627 = vmatpush2.xpose.msra.mxu0 0.0
      %628 = vmatprep.subr.mxu0 0.0
      %629 = vmatpush2.xpose.msra.mxu0 0.0
      %630 = vmatprep.subr.mxu0 0.0
      %631 = vmatpush2.xpose.msra.mxu0 0.0
      %632 = vmatprep.subr.mxu0 0.0
      %633 = vmatpush2.xpose.msra.mxu0 0.0
      %634 = vmatprep.subr.mxu0 0.0
      %635 = vmatpush2.xpose.msra.mxu0 0.0
      %636 = vmatprep.subr.mxu0 0.0
      %637 = vmatpush2.xpose.msra.mxu0 0.0
      %638 = vmatprep.subr.mxu0 0.0
      %639 = vmatpush2.xpose.msra.mxu0 0.0
      %640 = vmatprep.mubr.f32.mxu0 %v575
      %641 = vmatmul.mubr.f32.gmra.mxu0 %v574
      %v642 = vpop.f32.mrf.mxu0
      %v643 = vadd.f32 0.0, %v642
      %v644 = vpop.f32.mrf.mxu0
      %645 = vdwg.mxu0
      %s646 = scalar_lea.vmem %s384, 8
      %v647 = vld [vmem:[%s646] sm:$0x7f]
      %v648 = vadd.f32 %v647, %v643
      %649 = vst.msk [vmem:[%s646] sm:$0x7f] %vm554, %v648
      %v650 = vlaneseq
      %v651 = vshrl.u32 %v650, 7
      %v652 = vsub.s32 2, %v651
      %v653 = vrot.slane %v445, %v652
      %v654 = vlaneseq
      %v655 = vshrl.u32 %v654, 7
      %v656 = vsub.s32 6, %v655
      %v657 = vrot.slane %v445, %v656
      %v660 = vlaneseq
      %v661 = vshrl.u32 %v660, 7
      %v662 = vsub.s32 2, %v661
      %v663 = vrot.slane %v653, %v662
      %v664 = vlaneseq
      %v665 = vshrl.u32 %v664, 7
      %v666 = vsub.s32 2, %v665
      %v667 = vrot.slane %v657, %v666
      %v668 = vmul.f32 %v459, %v663
      %v669 = vmul.f32 %v460, %v667
      %670 = vmatprep.subr.mxu0 0.0
      %671 = vmatpush1.xpose.msra.mxu0 0.0
      %672 = vmatprep.subr.mxu0 0.0
      %673 = vmatpush1.xpose.msra.mxu0 0.0
      %674 = vmatprep.subr.mxu0 0.0
      %675 = vmatpush1.xpose.msra.mxu0 0.0
      %676 = vmatprep.subr.mxu0 0.0
      %677 = vmatpush1.xpose.msra.mxu0 0.0
      %678 = vmatprep.subr.mxu0 0.0
      %679 = vmatpush1.xpose.msra.mxu0 0.0
      %680 = vmatprep.subr.mxu0 0.0
      %681 = vmatpush1.xpose.msra.mxu0 0.0
      %682 = vmatprep.subr.mxu0 0.0
      %683 = vmatpush1.xpose.msra.mxu0 0.0
      %684 = vmatprep.subr.mxu0 0.0
      %685 = vmatpush1.xpose.msra.mxu0 0.0
      %686 = vmatprep.subr.mxu0 0.0
      %687 = vmatpush1.xpose.msra.mxu0 0.0
      %688 = vmatprep.subr.mxu0 0.0
      %689 = vmatpush1.xpose.msra.mxu0 0.0
      %690 = vmatprep.subr.mxu0 0.0
      %691 = vmatpush1.xpose.msra.mxu0 0.0
      %692 = vmatprep.subr.mxu0 0.0
      %693 = vmatpush1.xpose.msra.mxu0 0.0
      %694 = vmatprep.subr.mxu0 0.0
      %695 = vmatpush1.xpose.msra.mxu0 0.0
      %696 = vmatprep.subr.mxu0 0.0
      %697 = vmatpush1.xpose.msra.mxu0 0.0
      %698 = vmatprep.subr.mxu0 0.0
      %699 = vmatpush1.xpose.msra.mxu0 0.0
      %700 = vmatprep.subr.mxu0 %v460
      %701 = vmatpush1.xpose.msra.mxu0 %v459
      %702 = vmatprep.subr.mxu0 0.0
      %703 = vmatpush2.xpose.msra.mxu0 0.0
      %704 = vmatprep.subr.mxu0 0.0
      %705 = vmatpush2.xpose.msra.mxu0 0.0
      %706 = vmatprep.subr.mxu0 0.0
      %707 = vmatpush2.xpose.msra.mxu0 0.0
      %708 = vmatprep.subr.mxu0 0.0
      %709 = vmatpush2.xpose.msra.mxu0 0.0
      %710 = vmatprep.subr.mxu0 0.0
      %711 = vmatpush2.xpose.msra.mxu0 0.0
      %712 = vmatprep.subr.mxu0 0.0
      %713 = vmatpush2.xpose.msra.mxu0 0.0
      %714 = vmatprep.subr.mxu0 0.0
      %715 = vmatpush2.xpose.msra.mxu0 0.0
      %716 = vmatprep.subr.mxu0 0.0
      %717 = vmatpush2.xpose.msra.mxu0 0.0
      %718 = vmatprep.subr.mxu0 0.0
      %719 = vmatpush2.xpose.msra.mxu0 0.0
      %720 = vmatprep.subr.mxu0 0.0
      %721 = vmatpush2.xpose.msra.mxu0 0.0
      %722 = vmatprep.subr.mxu0 0.0
      %723 = vmatpush2.xpose.msra.mxu0 0.0
      %724 = vmatprep.subr.mxu0 0.0
      %725 = vmatpush2.xpose.msra.mxu0 0.0
      %726 = vmatprep.subr.mxu0 0.0
      %727 = vmatpush2.xpose.msra.mxu0 0.0
      %728 = vmatprep.subr.mxu0 0.0
      %729 = vmatpush2.xpose.msra.mxu0 0.0
      %730 = vmatprep.subr.mxu0 0.0
      %731 = vmatpush2.xpose.msra.mxu0 0.0
      %732 = vmatprep.subr.mxu0 0.0
      %733 = vmatpush2.xpose.msra.mxu0 0.0
      %734 = vmatprep.mubr.f32.mxu0 %v669
      %735 = vmatmul.mubr.f32.gmra.mxu0 %v668
      %v736 = vpop.f32.mrf.mxu0
      %v737 = vadd.f32 0.0, %v736
      %v738 = vpop.f32.mrf.mxu0
      %739 = vdwg.mxu0
      %s740 = scalar_lea.vmem %s384, 16
      %v741 = vld [vmem:[%s740] sm:$0x7f]
      %v742 = vadd.f32 %v741, %v737
      %743 = vst.msk [vmem:[%s740] sm:$0x7f] %vm554, %v742
      %v744 = vlaneseq
      %v745 = vshrl.u32 %v744, 7
      %v746 = vsub.s32 3, %v745
      %v747 = vrot.slane %v445, %v746
      %v748 = vlaneseq
      %v749 = vshrl.u32 %v748, 7
      %v750 = vsub.s32 7, %v749
      %v751 = vrot.slane %v445, %v750
      %v754 = vlaneseq
      %v755 = vshrl.u32 %v754, 7
      %v756 = vsub.s32 3, %v755
      %v757 = vrot.slane %v747, %v756
      %v758 = vlaneseq
      %v759 = vshrl.u32 %v758, 7
      %v760 = vsub.s32 3, %v759
      %v761 = vrot.slane %v751, %v760
      %v762 = vmul.f32 %v459, %v757
      %v763 = vmul.f32 %v460, %v761
      %764 = vmatprep.subr.mxu0 0.0
      %765 = vmatpush1.xpose.msra.mxu0 0.0
      %766 = vmatprep.subr.mxu0 0.0
      %767 = vmatpush1.xpose.msra.mxu0 0.0
      %768 = vmatprep.subr.mxu0 0.0
      %769 = vmatpush1.xpose.msra.mxu0 0.0
      %770 = vmatprep.subr.mxu0 0.0
      %771 = vmatpush1.xpose.msra.mxu0 0.0
      %772 = vmatprep.subr.mxu0 0.0
      %773 = vmatpush1.xpose.msra.mxu0 0.0
      %774 = vmatprep.subr.mxu0 0.0
      %775 = vmatpush1.xpose.msra.mxu0 0.0
      %776 = vmatprep.subr.mxu0 0.0
      %777 = vmatpush1.xpose.msra.mxu0 0.0
      %778 = vmatprep.subr.mxu0 0.0
      %779 = vmatpush1.xpose.msra.mxu0 0.0
      %780 = vmatprep.subr.mxu0 0.0
      %781 = vmatpush1.xpose.msra.mxu0 0.0
      %782 = vmatprep.subr.mxu0 0.0
      %783 = vmatpush1.xpose.msra.mxu0 0.0
      %784 = vmatprep.subr.mxu0 0.0
      %785 = vmatpush1.xpose.msra.mxu0 0.0
      %786 = vmatprep.subr.mxu0 0.0
      %787 = vmatpush1.xpose.msra.mxu0 0.0
      %788 = vmatprep.subr.mxu0 0.0
      %789 = vmatpush1.xpose.msra.mxu0 0.0
      %790 = vmatprep.subr.mxu0 0.0
      %791 = vmatpush1.xpose.msra.mxu0 0.0
      %792 = vmatprep.subr.mxu0 0.0
      %793 = vmatpush1.xpose.msra.mxu0 0.0
      %794 = vmatprep.subr.mxu0 %v460
      %795 = vmatpush1.xpose.msra.mxu0 %v459
      %796 = vmatprep.subr.mxu0 0.0
      %797 = vmatpush2.xpose.msra.mxu0 0.0
      %798 = vmatprep.subr.mxu0 0.0
      %799 = vmatpush2.xpose.msra.mxu0 0.0
      %800 = vmatprep.subr.mxu0 0.0
      %801 = vmatpush2.xpose.msra.mxu0 0.0
      %802 = vmatprep.subr.mxu0 0.0
      %803 = vmatpush2.xpose.msra.mxu0 0.0
      %804 = vmatprep.subr.mxu0 0.0
      %805 = vmatpush2.xpose.msra.mxu0 0.0
      %806 = vmatprep.subr.mxu0 0.0
      %807 = vmatpush2.xpose.msra.mxu0 0.0
      %808 = vmatprep.subr.mxu0 0.0
      %809 = vmatpush2.xpose.msra.mxu0 0.0
      %810 = vmatprep.subr.mxu0 0.0
      %811 = vmatpush2.xpose.msra.mxu0 0.0
      %812 = vmatprep.subr.mxu0 0.0
      %813 = vmatpush2.xpose.msra.mxu0 0.0
      %814 = vmatprep.subr.mxu0 0.0
      %815 = vmatpush2.xpose.msra.mxu0 0.0
      %816 = vmatprep.subr.mxu0 0.0
      %817 = vmatpush2.xpose.msra.mxu0 0.0
      %818 = vmatprep.subr.mxu0 0.0
      %819 = vmatpush2.xpose.msra.mxu0 0.0
      %820 = vmatprep.subr.mxu0 0.0
      %821 = vmatpush2.xpose.msra.mxu0 0.0
      %822 = vmatprep.subr.mxu0 0.0
      %823 = vmatpush2.xpose.msra.mxu0 0.0
      %824 = vmatprep.subr.mxu0 0.0
      %825 = vmatpush2.xpose.msra.mxu0 0.0
      %826 = vmatprep.subr.mxu0 0.0
      %827 = vmatpush2.xpose.msra.mxu0 0.0
      %828 = vmatprep.mubr.f32.mxu0 %v763
      %829 = vmatmul.mubr.f32.gmra.mxu0 %v762
      %v830 = vpop.f32.mrf.mxu0
      %v831 = vadd.f32 0.0, %v830
      %v832 = vpop.f32.mrf.mxu0
      %833 = vdwg.mxu0
      %s834 = scalar_lea.vmem %s384, 24
      %v835 = vld [vmem:[%s834] sm:$0x7f]
      %v836 = vadd.f32 %v835, %v831
      %837 = vst.msk [vmem:[%s834] sm:$0x7f] %vm554, %v836
      %s838 = smul.u32 2, %s22
      %p839 = scmp.lt.s32.totalorder %s21, 1
      %s840 = scalar_select %p839, %s21, 1
      %p841 = scmp.lt.s32.totalorder %s838, 1
      %s842 = scalar_select %p841, %s838, 1
      %s843 = smul.addr %s840, 2
      %s844 = sadd.s32 %s842, %s843
      %s845 = smul.addr %s844, 4
      %s846 = scalar_lea.vmem %s4, %s845
      %p847 = scmp.lt.s32.totalorder %s21, 1
      %s848 = scalar_select %p847, %s21, 1
      %s849 = smul.addr %s848, 4
      %s850 = smul.addr %s849, 8
      %s851 = scalar_lea.vmem %s5, %s850
      // Predicated region
      $region41: #{em_mask_generator.6} parent=35 // pred_check
        %p852 = pneg %p161
      $region42: #{em_mask_generator.6} parent=35 // pred_check_branch
        %854 = sbr.rel (%p852) target = $region44
      $region43: #{em_mask_generator.6} parent=35 // pred_region
        %s855 = smul.u32 2, %s22
      $region44: #{em_mask_generator.6} parent=35 // pred_fallthru
        _
      // Predicated region
      $region45: #{em_mask_generator.6} parent=35 // pred_check
        %p856 = pneg %p187
      $region46: #{em_mask_generator.6} parent=35 // pred_check_branch
        %858 = sbr.rel (%p856) target = $region48
      $region47: #{em_mask_generator.6} parent=35 // pred_region
        _
      $region48: #{em_mask_generator.6} parent=35 // pred_fallthru
        _
    $region36: #{em_mask_generator.6} parent=5 // pred_fallthru
      _
    %p859 = scmp.le.s32.totalorder 2, %s12
    // Predicated region
    $region49: #{em_mask_generator.6} parent=5 // pred_check
      %p860 = pneg %p859
    $region50: #{em_mask_generator.6} parent=5 // pred_check_branch
      %862 = sbr.rel (%p860) target = $region52
    $region51: #{em_mask_generator.6} parent=5 // pred_region
      %s863 = ssub.s32 %s12, 2
      // Predicated region
      $region53: #{em_mask_generator.6} parent=51 // pred_check
        %p864 = pneg %p167
      $region54: #{em_mask_generator.6} parent=51 // pred_check_branch
        %866 = sbr.rel (%p864) target = $region56
      $region55: #{em_mask_generator.6} parent=51 // pred_region
        %s867 = smul.u32 2, %s24
        %p868 = scmp.lt.s32.totalorder %s23, 1
        %s869 = scalar_select %p868, %s23, 1
        %p870 = scmp.lt.s32.totalorder %s867, 1
        %s871 = scalar_select %p870, %s867, 1
        %s872 = smul.addr %s869, 2
        %s873 = sadd.s32 %s871, %s872
        %s874 = smul.addr %s873, 4
        %s875 = scalar_lea.vmem %s4, %s874
      $region56: #{em_mask_generator.6} parent=51 // pred_fallthru
        _
      // Predicated region
      $region57: #{em_mask_generator.6} parent=51 // pred_check
        %p876 = pneg %p193
      $region58: #{em_mask_generator.6} parent=51 // pred_check_branch
        %878 = sbr.rel (%p876) target = $region60
      $region59: #{em_mask_generator.6} parent=51 // pred_region
        %p879 = scmp.lt.s32.totalorder %s23, 1
        %s880 = scalar_select %p879, %s23, 1
        %s881 = smul.addr %s880, 4
        %s882 = smul.addr %s881, 8
        %s883 = scalar_lea.vmem %s5, %s882
      $region60: #{em_mask_generator.6} parent=51 // pred_fallthru
        _
    $region52: #{em_mask_generator.6} parent=5 // pred_fallthru
      _
  $region6: #{em_mask_generator.6} parent=0 // loop_footer
    %s16 = sadd.s32 1, %s12
  $region7: #{em_mask_generator.6} parent=0 // loop_footer_branch
    %11 = sbr.rel target = $region3
  $region8: #{em_mask_generator.6} parent=0 // loop_exit
    _

// kernel: custom-call.65
$region0: #{custom-call.65}
  %s0 = inlined_call_operand.vmem [shape: f32[2,4,3,3], index: 0, kind: input, shape index: {}]
  %s1 = inlined_call_operand.vmem [shape: f32[2,4,3,3], index: 1, kind: output, shape index: {0}]
  %s2 = inlined_call_operand.hbm [shape: s32[2,4,3], index: 2, kind: output, shape index: {1}]
  %s3 = inlined_call_operand.vmem [shape: s32[2,4,3], index: 3, kind: output, shape index: {2}]
  %4 = xla_tuple %s1, %s2, %s3
  $region1: #{custom-call.65} parent=0
    #allocation0 [shape = 'u8[4096]{0}', space=vmem, size = 0x1000, scoped, tag = 'operand span for operand 0']
    #allocation1 [shape = 'u8[4096]{0}', space=vmem, size = 0x1000, scoped, tag = 'packed  for operand 0']
    #allocation2 [shape = 'u8[4096]{0}', space=vmem, size = 0x1000, scoped, tag = 'operand span for operand 1']
    #allocation3 [shape = 'u8[4096]{0}', space=vmem, size = 0x1000, scoped, tag = 'packed  for operand 1']
    #allocation4 [shape = 'u8[4096]{0}', space=vmem, size = 0x1000, scoped, tag = 'operand span for operand 2']
    #allocation5 [shape = 'u8[4096]{0}', space=vmem, size = 0x1000, scoped, tag = 'packed  for operand 2']
    #allocation6 [shape = 's32[2]{0}', space=sflag, size = 0x8, scoped, tag = 'scoped memory for custom-call.65']
    #allocation7 [shape = 'u8[4096]{0}', space=vmem, size = 0x1000, scoped, tag = 'operand span for operand 3']
    #allocation8 [shape = 'u8[4096]{0}', space=vmem, size = 0x1000, scoped, tag = 'packed  for operand 3']
    %5 = vsyncpa [#allocation6], 0
    %s6 = scalar_lea.sflag [#allocation6], 1
    %7 = vsyncpa %s6, 0
    loop: start=0, step=1, limit=10
    $region2: #{custom-call.65} parent=1 // loop_pre_header
      _
    $region3: #{custom-call.65} parent=1 // loop_header
      %s9 = sphi 0, %s13
      %p10 = scmp.ge.s32.totalorder %s9, 10
      %s16 = sphi 0, %s28
      %s17 = sphi 0, %s24
      %s18 = sphi 0, %s16
      %s19 = sphi 0, %s17
      %s20 = sphi 0, %s18
      %s21 = sphi 0, %s19
      %s35 = sphi 0, %s37
      %s38 = sphi 0, %s35
      %s39 = sphi 0, %s38
      %s55 = sphi 0, %s39
      %s65 = sphi 0, %s67
      %s68 = sphi 0, %s65
      %s69 = sphi 0, %s68
      %s85 = sphi 0, %s69
    $region4: #{custom-call.65} parent=1 // loop_header_branch
      %12 = sbr.rel (%p10) target = $region8
    $region5: #{custom-call.65} parent=1 // loop_body
      %s14 = ssub.s32 %s9, 1
      %s15 = ssub.s32 %s9, 2
      %s22 = sadd.s32 1, %s17
      %p23 = scmp.ge.s32.totalorder %s22, 4
      %s24 = scalar_select %p23, 0, %s22
      %s25 = sadd.s32 1, %s16
      %s26 = scalar_select %p23, %s25, %s16
      %p27 = scmp.ge.s32.totalorder %s26, 2
      %s28 = scalar_select %p27, 0, %s26
      %s29 = sshrl.u32 %s17, 3
      %s30 = sshrl.u32 %s24, 3
      %s31 = ssub.s32 %s16, %s28
      %s32 = ssub.s32 %s29, %s30
      %s33 = sor.u32 %s31, %s32
      %p34 = scmp.eq.s32.totalorder %s33, 0
      %s36 = sadd.s32 %s35, 1
      %s37 = scalar_select %p34, %s35, %s36
      %p40 = pneg %p34
      %p41 = scmp.eq.s32.totalorder %s9, 7
      %p42 = por %p40, %p41
      %p43 = scmp.ne.s32.totalorder %s35, %s38
      %p44 = scmp.eq.s32.totalorder %s9, 0
      %p45 = por %p43, %p44
      %p46 = scmp.ne.s32.totalorder %s35, %s38
      %p47 = scmp.eq.s32.totalorder %s14, 7
      %p48 = por %p46, %p47
      %p49 = scmp.ne.s32.totalorder %s38, %s39
      %p50 = scmp.eq.s32.totalorder %s14, 0
      %p51 = por %p49, %p50
      %p52 = scmp.ne.s32.totalorder %s38, %s39
      %p53 = scmp.eq.s32.totalorder %s15, 7
      %p54 = por %p52, %p53
      %p56 = scmp.ne.s32.totalorder %s39, %s55
      %p57 = scmp.eq.s32.totalorder %s15, 0
      %p58 = por %p56, %p57
      %s59 = sshrl.u32 %s17, 3
      %s60 = sshrl.u32 %s24, 3
      %s61 = ssub.s32 %s16, %s28
      %s62 = ssub.s32 %s59, %s60
      %s63 = sor.u32 %s61, %s62
      %p64 = scmp.eq.s32.totalorder %s63, 0
      %s66 = sadd.s32 %s65, 1
      %s67 = scalar_select %p64, %s65, %s66
      %p70 = pneg %p64
      %p71 = scmp.eq.s32.totalorder %s9, 7
      %p72 = por %p70, %p71
      %p73 = scmp.ne.s32.totalorder %s65, %s68
      %p74 = scmp.eq.s32.totalorder %s9, 0
      %p75 = por %p73, %p74
      %p76 = scmp.ne.s32.totalorder %s65, %s68
      %p77 = scmp.eq.s32.totalorder %s14, 7
      %p78 = por %p76, %p77
      %p79 = scmp.ne.s32.totalorder %s68, %s69
      %p80 = scmp.eq.s32.totalorder %s14, 0
      %p81 = por %p79, %p80
      %p82 = scmp.ne.s32.totalorder %s68, %s69
      %p83 = scmp.eq.s32.totalorder %s15, 7
      %p84 = por %p82, %p83
      %p86 = scmp.ne.s32.totalorder %s69, %s85
      %p87 = scmp.eq.s32.totalorder %s15, 0
      %p88 = por %p86, %p87
      %p89 = scmp.le.s32.totalorder 1, %s9
      %p90 = scmp.lt.s32.totalorder %s9, 9
      %p91 = pnand %p89, %p90
      %p92 = pneg %p91
      // Predicated region
      $region9: #{custom-call.65} parent=5 // pred_check
        _
      $region10: #{custom-call.65} parent=5 // pred_check_branch
        %94 = sbr.rel (%p91) target = $region12
      $region11: #{custom-call.65} parent=5 // pred_region
        %s95 = ssub.s32 %s9, 1
      $region12: #{custom-call.65} parent=5 // pred_fallthru
        _
      %p96 = scmp.lt.s32.totalorder %s9, 8
      // Predicated region
      $region13: #{custom-call.65} parent=5 // pred_check
        %p97 = pneg %p96
      $region14: #{custom-call.65} parent=5 // pred_check_branch
        %99 = sbr.rel (%p97) target = $region16
      $region15: #{custom-call.65} parent=5 // pred_region
        %s100 = sand.u32 %s9, 1
        %s101 = sand.u32 %s9, 1
        %s102 = smul.addr %s101, 4
        %s103 = scalar_lea.vmem [#allocation1], %s102
        %s104 = smul.addr %s16, 4
        %s105 = sadd.s32 %s17, %s104
        %s106 = smul.addr %s105, 4
        %s107 = scalar_lea.vmem %s0, %s106
        // Predicated region
        $region17: #{custom-call.65} parent=15 // pred_check
          _
        $region18: #{custom-call.65} parent=15 // pred_check_branch
          %109 = sbr.rel (0) target = $region20
        $region19: #{custom-call.65} parent=15 // pred_region
          // Predicated region
          $region21: #{custom-call.65} parent=19 // pred_check
            _
          $region22: #{custom-call.65} parent=19 // pred_check_branch
            %111 = sbr.rel target = $region24
          $region23: #{custom-call.65} parent=19 // pred_region
            // Predicated region
            $region36: #{custom-call.65} parent=23 // pred_check
              _
            $region37: #{custom-call.65} parent=23 // pred_check_branch
              %127 = sbr.rel (0) target = $region39
            $region38: #{custom-call.65} parent=23 // pred_region
              %s129 = ssub.s32 16, 1
              loop: start=0, step=1, limit=1
              $region40: #{custom-call.65} parent=38 // loop_pre_header
                _
              $region41: #{custom-call.65} parent=38 // loop_header
                %s131 = sphi 0, %s135
                %p132 = scmp.ge.s32.totalorder %s131, 1
                %s136 = sphi %s107, %s107
                %s137 = sphi %s103, %s103
              $region42: #{custom-call.65} parent=38 // loop_header_branch
                %134 = sbr.rel (%p132) target = $region46
              $region43: #{custom-call.65} parent=38 // loop_body
                %v138 = vld [vmem:[%s136] sm:%s129]
                %139 = vst [vmem:[%s137] sm:%s129] %v138
              $region44: #{custom-call.65} parent=38 // loop_footer
                %s135 = sadd.s32 1, %s131
              $region45: #{custom-call.65} parent=38 // loop_footer_branch
                %130 = sbr.rel target = $region41
              $region46: #{custom-call.65} parent=38 // loop_exit
                _
            $region39: #{custom-call.65} parent=23 // pred_fallthru
              _
          $region24: #{custom-call.65} parent=19 // pred_fallthru
            _
          // Predicated region
          $region25: #{custom-call.65} parent=19 // pred_check
            _
          $region26: #{custom-call.65} parent=19 // pred_check_branch
            %113 = sbr.rel (0) target = $region28
          $region27: #{custom-call.65} parent=19 // pred_region
            %s115 = ssub.s32 16, 1
            loop: start=0, step=1, limit=1
            $region29: #{custom-call.65} parent=27 // loop_pre_header
              _
            $region30: #{custom-call.65} parent=27 // loop_header
              %s117 = sphi 0, %s121
              %p118 = scmp.ge.s32.totalorder %s117, 1
              %s122 = sphi %s107, %s107
              %s123 = sphi %s103, %s103
            $region31: #{custom-call.65} parent=27 // loop_header_branch
              %120 = sbr.rel (%p118) target = $region35
            $region32: #{custom-call.65} parent=27 // loop_body
              %v124 = vld [vmem:[%s122] sm:%s115]
              %125 = vst [vmem:[%s123] sm:%s115] %v124
            $region33: #{custom-call.65} parent=27 // loop_footer
              %s121 = sadd.s32 1, %s117
            $region34: #{custom-call.65} parent=27 // loop_footer_branch
              %116 = sbr.rel target = $region30
            $region35: #{custom-call.65} parent=27 // loop_exit
              _
          $region28: #{custom-call.65} parent=19 // pred_fallthru
            _
        $region20: #{custom-call.65} parent=15 // pred_fallthru
          _
        %140 = vnop
      $region16: #{custom-call.65} parent=5 // pred_fallthru
        _
      %p141 = scmp.le.s32.totalorder 1, %s9
      %p142 = scmp.lt.s32.totalorder %s9, 9
      %p143 = pnand %p141, %p142
      %p144 = pneg %p143
      // Predicated region
      $region47: #{custom-call.65} parent=5 // pred_check
        _
      $region48: #{custom-call.65} parent=5 // pred_check_branch
        %146 = sbr.rel (%p143) target = $region50
      $region49: #{custom-call.65} parent=5 // pred_region
        #allocation9 [shape = 's32[3,128]{1,0}', space=vmem, size = 0x1000, scoped, tag = 'scratch for permutations']
        %s147 = ssub.s32 %s9, 1
        %s148 = sand.u32 %s14, 1
        %s149 = sand.u32 %s14, 1
        %s150 = smul.addr %s149, 4
        %s151 = scalar_lea.vmem [#allocation1], %s150
        %s152 = sand.u32 %s14, 1
        %s153 = sand.u32 %s14, 1
        %s154 = smul.addr %s153, 4
        %s155 = scalar_lea.vmem [#allocation1], %s154
        %s156 = sand.u32 %s14, 1
        %s157 = sand.u32 %s14, 1
        %s158 = smul.addr %s157, 4
        %s159 = scalar_lea.vmem [#allocation3], %s158
        %p160 = pneg %p51
        %p161 = pneg %p48
        %s162 = sand.u32 %s38, 1
        %s163 = scalar_lea.sflag [#allocation6], %s162
        %s164 = sand.u32 %s38, 1
        %s165 = smul.addr %s164, 4
        %s166 = scalar_lea.vmem [#allocation5], %s165
        %p167 = pneg %p81
        %p168 = pneg %p78
        %s169 = sand.u32 %s68, 1
        %s170 = sand.u32 %s68, 1
        %s171 = smul.addr %s170, 4
        %s172 = scalar_lea.vmem [#allocation8], %s171
        %s174 = sshll.u32 1, 4
        %s175 = ssub.s32 %s174, 1
        %v176 = vld [vmem:[%s155] sm:%s175]
        %177 = vst [vmem:[#allocation0] sm:%s175] %v176
        %s178 = sshrl.u32 %s19, 3
        %s179 = sshrl.u32 %s19, 3
        %v180 = vld [vmem:[#allocation0] sm:$0xff]
        %181 = vst [vmem:[#allocation2] sm:$0xff] %v180
        %s182 = sand.u32 %s19, 7
        %s183 = scalar_lea.vmem [#allocation4], %s182
        %s184 = sand.u32 %s19, 7
        %s185 = scalar_lea.vmem [#allocation7], %s184
        %186 = vst [vmem:[%s183] sm:$0x1] 0
        %v187 = vlaneseq
        %v188 = vshrl.u32 %v187, 7
        %v189 = vmov %v188
        %191 = vst [vmem:[#allocation9] sm:$0xff] %v189
        loop: start=0, step=1, limit=3
        $region52: #{custom-call.65} parent=49 // loop_pre_header
          _
        $region53: #{custom-call.65} parent=49 // loop_header
          %s193 = sphi 0, %s197
          %p194 = scmp.ge.s32.totalorder %s193, 3
        $region54: #{custom-call.65} parent=49 // loop_header_branch
          %196 = sbr.rel (%p194) target = $region58
        $region55: #{custom-call.65} parent=49 // loop_body
          %v198 = vstv %s193
          %v199 = vlaneseq
          %v200 = vshrl.u32 %v199, 7
          %v201 = vmov %v200
          %v202 = vld [vmem:[#allocation2] sm:$0xff]
          %v203 = vand.u32 2147483647, %v202
          %v205 = vstv %s193
          %vm206 = vcmp.ge.s32.totalorder %v201, %v205
          %vm207 = vcmp.lt.s32.totalorder %v201, 3
          %vm208 = vmand %vm206, %vm207
          %vm209 = vcmp.lt.f32.partialorder -inf, %v203
          %vm210 = vmand %vm208, %vm209
          %v211 = vsel %vm210, %v201, %v198
          %v212 = vsel %vm210, %v203, -inf
          %v213 = vrot.slane %v212, 1
          %v214 = vrot.slane %v211, 1
          %vm215 = vcmp.ge.f32.partialorder %v213, %v212
          %v216 = vsel %vm215, %v213, %v212
          %v217 = vsel %vm215, %v214, %v211
          %v218 = vrot.slane %v213, 1
          %v219 = vrot.slane %v214, 1
          %vm220 = vcmp.ge.f32.partialorder %v218, %v216
          %v221 = vsel %vm220, %v218, %v216
          %v222 = vsel %vm220, %v219, %v217
          %v223 = vrot.slane %v218, 1
          %v224 = vrot.slane %v219, 1
          %vm225 = vcmp.ge.f32.partialorder %v223, %v221
          %v226 = vsel %vm225, %v223, %v221
          %v227 = vsel %vm225, %v224, %v222
          %v228 = vrot.slane %v223, 1
          %v229 = vrot.slane %v224, 1
          %vm230 = vcmp.ge.f32.partialorder %v228, %v226
          %v231 = vsel %vm230, %v228, %v226
          %v232 = vsel %vm230, %v229, %v227
          %v233 = vrot.slane %v228, 1
          %v234 = vrot.slane %v229, 1
          %vm235 = vcmp.ge.f32.partialorder %v233, %v231
          %v236 = vsel %vm235, %v233, %v231
          %v237 = vsel %vm235, %v234, %v232
          %v238 = vrot.slane %v233, 1
          %v239 = vrot.slane %v234, 1
          %vm240 = vcmp.ge.f32.partialorder %v238, %v236
          %v241 = vsel %vm240, %v238, %v236
          %v242 = vsel %vm240, %v239, %v237
          %v243 = vrot.slane %v238, 1
          %v244 = vrot.slane %v239, 1
          %vm245 = vcmp.ge.f32.partialorder %v243, %v241
          %v246 = vsel %vm245, %v243, %v241
          %v247 = vsel %vm245, %v244, %v242
          %s248 = ssub.s32 128, %s193
          %249 = vrot.lane.b32.xlu0 %v247, %s248
          %v250 = vpop.permute.xlu0 %249
          %s251 = vtos %v250
          %v252 = vstv %s193
          %v253 = vlaneseq
          %v254 = vand.u32 %v253, 127
          %vm255 = vcmp.eq.s32.totalorder %v254, %v252
          %v256 = vstv %s251
          %v257 = vld [vmem:[%s183] ss:$0 sm:$0xff]
          %v258 = vsel %vm255, %v256, %v257
          %259 = vst [vmem:[%s183] sm:$0x1] %v258
          %s260 = scalar_lea.vmem [#allocation2], %s193
          %s261 = scalar_lea.vmem [#allocation2], %s251
          %v262 = vld [vmem:[%s260] ss:$0 sm:$0xff]
          %v263 = vld [vmem:[%s261] ss:$0 sm:$0xff]
          %264 = vst [vmem:[%s261] sm:$0x1] %v262
          %265 = vst [vmem:[%s260] sm:$0x1] %v263
          %s266 = scalar_lea.vmem [#allocation9], %s193
          %s267 = scalar_lea.vmem [#allocation9], %s251
          %v268 = vld [vmem:[%s266] ss:$0 sm:$0xff]
          %v269 = vld [vmem:[%s267] ss:$0 sm:$0xff]
          %270 = vst [vmem:[%s267] sm:$0x1] %v268
          %271 = vst [vmem:[%s266] sm:$0x1] %v269
          %vm272 = vcmp.ne.f32.partialorder %v263, 0.0
          %vm273 = vmand %vm255, %vm272
          %v274 = vsel %vm273, %v263, 1.0
          %v275 = vlaneseq
          %v276 = vand.u32 %v275, 127
          %v277 = vstv %s193
          %vm278 = vcmp.gt.s32.totalorder %v276, %v277
          %v279 = vsel %vm278, %v263, 0.0
          %v280 = vlaneseq
          %v281 = vshrl.u32 %v280, 7
          %v282 = vmov %v281
          %v283 = vld [vmem:[#allocation2] sm:$0xff]
          %v285 = vstv %s193
          %vm286 = vcmp.gt.s32.totalorder %v282, %v285
          %v287 = vsel %vm286, %v274, 1.0
          %v288 = vrcp.pop %v287
          %v289 = vmul.f32 %v283, %v288
          %vm290 = vmand %vm286, %vm255
          %v291 = vsel %vm290, %v289, 0.0
          %292 = vadd.xlane.f32.xlu0 %v291
          %v293 = vpop.xlane.xlu0 %292
          %v294 = vmul.f32 %v293, %v279
          %v295 = vsub.f32 %v289, %v294
          %296 = vst [vmem:[#allocation2] sm:$0xff] %v295
        $region56: #{custom-call.65} parent=49 // loop_footer
          %s197 = sadd.s32 1, %s193
        $region57: #{custom-call.65} parent=49 // loop_footer_branch
          %192 = sbr.rel target = $region53
        $region58: #{custom-call.65} parent=49 // loop_exit
          _
        %v297 = vld [vmem:[#allocation9] sm:$0xff]
        %s298 = scalar_lea.vmem [#allocation9], 8
        %s299 = scalar_lea.vmem [#allocation9], 16
        %s300 = scalar_lea.vmem [#allocation9], 24
        %s301 = scalar_lea.vmem [#allocation9], 32
        %s302 = scalar_lea.vmem [#allocation9], 40
        %s303 = scalar_lea.vmem [#allocation9], 48
        %s304 = scalar_lea.vmem [#allocation9], 56
        %s305 = scalar_lea.vmem [#allocation9], 64
        %s306 = scalar_lea.vmem [#allocation9], 72
        %s307 = scalar_lea.vmem [#allocation9], 80
        %s308 = scalar_lea.vmem [#allocation9], 88
        %s309 = scalar_lea.vmem [#allocation9], 96
        %s310 = scalar_lea.vmem [#allocation9], 104
        %s311 = scalar_lea.vmem [#allocation9], 112
        %s312 = scalar_lea.vmem [#allocation9], 120
        %313 = vxpose.xlu0.b32.start [1/16] %v297, 128
        %314 = vxpose.xlu0.b32.cont [2/16] 0, 128
        %315 = vxpose.xlu0.b32.cont [3/16] 0, 128
        %316 = vxpose.xlu0.b32.cont [4/16] 0, 128
        %317 = vxpose.xlu0.b32.cont [5/16] 0, 128
        %318 = vxpose.xlu0.b32.cont [6/16] 0, 128
        %319 = vxpose.xlu0.b32.cont [7/16] 0, 128
        %320 = vxpose.xlu0.b32.cont [8/16] 0, 128
        %321 = vxpose.xlu0.b32.cont [9/16] 0, 128
        %322 = vxpose.xlu0.b32.cont [10/16] 0, 128
        %323 = vxpose.xlu0.b32.cont [11/16] 0, 128
        %324 = vxpose.xlu0.b32.cont [12/16] 0, 128
        %325 = vxpose.xlu0.b32.cont [13/16] 0, 128
        %326 = vxpose.xlu0.b32.cont [14/16] 0, 128
        %327 = vxpose.xlu0.b32.cont [15/16] 0, 128
        %328 = vxpose.xlu0.b32.end [16/16] 0, 128
        %v329 = vpop.trf.xlu0
        %v330 = vpop.trf.xlu0
        %v331 = vpop.trf.xlu0
        %v332 = vpop.trf.xlu0
        %v333 = vpop.trf.xlu0
        %v334 = vpop.trf.xlu0
        %v335 = vpop.trf.xlu0
        %v336 = vpop.trf.xlu0
        %v337 = vpop.trf.xlu0
        %v338 = vpop.trf.xlu0
        %v339 = vpop.trf.xlu0
        %v340 = vpop.trf.xlu0
        %v341 = vpop.trf.xlu0
        %v342 = vpop.trf.xlu0
        %v343 = vpop.trf.xlu0
        %v344 = vpop.trf.xlu0
        %345 = vst [vmem:[%s185] sm:$0x1] %v329
        %s347 = sshll.u32 1, 4
        %s348 = ssub.s32 %s347, 1
        %v350 = vld [vmem:[#allocation2] sm:%s348]
        %s351 = sshll.u32 1, 4
        %s352 = ssub.s32 %s351, 1
        %353 = vst [vmem:[%s159] sm:%s352] %v350
        %s355 = sshll.u32 1, 4
        %s356 = ssub.s32 %s355, 1
        %v358 = vld [vmem:[#allocation4] sm:%s356]
        %s359 = sshll.u32 1, 4
        %s360 = ssub.s32 %s359, 1
        %361 = vst [vmem:[%s166] sm:%s360] %v358
        %s363 = sshll.u32 1, 4
        %s364 = ssub.s32 %s363, 1
        %v366 = vld [vmem:[#allocation7] sm:%s364]
        %s367 = sshll.u32 1, 4
        %s368 = ssub.s32 %s367, 1
        %369 = vst [vmem:[%s172] sm:%s368] %v366
        %s370 = sand.u32 %s14, 1
        %s371 = sand.u32 %s14, 1
        %s372 = smul.addr %s371, 4
        %s373 = scalar_lea.vmem [#allocation3], %s372
        %s374 = sand.u32 %s38, 1
        %s375 = scalar_lea.sflag [#allocation6], %s374
        %s376 = sand.u32 %s38, 1
        %s377 = smul.addr %s376, 4
        %s378 = scalar_lea.vmem [#allocation5], %s377
        %s379 = sand.u32 %s68, 1
        %s380 = sand.u32 %s68, 1
        %s381 = smul.addr %s380, 4
        %s382 = scalar_lea.vmem [#allocation8], %s381
        %s383 = smul.addr %s18, 4
        %s384 = sadd.s32 %s19, %s383
        %s385 = smul.addr %s384, 4
        %s386 = scalar_lea.vmem %s1, %s385
        // Predicated region
        $region59: #{custom-call.65} parent=49 // pred_check
          _
        $region60: #{custom-call.65} parent=49 // pred_check_branch
          %388 = sbr.rel (0) target = $region62
        $region61: #{custom-call.65} parent=49 // pred_region
          // Predicated region
          $region63: #{custom-call.65} parent=61 // pred_check
            _
          $region64: #{custom-call.65} parent=61 // pred_check_branch
            %390 = sbr.rel target = $region66
          $region65: #{custom-call.65} parent=61 // pred_region
            // Predicated region
            $region78: #{custom-call.65} parent=65 // pred_check
              _
            $region79: #{custom-call.65} parent=65 // pred_check_branch
              %406 = sbr.rel (0) target = $region81
            $region80: #{custom-call.65} parent=65 // pred_region
              %s408 = ssub.s32 16, 1
              loop: start=0, step=1, limit=1
              $region82: #{custom-call.65} parent=80 // loop_pre_header
                _
              $region83: #{custom-call.65} parent=80 // loop_header
                %s410 = sphi 0, %s414
                %p411 = scmp.ge.s32.totalorder %s410, 1
                %s415 = sphi %s373, %s373
                %s416 = sphi %s386, %s386
              $region84: #{custom-call.65} parent=80 // loop_header_branch
                %413 = sbr.rel (%p411) target = $region88
              $region85: #{custom-call.65} parent=80 // loop_body
                %v417 = vld [vmem:[%s415] sm:%s408]
                %418 = vst [vmem:[%s416] sm:%s408] %v417
              $region86: #{custom-call.65} parent=80 // loop_footer
                %s414 = sadd.s32 1, %s410
              $region87: #{custom-call.65} parent=80 // loop_footer_branch
                %409 = sbr.rel target = $region83
              $region88: #{custom-call.65} parent=80 // loop_exit
                _
            $region81: #{custom-call.65} parent=65 // pred_fallthru
              _
          $region66: #{custom-call.65} parent=61 // pred_fallthru
            _
          // Predicated region
          $region67: #{custom-call.65} parent=61 // pred_check
            _
          $region68: #{custom-call.65} parent=61 // pred_check_branch
            %392 = sbr.rel (0) target = $region70
          $region69: #{custom-call.65} parent=61 // pred_region
            %s394 = ssub.s32 16, 1
            loop: start=0, step=1, limit=1
            $region71: #{custom-call.65} parent=69 // loop_pre_header
              _
            $region72: #{custom-call.65} parent=69 // loop_header
              %s396 = sphi 0, %s400
              %p397 = scmp.ge.s32.totalorder %s396, 1
              %s401 = sphi %s373, %s373
              %s402 = sphi %s386, %s386
            $region73: #{custom-call.65} parent=69 // loop_header_branch
              %399 = sbr.rel (%p397) target = $region77
            $region74: #{custom-call.65} parent=69 // loop_body
              %v403 = vld [vmem:[%s401] sm:%s394]
              %404 = vst [vmem:[%s402] sm:%s394] %v403
            $region75: #{custom-call.65} parent=69 // loop_footer
              %s400 = sadd.s32 1, %s396
            $region76: #{custom-call.65} parent=69 // loop_footer_branch
              %395 = sbr.rel target = $region72
            $region77: #{custom-call.65} parent=69 // loop_exit
              _
          $region70: #{custom-call.65} parent=61 // pred_fallthru
            _
        $region62: #{custom-call.65} parent=49 // pred_fallthru
          _
        %419 = vnop
        // Predicated region
        $region89: #{custom-call.65} parent=49 // pred_check
          %p420 = pneg %p48
        $region90: #{custom-call.65} parent=49 // pred_check_branch
          %422 = sbr.rel (%p420) target = $region92
        $region91: #{custom-call.65} parent=49 // pred_region
          %s423 = sshrl.u32 %s19, 3
          %s425 = ssub.s32 64, 64
          %426 = vsyncadd %s375, %s425
          %s427 = sadd.s32 %s423, %s18
          %s428 = smul.addr %s427, 64
          %s429 = scalar_lea.hbm %s2, %s428
          %s431 = sshll.u32 %s378, 4
          %s432 = int_to_ptr.vmem [resolvable:$true] %s431
          %434 = dma.vmem_to_hbm [thread:$0]  %s432, 64, %s429, %s375
        $region92: #{custom-call.65} parent=49 // pred_fallthru
          _
        // Predicated region
        $region93: #{custom-call.65} parent=49 // pred_check
          %p435 = pneg %p78
        $region94: #{custom-call.65} parent=49 // pred_check_branch
          %437 = sbr.rel (%p435) target = $region96
        $region95: #{custom-call.65} parent=49 // pred_region
          %s438 = sshrl.u32 %s19, 3
          %s439 = sadd.s32 %s438, %s18
          %s440 = smul.addr %s439, 4
          %s441 = scalar_lea.vmem %s3, %s440
          // Predicated region
          $region97: #{custom-call.65} parent=95 // pred_check
            _
          $region98: #{custom-call.65} parent=95 // pred_check_branch
            %443 = sbr.rel (0) target = $region100
          $region99: #{custom-call.65} parent=95 // pred_region
            // Predicated region
            $region101: #{custom-call.65} parent=99 // pred_check
              _
            $region102: #{custom-call.65} parent=99 // pred_check_branch
              %445 = sbr.rel target = $region104
            $region103: #{custom-call.65} parent=99 // pred_region
              // Predicated region
              $region116: #{custom-call.65} parent=103 // pred_check
                _
              $region117: #{custom-call.65} parent=103 // pred_check_branch
                %461 = sbr.rel (0) target = $region119
              $region118: #{custom-call.65} parent=103 // pred_region
                %s463 = ssub.s32 16, 1
                loop: start=0, step=1, limit=1
                $region120: #{custom-call.65} parent=118 // loop_pre_header
                  _
                $region121: #{custom-call.65} parent=118 // loop_header
                  %s465 = sphi 0, %s469
                  %p466 = scmp.ge.s32.totalorder %s465, 1
                  %s470 = sphi %s382, %s382
                  %s471 = sphi %s441, %s441
                $region122: #{custom-call.65} parent=118 // loop_header_branch
                  %468 = sbr.rel (%p466) target = $region126
                $region123: #{custom-call.65} parent=118 // loop_body
                  %v472 = vld [vmem:[%s470] sm:%s463]
                  %473 = vst [vmem:[%s471] sm:%s463] %v472
                $region124: #{custom-call.65} parent=118 // loop_footer
                  %s469 = sadd.s32 1, %s465
                $region125: #{custom-call.65} parent=118 // loop_footer_branch
                  %464 = sbr.rel target = $region121
                $region126: #{custom-call.65} parent=118 // loop_exit
                  _
              $region119: #{custom-call.65} parent=103 // pred_fallthru
                _
            $region104: #{custom-call.65} parent=99 // pred_fallthru
              _
            // Predicated region
            $region105: #{custom-call.65} parent=99 // pred_check
              _
            $region106: #{custom-call.65} parent=99 // pred_check_branch
              %447 = sbr.rel (0) target = $region108
            $region107: #{custom-call.65} parent=99 // pred_region
              %s449 = ssub.s32 16, 1
              loop: start=0, step=1, limit=1
              $region109: #{custom-call.65} parent=107 // loop_pre_header
                _
              $region110: #{custom-call.65} parent=107 // loop_header
                %s451 = sphi 0, %s455
                %p452 = scmp.ge.s32.totalorder %s451, 1
                %s456 = sphi %s382, %s382
                %s457 = sphi %s441, %s441
              $region111: #{custom-call.65} parent=107 // loop_header_branch
                %454 = sbr.rel (%p452) target = $region115
              $region112: #{custom-call.65} parent=107 // loop_body
                %v458 = vld [vmem:[%s456] sm:%s449]
                %459 = vst [vmem:[%s457] sm:%s449] %v458
              $region113: #{custom-call.65} parent=107 // loop_footer
                %s455 = sadd.s32 1, %s451
              $region114: #{custom-call.65} parent=107 // loop_footer_branch
                %450 = sbr.rel target = $region110
              $region115: #{custom-call.65} parent=107 // loop_exit
                _
            $region108: #{custom-call.65} parent=99 // pred_fallthru
              _
          $region100: #{custom-call.65} parent=95 // pred_fallthru
            _
          %474 = vnop
        $region96: #{custom-call.65} parent=49 // pred_fallthru
          _
      $region50: #{custom-call.65} parent=5 // pred_fallthru
        _
      %p475 = scmp.le.s32.totalorder 2, %s9
      // Predicated region
      $region127: #{custom-call.65} parent=5 // pred_check
        %p476 = pneg %p475
      $region128: #{custom-call.65} parent=5 // pred_check_branch
        %478 = sbr.rel (%p476) target = $region130
      $region129: #{custom-call.65} parent=5 // pred_region
        %s479 = ssub.s32 %s9, 2
        %s480 = sand.u32 %s15, 1
        %s481 = sand.u32 %s15, 1
        %s482 = smul.addr %s481, 4
        %s483 = scalar_lea.vmem [#allocation3], %s482
        // Predicated region
        $region131: #{custom-call.65} parent=129 // pred_check
          %p484 = pneg %p54
        $region132: #{custom-call.65} parent=129 // pred_check_branch
          %486 = sbr.rel (%p484) target = $region134
        $region133: #{custom-call.65} parent=129 // pred_region
          %s487 = sand.u32 %s39, 1
          %s488 = scalar_lea.sflag [#allocation6], %s487
          %s489 = sand.u32 %s39, 1
          %s490 = smul.addr %s489, 4
          %s491 = scalar_lea.vmem [#allocation5], %s490
          %492 = dma.done %s488, 64
        $region134: #{custom-call.65} parent=129 // pred_fallthru
          _
        // Predicated region
        $region135: #{custom-call.65} parent=129 // pred_check
          %p493 = pneg %p84
        $region136: #{custom-call.65} parent=129 // pred_check_branch
          %495 = sbr.rel (%p493) target = $region138
        $region137: #{custom-call.65} parent=129 // pred_region
          %s496 = sand.u32 %s69, 1
          %s497 = sand.u32 %s69, 1
          %s498 = smul.addr %s497, 4
          %s499 = scalar_lea.vmem [#allocation8], %s498
        $region138: #{custom-call.65} parent=129 // pred_fallthru
          _
      $region130: #{custom-call.65} parent=5 // pred_fallthru
        _
    $region6: #{custom-call.65} parent=1 // loop_footer
      %s13 = sadd.s32 1, %s9
    $region7: #{custom-call.65} parent=1 // loop_footer_branch
      %8 = sbr.rel target = $region3
    $region8: #{custom-call.65} parent=1 // loop_exit
      _
    %500 = vsyncpa [#allocation6], 1
    %s501 = scalar_lea.sflag [#allocation6], 1
    %502 = vsyncpa %s501, 1

// kernel: custom-call.68
$region0: #{custom-call.68}
  %s0 = inlined_call_operand.vmem [shape: f32[2,4,1,3,3], index: 0, kind: input, shape index: {}]
  %s1 = inlined_call_operand.vmem [shape: f32[2,4,1,3,3], index: 1, kind: output, shape index: {}]
  $region1: #{custom-call.68} parent=0
    #allocation0 [shape = 'u8[4096]{0}', space=vmem, size = 0x1000, scoped, tag = 'operand span for operand 0']
    #allocation1 [shape = 'u8[4096]{0}', space=vmem, size = 0x1000, scoped, tag = 'packed  for operand 0']
    #allocation2 [shape = 'u8[4096]{0}', space=vmem, size = 0x1000, scoped, tag = 'operand span for operand 1']
    #allocation3 [shape = 'u8[4096]{0}', space=vmem, size = 0x1000, scoped, tag = 'packed  for operand 1']
    loop: start=0, step=1, limit=10
    $region2: #{custom-call.68} parent=1 // loop_pre_header
      _
    $region3: #{custom-call.68} parent=1 // loop_header
      %s3 = sphi 0, %s7
      %p4 = scmp.ge.s32.totalorder %s3, 10
      %s10 = sphi 0, %s43
      %s11 = sphi 0, %s39
      %s12 = sphi 0, %s35
      %s13 = sphi 0, %s31
      %s14 = sphi 0, %s27
      %s15 = sphi 0, %s10
      %s16 = sphi 0, %s11
      %s17 = sphi 0, %s12
      %s18 = sphi 0, %s13
      %s19 = sphi 0, %s14
      %s20 = sphi 0, %s15
      %s21 = sphi 0, %s16
      %s22 = sphi 0, %s17
      %s23 = sphi 0, %s18
      %s24 = sphi 0, %s19
    $region4: #{custom-call.68} parent=1 // loop_header_branch
      %6 = sbr.rel (%p4) target = $region8
    $region5: #{custom-call.68} parent=1 // loop_body
      %s8 = ssub.s32 %s3, 1
      %s9 = ssub.s32 %s3, 2
      %s25 = sadd.s32 1, %s14
      %p26 = scmp.ge.s32.totalorder %s25, 1
      %s27 = scalar_select %p26, 0, %s25
      %s28 = sadd.s32 1, %s13
      %s29 = scalar_select %p26, %s28, %s13
      %p30 = scmp.ge.s32.totalorder %s29, 1
      %s31 = scalar_select %p30, 0, %s29
      %s32 = sadd.s32 1, %s12
      %s33 = scalar_select %p30, %s32, %s12
      %p34 = scmp.ge.s32.totalorder %s33, 1
      %s35 = scalar_select %p34, 0, %s33
      %s36 = sadd.s32 1, %s11
      %s37 = scalar_select %p34, %s36, %s11
      %p38 = scmp.ge.s32.totalorder %s37, 4
      %s39 = scalar_select %p38, 0, %s37
      %s40 = sadd.s32 1, %s10
      %s41 = scalar_select %p38, %s40, %s10
      %p42 = scmp.ge.s32.totalorder %s41, 2
      %s43 = scalar_select %p42, 0, %s41
      %p44 = scmp.le.s32.totalorder 1, %s3
      %p45 = scmp.lt.s32.totalorder %s3, 9
      %p46 = pnand %p44, %p45
      %p47 = pneg %p46
      // Predicated region
      $region9: #{custom-call.68} parent=5 // pred_check
        _
      $region10: #{custom-call.68} parent=5 // pred_check_branch
        %49 = sbr.rel (%p46) target = $region12
      $region11: #{custom-call.68} parent=5 // pred_region
        %s50 = ssub.s32 %s3, 1
      $region12: #{custom-call.68} parent=5 // pred_fallthru
        _
      %p51 = scmp.lt.s32.totalorder %s3, 8
      // Predicated region
      $region13: #{custom-call.68} parent=5 // pred_check
        %p52 = pneg %p51
      $region14: #{custom-call.68} parent=5 // pred_check_branch
        %54 = sbr.rel (%p52) target = $region16
      $region15: #{custom-call.68} parent=5 // pred_region
        %s55 = sand.u32 %s3, 1
        %s56 = sand.u32 %s3, 1
        %s57 = smul.addr %s56, 4
        %s58 = scalar_lea.vmem [#allocation1], %s57
        %s59 = sadd.s32 %s14, %s13
        %s60 = sadd.s32 %s59, %s12
        %s61 = sadd.s32 %s60, %s11
        %s62 = smul.addr %s10, 4
        %s63 = sadd.s32 %s61, %s62
        %s64 = smul.addr %s63, 4
        %s65 = scalar_lea.vmem %s0, %s64
        // Predicated region
        $region17: #{custom-call.68} parent=15 // pred_check
          _
        $region18: #{custom-call.68} parent=15 // pred_check_branch
          %67 = sbr.rel (0) target = $region20
        $region19: #{custom-call.68} parent=15 // pred_region
          // Predicated region
          $region21: #{custom-call.68} parent=19 // pred_check
            _
          $region22: #{custom-call.68} parent=19 // pred_check_branch
            %69 = sbr.rel target = $region24
          $region23: #{custom-call.68} parent=19 // pred_region
            // Predicated region
            $region36: #{custom-call.68} parent=23 // pred_check
              _
            $region37: #{custom-call.68} parent=23 // pred_check_branch
              %85 = sbr.rel (0) target = $region39
            $region38: #{custom-call.68} parent=23 // pred_region
              %s87 = ssub.s32 16, 1
              loop: start=0, step=1, limit=1
              $region40: #{custom-call.68} parent=38 // loop_pre_header
                _
              $region41: #{custom-call.68} parent=38 // loop_header
                %s89 = sphi 0, %s93
                %p90 = scmp.ge.s32.totalorder %s89, 1
                %s94 = sphi %s65, %s65
                %s95 = sphi %s58, %s58
              $region42: #{custom-call.68} parent=38 // loop_header_branch
                %92 = sbr.rel (%p90) target = $region46
              $region43: #{custom-call.68} parent=38 // loop_body
                %v96 = vld [vmem:[%s94] sm:%s87]
                %97 = vst [vmem:[%s95] sm:%s87] %v96
              $region44: #{custom-call.68} parent=38 // loop_footer
                %s93 = sadd.s32 1, %s89
              $region45: #{custom-call.68} parent=38 // loop_footer_branch
                %88 = sbr.rel target = $region41
              $region46: #{custom-call.68} parent=38 // loop_exit
                _
            $region39: #{custom-call.68} parent=23 // pred_fallthru
              _
          $region24: #{custom-call.68} parent=19 // pred_fallthru
            _
          // Predicated region
          $region25: #{custom-call.68} parent=19 // pred_check
            _
          $region26: #{custom-call.68} parent=19 // pred_check_branch
            %71 = sbr.rel (0) target = $region28
          $region27: #{custom-call.68} parent=19 // pred_region
            %s73 = ssub.s32 16, 1
            loop: start=0, step=1, limit=1
            $region29: #{custom-call.68} parent=27 // loop_pre_header
              _
            $region30: #{custom-call.68} parent=27 // loop_header
              %s75 = sphi 0, %s79
              %p76 = scmp.ge.s32.totalorder %s75, 1
              %s80 = sphi %s65, %s65
              %s81 = sphi %s58, %s58
            $region31: #{custom-call.68} parent=27 // loop_header_branch
              %78 = sbr.rel (%p76) target = $region35
            $region32: #{custom-call.68} parent=27 // loop_body
              %v82 = vld [vmem:[%s80] sm:%s73]
              %83 = vst [vmem:[%s81] sm:%s73] %v82
            $region33: #{custom-call.68} parent=27 // loop_footer
              %s79 = sadd.s32 1, %s75
            $region34: #{custom-call.68} parent=27 // loop_footer_branch
              %74 = sbr.rel target = $region30
            $region35: #{custom-call.68} parent=27 // loop_exit
              _
          $region28: #{custom-call.68} parent=19 // pred_fallthru
            _
        $region20: #{custom-call.68} parent=15 // pred_fallthru
          _
        %98 = vnop
      $region16: #{custom-call.68} parent=5 // pred_fallthru
        _
      %p99 = scmp.le.s32.totalorder 1, %s3
      %p100 = scmp.lt.s32.totalorder %s3, 9
      %p101 = pnand %p99, %p100
      %p102 = pneg %p101
      // Predicated region
      $region47: #{custom-call.68} parent=5 // pred_check
        _
      $region48: #{custom-call.68} parent=5 // pred_check_branch
        %104 = sbr.rel (%p101) target = $region50
      $region49: #{custom-call.68} parent=5 // pred_region
        #allocation4 [shape = 'f32[3,3]{1,0}', space=vmem, size = 0x1000, scoped, tag = 'rescaled input a']
        %s105 = ssub.s32 %s3, 1
        %s106 = sand.u32 %s8, 1
        %s107 = sand.u32 %s8, 1
        %s108 = smul.addr %s107, 4
        %s109 = scalar_lea.vmem [#allocation1], %s108
        %s110 = sand.u32 %s8, 1
        %s111 = sand.u32 %s8, 1
        %s112 = smul.addr %s111, 4
        %s113 = scalar_lea.vmem [#allocation1], %s112
        %s114 = sand.u32 %s8, 1
        %s115 = sand.u32 %s8, 1
        %s116 = smul.addr %s115, 4
        %s117 = scalar_lea.vmem [#allocation3], %s116
        %s119 = sshll.u32 1, 4
        %s120 = ssub.s32 %s119, 1
        %v121 = vld [vmem:[%s113] sm:%s120]
        %122 = vst [vmem:[#allocation0] sm:%s120] %v121
        %v123 = vlaneseq
        %v124 = vand.u32 %v123, 127
        %vm125 = vcmp.lt.s32.totalorder %v124, 3
        %v126 = vlaneseq
        %v127 = vshrl.u32 %v126, 7
        %vm129 = vcmp.eq.s32.totalorder %v127, %v124
        %v130 = vld [vmem:[#allocation0] sm:$0xff]
        %v131 = vsel %vm129, %v130, 0.0
        %132 = vadd.xlane.f32.xlu0 %v131
        %v133 = vpop.xlane.xlu0 %132
        %vm134 = vcmp.ge.s32.totalorder %v127, %v124
        %vm135 = vmand %vm134, %vm125
        %v136 = vsel %vm135, %v130, 0.0
        %v137 = vrcp.pop %v133
        %v138 = vmul.f32 %v136, %v137
        %139 = vst [vmem:[#allocation4] sm:$0xff] %v138
        %v140 = vlaneseq
        %v141 = vand.u32 %v140, 127
        %v142 = vlaneseq
        %v143 = vshrl.u32 %v142, 7
        %vm145 = vcmp.eq.s32.totalorder %v141, %v143
        %v146 = vlaneseq
        %v147 = vand.u32 %v146, 127
        %vm148 = vcmp.eq.s32.totalorder %v147, 0
        %v149 = vsel %vm148, 1.0, -1.0
        %v150 = vsel %vm145, %v149, 0.0
        %s151 = scalar_lea.vmem [#allocation4], 1
        %v152 = vld [vmem:[%s151] ss:$0 sm:$0xff]
        %v153 = vxor.u32 %v152, 2147483648
        %v154 = vlaneseq
        %v155 = vand.u32 %v154, 127
        %vm156 = vcmp.eq.s32.totalorder %v155, 1
        %v157 = vmul.f32 %v153, %v150
        %158 = vadd.xlane.f32.xlu0 %v157
        %v159 = vpop.xlane.xlu0 %158
        %v160 = vsel %vm156, %v159, %v150
        %s161 = scalar_lea.vmem [#allocation4], 2
        %v162 = vld [vmem:[%s161] ss:$0 sm:$0xff]
        %v163 = vxor.u32 %v162, 2147483648
        %v164 = vlaneseq
        %v165 = vand.u32 %v164, 127
        %vm166 = vcmp.eq.s32.totalorder %v165, 2
        %v167 = vmul.f32 %v163, %v160
        %168 = vadd.xlane.f32.xlu0 %v167
        %v169 = vpop.xlane.xlu0 %168
        %v170 = vsel %vm166, %v169, %v160
        %v171 = vrcp.pop %v133
        %v172 = vmul.f32 %v170, %v171
        %vm173 = vweird.f32 %v133
        %v174 = vsel %vm173, %v170, %v172
        %175 = vst [vmem:[#allocation2] sm:$0xff] %v174
        %s177 = sshll.u32 1, 4
        %s178 = ssub.s32 %s177, 1
        %v180 = vld [vmem:[#allocation2] sm:%s178]
        %s181 = sshll.u32 1, 4
        %s182 = ssub.s32 %s181, 1
        %183 = vst [vmem:[%s117] sm:%s182] %v180
        %s184 = sand.u32 %s8, 1
        %s185 = sand.u32 %s8, 1
        %s186 = smul.addr %s185, 4
        %s187 = scalar_lea.vmem [#allocation3], %s186
        %s188 = sadd.s32 %s19, %s18
        %s189 = sadd.s32 %s188, %s17
        %s190 = sadd.s32 %s189, %s16
        %s191 = smul.addr %s15, 4
        %s192 = sadd.s32 %s190, %s191
        %s193 = smul.addr %s192, 4
        %s194 = scalar_lea.vmem %s1, %s193
        // Predicated region
        $region51: #{custom-call.68} parent=49 // pred_check
          _
        $region52: #{custom-call.68} parent=49 // pred_check_branch
          %196 = sbr.rel (0) target = $region54
        $region53: #{custom-call.68} parent=49 // pred_region
          // Predicated region
          $region55: #{custom-call.68} parent=53 // pred_check
            _
          $region56: #{custom-call.68} parent=53 // pred_check_branch
            %198 = sbr.rel target = $region58
          $region57: #{custom-call.68} parent=53 // pred_region
            // Predicated region
            $region70: #{custom-call.68} parent=57 // pred_check
              _
            $region71: #{custom-call.68} parent=57 // pred_check_branch
              %214 = sbr.rel (0) target = $region73
            $region72: #{custom-call.68} parent=57 // pred_region
              %s216 = ssub.s32 16, 1
              loop: start=0, step=1, limit=1
              $region74: #{custom-call.68} parent=72 // loop_pre_header
                _
              $region75: #{custom-call.68} parent=72 // loop_header
                %s218 = sphi 0, %s222
                %p219 = scmp.ge.s32.totalorder %s218, 1
                %s223 = sphi %s187, %s187
                %s224 = sphi %s194, %s194
              $region76: #{custom-call.68} parent=72 // loop_header_branch
                %221 = sbr.rel (%p219) target = $region80
              $region77: #{custom-call.68} parent=72 // loop_body
                %v225 = vld [vmem:[%s223] sm:%s216]
                %226 = vst [vmem:[%s224] sm:%s216] %v225
              $region78: #{custom-call.68} parent=72 // loop_footer
                %s222 = sadd.s32 1, %s218
              $region79: #{custom-call.68} parent=72 // loop_footer_branch
                %217 = sbr.rel target = $region75
              $region80: #{custom-call.68} parent=72 // loop_exit
                _
            $region73: #{custom-call.68} parent=57 // pred_fallthru
              _
          $region58: #{custom-call.68} parent=53 // pred_fallthru
            _
          // Predicated region
          $region59: #{custom-call.68} parent=53 // pred_check
            _
          $region60: #{custom-call.68} parent=53 // pred_check_branch
            %200 = sbr.rel (0) target = $region62
          $region61: #{custom-call.68} parent=53 // pred_region
            %s202 = ssub.s32 16, 1
            loop: start=0, step=1, limit=1
            $region63: #{custom-call.68} parent=61 // loop_pre_header
              _
            $region64: #{custom-call.68} parent=61 // loop_header
              %s204 = sphi 0, %s208
              %p205 = scmp.ge.s32.totalorder %s204, 1
              %s209 = sphi %s187, %s187
              %s210 = sphi %s194, %s194
            $region65: #{custom-call.68} parent=61 // loop_header_branch
              %207 = sbr.rel (%p205) target = $region69
            $region66: #{custom-call.68} parent=61 // loop_body
              %v211 = vld [vmem:[%s209] sm:%s202]
              %212 = vst [vmem:[%s210] sm:%s202] %v211
            $region67: #{custom-call.68} parent=61 // loop_footer
              %s208 = sadd.s32 1, %s204
            $region68: #{custom-call.68} parent=61 // loop_footer_branch
              %203 = sbr.rel target = $region64
            $region69: #{custom-call.68} parent=61 // loop_exit
              _
          $region62: #{custom-call.68} parent=53 // pred_fallthru
            _
        $region54: #{custom-call.68} parent=49 // pred_fallthru
          _
        %227 = vnop
      $region50: #{custom-call.68} parent=5 // pred_fallthru
        _
      %p228 = scmp.le.s32.totalorder 2, %s3
      // Predicated region
      $region81: #{custom-call.68} parent=5 // pred_check
        %p229 = pneg %p228
      $region82: #{custom-call.68} parent=5 // pred_check_branch
        %231 = sbr.rel (%p229) target = $region84
      $region83: #{custom-call.68} parent=5 // pred_region
        %s232 = ssub.s32 %s3, 2
        %s233 = sand.u32 %s9, 1
        %s234 = sand.u32 %s9, 1
        %s235 = smul.addr %s234, 4
        %s236 = scalar_lea.vmem [#allocation3], %s235
      $region84: #{custom-call.68} parent=5 // pred_fallthru
        _
    $region6: #{custom-call.68} parent=1 // loop_footer
      %s7 = sadd.s32 1, %s3
    $region7: #{custom-call.68} parent=1 // loop_footer_branch
      %2 = sbr.rel target = $region3
    $region8: #{custom-call.68} parent=1 // loop_exit
      _

// kernel: em_mask_generator.7
$region0: #{em_mask_generator.7}
  #allocation0 [shape = 'u32[]', space=smem, size = 0x4, offset = 0x4, fixed_abs, tag = 'smem constant byte address 0x4 - core index']
  #allocation1 [shape = 'u32[144,128]{1,0:T(1,128)}', space=vmem, size = 0x12000, scoped, tag = 'internal scratch']
  %s0 = inlined_call_operand.vmem [shape: f32[2,3,256], index: 0, kind: input, shape index: {}]
  %s1 = inlined_call_operand.vmem [shape: f32[2,4,256], index: 1, kind: input, shape index: {}]
  %s2 = inlined_call_operand.vmem [shape: f32[2,4,256], index: 2, kind: input, shape index: {}]
  %s3 = inlined_call_operand.vmem [shape: f32[2,4,1], index: 3, kind: input, shape index: {}]
  %s4 = inlined_call_operand.vmem [shape: f32[2,12,4], index: 4, kind: input, shape index: {}]
  %s5 = inlined_call_operand.vmem [shape: f32[2,4,3,3], index: 5, kind: output, shape index: {}]
  %s6 = sld [smem:[#allocation0]]
  $region57: #{em_mask_generator.7} parent=0
    _
  %s8 = ssub.s32 1, %s6
  %s9 = scalar_select 0, %s8, %s6
  loop: start=0, step=1, limit=4
  $region2: #{em_mask_generator.7} parent=0 // loop_pre_header
    _
  $region3: #{em_mask_generator.7} parent=0 // loop_header
    %s11 = sphi 0, %s15
    %p12 = scmp.ge.s32.totalorder %s11, 4
    %s18 = sphi 0, %s30
    %s19 = sphi 0, %s26
    %s20 = sphi 0, %s18
    %s21 = sphi 0, %s19
    %s22 = sphi 0, %s20
    %s23 = sphi 0, %s21
    %s35 = sphi 0, %s37
    %s38 = sphi 0, %s35
    %s39 = sphi 0, %s38
    %s55 = sphi 0, %s39
    %s63 = sphi 0, %s65
    %s66 = sphi 0, %s63
    %s67 = sphi 0, %s66
    %s83 = sphi 0, %s67
    %s91 = sphi 0, %s93
    %s94 = sphi 0, %s91
    %s95 = sphi 0, %s94
    %s111 = sphi 0, %s95
    %s117 = sphi 0, %s119
    %s120 = sphi 0, %s117
    %s121 = sphi 0, %s120
    %s137 = sphi 0, %s121
    %s143 = sphi 0, %s145
    %s146 = sphi 0, %s143
    %s147 = sphi 0, %s146
    %s163 = sphi 0, %s147
    %s169 = sphi 0, %s171
    %s172 = sphi 0, %s169
    %s173 = sphi 0, %s172
    %s189 = sphi 0, %s173
  $region4: #{em_mask_generator.7} parent=0 // loop_header_branch
    %14 = sbr.rel (%p12) target = $region8
  $region5: #{em_mask_generator.7} parent=0 // loop_body
    %s16 = ssub.s32 %s11, 1
    %s17 = ssub.s32 %s11, 2
    %s24 = sadd.s32 1, %s19
    %p25 = scmp.ge.s32.totalorder %s24, 1
    %s26 = scalar_select %p25, 0, %s24
    %s27 = sadd.s32 1, %s18
    %s28 = scalar_select %p25, %s27, %s18
    %p29 = scmp.ge.s32.totalorder %s28, 2
    %s30 = scalar_select %p29, 0, %s28
    %s31 = ssub.s32 %s18, %s30
    %s32 = ssub.s32 %s19, %s26
    %s33 = sor.u32 %s31, %s32
    %p34 = scmp.eq.s32.totalorder %s33, 0
    %s36 = sadd.s32 %s35, 1
    %s37 = scalar_select %p34, %s35, %s36
    %p40 = pneg %p34
    %p41 = scmp.eq.s32.totalorder %s11, 1
    %p42 = por %p40, %p41
    %p43 = scmp.ne.s32.totalorder %s35, %s38
    %p44 = scmp.eq.s32.totalorder %s11, 0
    %p45 = por %p43, %p44
    %p46 = scmp.ne.s32.totalorder %s35, %s38
    %p47 = scmp.eq.s32.totalorder %s16, 1
    %p48 = por %p46, %p47
    %p49 = scmp.ne.s32.totalorder %s38, %s39
    %p50 = scmp.eq.s32.totalorder %s16, 0
    %p51 = por %p49, %p50
    %p52 = scmp.ne.s32.totalorder %s38, %s39
    %p53 = scmp.eq.s32.totalorder %s17, 1
    %p54 = por %p52, %p53
    %p56 = scmp.ne.s32.totalorder %s39, %s55
    %p57 = scmp.eq.s32.totalorder %s17, 0
    %p58 = por %p56, %p57
    %s59 = ssub.s32 %s18, %s30
    %s60 = ssub.s32 %s19, %s26
    %s61 = sor.u32 %s59, %s60
    %p62 = scmp.eq.s32.totalorder %s61, 0
    %s64 = sadd.s32 %s63, 1
    %s65 = scalar_select %p62, %s63, %s64
    %p68 = pneg %p62
    %p69 = scmp.eq.s32.totalorder %s11, 1
    %p70 = por %p68, %p69
    %p71 = scmp.ne.s32.totalorder %s63, %s66
    %p72 = scmp.eq.s32.totalorder %s11, 0
    %p73 = por %p71, %p72
    %p74 = scmp.ne.s32.totalorder %s63, %s66
    %p75 = scmp.eq.s32.totalorder %s16, 1
    %p76 = por %p74, %p75
    %p77 = scmp.ne.s32.totalorder %s66, %s67
    %p78 = scmp.eq.s32.totalorder %s16, 0
    %p79 = por %p77, %p78
    %p80 = scmp.ne.s32.totalorder %s66, %s67
    %p81 = scmp.eq.s32.totalorder %s17, 1
    %p82 = por %p80, %p81
    %p84 = scmp.ne.s32.totalorder %s67, %s83
    %p85 = scmp.eq.s32.totalorder %s17, 0
    %p86 = por %p84, %p85
    %s87 = ssub.s32 %s18, %s30
    %s88 = ssub.s32 %s19, %s26
    %s89 = sor.u32 %s87, %s88
    %p90 = scmp.eq.s32.totalorder %s89, 0
    %s92 = sadd.s32 %s91, 1
    %s93 = scalar_select %p90, %s91, %s92
    %p96 = pneg %p90
    %p97 = scmp.eq.s32.totalorder %s11, 1
    %p98 = por %p96, %p97
    %p99 = scmp.ne.s32.totalorder %s91, %s94
    %p100 = scmp.eq.s32.totalorder %s11, 0
    %p101 = por %p99, %p100
    %p102 = scmp.ne.s32.totalorder %s91, %s94
    %p103 = scmp.eq.s32.totalorder %s16, 1
    %p104 = por %p102, %p103
    %p105 = scmp.ne.s32.totalorder %s94, %s95
    %p106 = scmp.eq.s32.totalorder %s16, 0
    %p107 = por %p105, %p106
    %p108 = scmp.ne.s32.totalorder %s94, %s95
    %p109 = scmp.eq.s32.totalorder %s17, 1
    %p110 = por %p108, %p109
    %p112 = scmp.ne.s32.totalorder %s95, %s111
    %p113 = scmp.eq.s32.totalorder %s17, 0
    %p114 = por %p112, %p113
    %s115 = ssub.s32 %s18, %s30
    %p116 = scmp.eq.s32.totalorder %s115, 0
    %s118 = sadd.s32 %s117, 1
    %s119 = scalar_select %p116, %s117, %s118
    %p122 = pneg %p116
    %p123 = scmp.eq.s32.totalorder %s11, 1
    %p124 = por %p122, %p123
    %p125 = scmp.ne.s32.totalorder %s117, %s120
    %p126 = scmp.eq.s32.totalorder %s11, 0
    %p127 = por %p125, %p126
    %p128 = scmp.ne.s32.totalorder %s117, %s120
    %p129 = scmp.eq.s32.totalorder %s16, 1
    %p130 = por %p128, %p129
    %p131 = scmp.ne.s32.totalorder %s120, %s121
    %p132 = scmp.eq.s32.totalorder %s16, 0
    %p133 = por %p131, %p132
    %p134 = scmp.ne.s32.totalorder %s120, %s121
    %p135 = scmp.eq.s32.totalorder %s17, 1
    %p136 = por %p134, %p135
    %p138 = scmp.ne.s32.totalorder %s121, %s137
    %p139 = scmp.eq.s32.totalorder %s17, 0
    %p140 = por %p138, %p139
    %s141 = ssub.s32 %s18, %s30
    %p142 = scmp.eq.s32.totalorder %s141, 0
    %s144 = sadd.s32 %s143, 1
    %s145 = scalar_select %p142, %s143, %s144
    %p148 = pneg %p142
    %p149 = scmp.eq.s32.totalorder %s11, 1
    %p150 = por %p148, %p149
    %p151 = scmp.ne.s32.totalorder %s143, %s146
    %p152 = scmp.eq.s32.totalorder %s11, 0
    %p153 = por %p151, %p152
    %p154 = scmp.ne.s32.totalorder %s143, %s146
    %p155 = scmp.eq.s32.totalorder %s16, 1
    %p156 = por %p154, %p155
    %p157 = scmp.ne.s32.totalorder %s146, %s147
    %p158 = scmp.eq.s32.totalorder %s16, 0
    %p159 = por %p157, %p158
    %p160 = scmp.ne.s32.totalorder %s146, %s147
    %p161 = scmp.eq.s32.totalorder %s17, 1
    %p162 = por %p160, %p161
    %p164 = scmp.ne.s32.totalorder %s147, %s163
    %p165 = scmp.eq.s32.totalorder %s17, 0
    %p166 = por %p164, %p165
    %s167 = ssub.s32 %s18, %s30
    %p168 = scmp.eq.s32.totalorder %s167, 0
    %s170 = sadd.s32 %s169, 1
    %s171 = scalar_select %p168, %s169, %s170
    %p174 = pneg %p168
    %p175 = scmp.eq.s32.totalorder %s11, 1
    %p176 = por %p174, %p175
    %p177 = scmp.ne.s32.totalorder %s169, %s172
    %p178 = scmp.eq.s32.totalorder %s11, 0
    %p179 = por %p177, %p178
    %p180 = scmp.ne.s32.totalorder %s169, %s172
    %p181 = scmp.eq.s32.totalorder %s16, 1
    %p182 = por %p180, %p181
    %p183 = scmp.ne.s32.totalorder %s172, %s173
    %p184 = scmp.eq.s32.totalorder %s16, 0
    %p185 = por %p183, %p184
    %p186 = scmp.ne.s32.totalorder %s172, %s173
    %p187 = scmp.eq.s32.totalorder %s17, 1
    %p188 = por %p186, %p187
    %p190 = scmp.ne.s32.totalorder %s173, %s189
    %p191 = scmp.eq.s32.totalorder %s17, 0
    %p192 = por %p190, %p191
    %p193 = scmp.le.s32.totalorder 1, %s11
    %p194 = scmp.lt.s32.totalorder %s11, 3
    %p195 = pnand %p193, %p194
    %p196 = pneg %p195
    // Predicated region
    $region9: #{em_mask_generator.7} parent=5 // pred_check
      _
    $region10: #{em_mask_generator.7} parent=5 // pred_check_branch
      %198 = sbr.rel (%p195) target = $region12
    $region11: #{em_mask_generator.7} parent=5 // pred_region
      %s199 = ssub.s32 %s11, 1
    $region12: #{em_mask_generator.7} parent=5 // pred_fallthru
      _
    %p200 = scmp.lt.s32.totalorder %s11, 2
    // Predicated region
    $region13: #{em_mask_generator.7} parent=5 // pred_check
      %p201 = pneg %p200
    $region14: #{em_mask_generator.7} parent=5 // pred_check_branch
      %203 = sbr.rel (%p201) target = $region16
    $region15: #{em_mask_generator.7} parent=5 // pred_region
      // Predicated region
      $region17: #{em_mask_generator.7} parent=15 // pred_check
        %p204 = pneg %p45
      $region18: #{em_mask_generator.7} parent=15 // pred_check_branch
        %206 = sbr.rel (%p204) target = $region20
      $region19: #{em_mask_generator.7} parent=15 // pred_region
        %s207 = smul.u32 2, %s19
        %p208 = scmp.lt.s32.totalorder %s18, 1
        %s209 = scalar_select %p208, %s18, 1
        %p210 = scmp.lt.s32.totalorder %s207, 1
        %s211 = scalar_select %p210, %s207, 1
        %s212 = smul.addr %s209, 2
        %s213 = sadd.s32 %s211, %s212
        %s214 = smul.addr %s213, 4
        %s215 = scalar_lea.vmem %s0, %s214
        %s216 = smul.u32 2, %s19
      $region20: #{em_mask_generator.7} parent=15 // pred_fallthru
        _
      // Predicated region
      $region21: #{em_mask_generator.7} parent=15 // pred_check
        %p217 = pneg %p73
      $region22: #{em_mask_generator.7} parent=15 // pred_check_branch
        %219 = sbr.rel (%p217) target = $region24
      $region23: #{em_mask_generator.7} parent=15 // pred_region
        %s220 = smul.u32 2, %s19
        %p221 = scmp.lt.s32.totalorder %s18, 1
        %s222 = scalar_select %p221, %s18, 1
        %p223 = scmp.lt.s32.totalorder %s220, 1
        %s224 = scalar_select %p223, %s220, 1
        %s225 = smul.addr %s222, 2
        %s226 = sadd.s32 %s224, %s225
        %s227 = smul.addr %s226, 4
        %s228 = scalar_lea.vmem %s1, %s227
        %s229 = smul.u32 2, %s19
      $region24: #{em_mask_generator.7} parent=15 // pred_fallthru
        _
      // Predicated region
      $region25: #{em_mask_generator.7} parent=15 // pred_check
        %p230 = pneg %p101
      $region26: #{em_mask_generator.7} parent=15 // pred_check_branch
        %232 = sbr.rel (%p230) target = $region28
      $region27: #{em_mask_generator.7} parent=15 // pred_region
        %s233 = smul.u32 2, %s19
        %p234 = scmp.lt.s32.totalorder %s18, 1
        %s235 = scalar_select %p234, %s18, 1
        %p236 = scmp.lt.s32.totalorder %s233, 1
        %s237 = scalar_select %p236, %s233, 1
        %s238 = smul.addr %s235, 2
        %s239 = sadd.s32 %s237, %s238
        %s240 = smul.addr %s239, 4
        %s241 = scalar_lea.vmem %s2, %s240
        %s242 = smul.u32 2, %s19
      $region28: #{em_mask_generator.7} parent=15 // pred_fallthru
        _
      // Predicated region
      $region29: #{em_mask_generator.7} parent=15 // pred_check
        %p243 = pneg %p127
      $region30: #{em_mask_generator.7} parent=15 // pred_check_branch
        %245 = sbr.rel (%p243) target = $region32
      $region31: #{em_mask_generator.7} parent=15 // pred_region
        %p246 = scmp.lt.s32.totalorder %s18, 1
        %s247 = scalar_select %p246, %s18, 1
        %s248 = smul.addr %s247, 4
        %s249 = scalar_lea.vmem %s3, %s248
      $region32: #{em_mask_generator.7} parent=15 // pred_fallthru
        _
      // Predicated region
      $region33: #{em_mask_generator.7} parent=15 // pred_check
        %p250 = pneg %p153
      $region34: #{em_mask_generator.7} parent=15 // pred_check_branch
        %252 = sbr.rel (%p250) target = $region36
      $region35: #{em_mask_generator.7} parent=15 // pred_region
        %p253 = scmp.lt.s32.totalorder %s18, 1
        %s254 = scalar_select %p253, %s18, 1
        %s255 = smul.addr %s254, 2
        %s256 = smul.addr %s255, 8
        %s257 = scalar_lea.vmem %s4, %s256
      $region36: #{em_mask_generator.7} parent=15 // pred_fallthru
        _
    $region16: #{em_mask_generator.7} parent=5 // pred_fallthru
      _
    %p258 = scmp.le.s32.totalorder 1, %s11
    %p259 = scmp.lt.s32.totalorder %s11, 3
    %p260 = pnand %p258, %p259
    %p261 = pneg %p260
    // Predicated region
    $region37: #{em_mask_generator.7} parent=5 // pred_check
      _
    $region38: #{em_mask_generator.7} parent=5 // pred_check_branch
      %263 = sbr.rel (%p260) target = $region40
    $region39: #{em_mask_generator.7} parent=5 // pred_region
      %s264 = ssub.s32 %s11, 1
      %s265 = smul.u32 2, %s21
      %p266 = scmp.lt.s32.totalorder %s20, 1
      %s267 = scalar_select %p266, %s20, 1
      %p268 = scmp.lt.s32.totalorder %s265, 1
      %s269 = scalar_select %p268, %s265, 1
      %s270 = smul.addr %s267, 2
      %s271 = sadd.s32 %s269, %s270
      %s272 = smul.addr %s271, 4
      %s273 = scalar_lea.vmem %s0, %s272
      %p274 = pneg %p51
      %p275 = pneg %p48
      %s276 = smul.u32 2, %s21
      %p277 = scmp.lt.s32.totalorder %s20, 1
      %s278 = scalar_select %p277, %s20, 1
      %p279 = scmp.lt.s32.totalorder %s276, 1
      %s280 = scalar_select %p279, %s276, 1
      %s281 = smul.addr %s278, 2
      %s282 = sadd.s32 %s280, %s281
      %s283 = smul.addr %s282, 4
      %s284 = scalar_lea.vmem %s1, %s283
      %p285 = pneg %p79
      %p286 = pneg %p76
      %s287 = smul.u32 2, %s21
      %p288 = scmp.lt.s32.totalorder %s20, 1
      %s289 = scalar_select %p288, %s20, 1
      %p290 = scmp.lt.s32.totalorder %s287, 1
      %s291 = scalar_select %p290, %s287, 1
      %s292 = smul.addr %s289, 2
      %s293 = sadd.s32 %s291, %s292
      %s294 = smul.addr %s293, 4
      %s295 = scalar_lea.vmem %s2, %s294
      %p296 = pneg %p107
      %p297 = pneg %p104
      %p298 = scmp.lt.s32.totalorder %s20, 1
      %s299 = scalar_select %p298, %s20, 1
      %s300 = smul.addr %s299, 4
      %s301 = scalar_lea.vmem %s3, %s300
      %p302 = pneg %p133
      %p303 = pneg %p130
      %p304 = scmp.lt.s32.totalorder %s20, 1
      %s305 = scalar_select %p304, %s20, 1
      %s306 = smul.addr %s305, 2
      %s307 = smul.addr %s306, 8
      %s308 = scalar_lea.vmem %s4, %s307
      %p309 = pneg %p159
      %p310 = pneg %p156
      %p311 = pneg %p185
      %p312 = pneg %p182
      %p313 = scmp.lt.s32.totalorder %s20, 1
      %s314 = scalar_select %p313, %s20, 1
      %s315 = smul.addr %s314, 4
      %s316 = smul.addr %s315, 4
      %s317 = scalar_lea.vmem %s5, %s316
      %s318 = smul.u32 2, %s21
      %p319 = scmp.lt.s32.totalorder %s20, 1
      %s320 = scalar_select %p319, %s20, 1
      %p321 = scmp.lt.s32.totalorder %s318, 1
      %s322 = scalar_select %p321, %s318, 1
      %s323 = smul.addr %s320, 2
      %s324 = sadd.s32 %s322, %s323
      %s325 = smul.addr %s324, 4
      %s326 = scalar_lea.vmem %s0, %s325
      %s327 = smul.u32 2, %s21
      %s328 = smul.u32 2, %s21
      %p329 = scmp.lt.s32.totalorder %s20, 1
      %s330 = scalar_select %p329, %s20, 1
      %p331 = scmp.lt.s32.totalorder %s328, 1
      %s332 = scalar_select %p331, %s328, 1
      %s333 = smul.addr %s330, 2
      %s334 = sadd.s32 %s332, %s333
      %s335 = smul.addr %s334, 4
      %s336 = scalar_lea.vmem %s1, %s335
      %s337 = smul.u32 2, %s21
      %s338 = smul.u32 2, %s21
      %p339 = scmp.lt.s32.totalorder %s20, 1
      %s340 = scalar_select %p339, %s20, 1
      %p341 = scmp.lt.s32.totalorder %s338, 1
      %s342 = scalar_select %p341, %s338, 1
      %s343 = smul.addr %s340, 2
      %s344 = sadd.s32 %s342, %s343
      %s345 = smul.addr %s344, 4
      %s346 = scalar_lea.vmem %s2, %s345
      %s347 = smul.u32 2, %s21
      %p348 = scmp.lt.s32.totalorder %s20, 1
      %s349 = scalar_select %p348, %s20, 1
      %s350 = smul.addr %s349, 4
      %s351 = scalar_lea.vmem %s3, %s350
      %p352 = scmp.lt.s32.totalorder %s20, 1
      %s353 = scalar_select %p352, %s20, 1
      %s354 = smul.addr %s353, 2
      %s355 = smul.addr %s354, 8
      %s356 = scalar_lea.vmem %s4, %s355
      %p357 = scmp.lt.s32.totalorder %s20, 1
      %s358 = scalar_select %p357, %s20, 1
      %s359 = smul.addr %s358, 4
      %s360 = smul.addr %s359, 4
      %s361 = scalar_lea.vmem %s5, %s360
      %p362 = scmp.eq.s32.totalorder %s21, 0
      // Predicated region
      $region41: #{em_mask_generator.7} parent=39 // pred_check
        %p363 = pneg %p362
      $region42: #{em_mask_generator.7} parent=39 // pred_check_branch
        %365 = sbr.rel (%p363) target = $region44
      $region43: #{em_mask_generator.7} parent=39 // pred_region
        %vm366 = vcmask 18432
        %367 = vst.msk [vmem:[%s361] sm:$0x7] %vm366, 0.0
        %368 = vst.msk [vmem:[%s361 + $0x4] sm:$0x7] %vm366, 0.0
        %369 = vst.msk [vmem:[%s361 + $0x8] sm:$0x7] %vm366, 0.0
        %370 = vst.msk [vmem:[%s361 + $0xc] sm:$0x7] %vm366, 0.0
      $region44: #{em_mask_generator.7} parent=39 // pred_fallthru
        _
      %v371 = vld [vmem:[%s326] sm:$0x77]
      %v372 = vld [vmem:[%s336] sm:$0xff]
      %v373 = vld [vmem:[%s346] sm:$0xff]
      %v374 = vld [vmem:[%s351] sm:$0xf]
      %v375 = vrcp.pop %v374
      %v376 = vmul.f32 1.0, %v375
      %378 = vset.pattern.permute.xlu0 0
      %379 = vperm.xlu0 %378, %v376
      %v380 = vpop.permute.xlu0 %379
      %v382 = vunpack.c.l.s4 839922192
      %v383 = vunpack.c.0.s8 %v382
      %v384 = vlaneseq
      %v385 = vshrl.u32 %v384, 7
      %v386 = vsub.s32 %v383, %v385
      %v387 = vrot.slane %v380, %v386
      %v389 = vmul.f32 %v373, %v387
      %v390 = vld [vmem:[%s356] sm:$0xff]
      %v391 = vld [vmem:[%s356 + $0x8] sm:$0xf]
      %v393 = vcombine.high %v372, %v372
      %vm394 = vcmask 31744
      %v396 = vsel %vm394, %v390, 0
      %v399 = vsel %vm394, %v391, 0
      %vm401 = vcmask 1043456
      %v402 = vsel %vm401, %v372, 0
      %v404 = vsel %vm401, %v393, 0
      %406 = vmatprep.subr.mxu0 0.0
      %407 = vmatpush1.msra.mxu0 0.0
      %408 = vmatprep.subr.mxu0 0.0
      %409 = vmatpush1.msra.mxu0 0.0
      %410 = vmatprep.subr.mxu0 0.0
      %411 = vmatpush1.msra.mxu0 0.0
      %412 = vmatprep.subr.mxu0 0.0
      %413 = vmatpush1.msra.mxu0 0.0
      %414 = vmatprep.subr.mxu0 0.0
      %415 = vmatpush1.msra.mxu0 0.0
      %416 = vmatprep.subr.mxu0 0.0
      %417 = vmatpush1.msra.mxu0 0.0
      %418 = vmatprep.subr.mxu0 0.0
      %419 = vmatpush1.msra.mxu0 0.0
      %420 = vmatprep.subr.mxu0 0.0
      %421 = vmatpush1.msra.mxu0 0.0
      %422 = vmatprep.subr.mxu0 0.0
      %423 = vmatpush1.msra.mxu0 0.0
      %424 = vmatprep.subr.mxu0 0.0
      %425 = vmatpush1.msra.mxu0 0.0
      %426 = vmatprep.subr.mxu0 0.0
      %427 = vmatpush1.msra.mxu0 0.0
      %428 = vmatprep.subr.mxu0 0.0
      %429 = vmatpush1.msra.mxu0 0.0
      %430 = vmatprep.subr.mxu0 0.0
      %431 = vmatpush1.msra.mxu0 0.0
      %432 = vmatprep.subr.mxu0 0.0
      %433 = vmatpush1.msra.mxu0 0.0
      %434 = vmatprep.subr.mxu0 0.0
      %435 = vmatpush1.msra.mxu0 0.0
      %436 = vmatprep.subr.mxu0 %v404
      %437 = vmatpush1.msra.mxu0 %v402
      %438 = vmatprep.subr.mxu0 0.0
      %439 = vmatpush2.msra.mxu0 0.0
      %440 = vmatprep.subr.mxu0 0.0
      %441 = vmatpush2.msra.mxu0 0.0
      %442 = vmatprep.subr.mxu0 0.0
      %443 = vmatpush2.msra.mxu0 0.0
      %444 = vmatprep.subr.mxu0 0.0
      %445 = vmatpush2.msra.mxu0 0.0
      %446 = vmatprep.subr.mxu0 0.0
      %447 = vmatpush2.msra.mxu0 0.0
      %448 = vmatprep.subr.mxu0 0.0
      %449 = vmatpush2.msra.mxu0 0.0
      %450 = vmatprep.subr.mxu0 0.0
      %451 = vmatpush2.msra.mxu0 0.0
      %452 = vmatprep.subr.mxu0 0.0
      %453 = vmatpush2.msra.mxu0 0.0
      %454 = vmatprep.subr.mxu0 0.0
      %455 = vmatpush2.msra.mxu0 0.0
      %456 = vmatprep.subr.mxu0 0.0
      %457 = vmatpush2.msra.mxu0 0.0
      %458 = vmatprep.subr.mxu0 0.0
      %459 = vmatpush2.msra.mxu0 0.0
      %460 = vmatprep.subr.mxu0 0.0
      %461 = vmatpush2.msra.mxu0 0.0
      %462 = vmatprep.subr.mxu0 0.0
      %463 = vmatpush2.msra.mxu0 0.0
      %464 = vmatprep.subr.mxu0 0.0
      %465 = vmatpush2.msra.mxu0 0.0
      %466 = vmatprep.subr.mxu0 0.0
      %467 = vmatpush2.msra.mxu0 0.0
      %468 = vmatprep.subr.mxu0 0.0
      %469 = vmatpush2.msra.mxu0 0.0
      %470 = vmatprep.mubr.f32.mxu0 0.0
      %471 = vmatmul.mubr.f32.gmra.mxu0 %v396
      %v472 = vpop.f32.mrf.mxu0
      %v473 = vadd.f32 0.0, %v472
      %v474 = vpop.f32.mrf.mxu0
      %v475 = vadd.f32 0.0, %v474
      %476 = vmatprep.mubr.f32.mxu0 0.0
      %477 = vmatmul.mubr.f32.gmra.mxu0 %v399
      %v478 = vpop.f32.mrf.mxu0
      %v479 = vadd.f32 0.0, %v478
      %v480 = vpop.f32.mrf.mxu0
      %v481 = vadd.f32 0.0, %v480
      %482 = vdwg.mxu0
      %v485 = vcombine.low %v473, %v475
      %v487 = vsub.f32 %v371, %v485
      %v489 = vlaneseq
      %v490 = vshrl.u32 %v489, 7
      %v491 = vsub.s32 0, %v490
      %v492 = vrot.slane %v389, %v491
      %v493 = vlaneseq
      %v494 = vshrl.u32 %v493, 7
      %v495 = vsub.s32 4, %v494
      %v496 = vrot.slane %v389, %v495
      %v499 = vlaneseq
      %v500 = vshrl.u32 %v499, 7
      %v501 = vsub.s32 0, %v500
      %v502 = vrot.slane %v492, %v501
      %v503 = vlaneseq
      %v504 = vshrl.u32 %v503, 7
      %v505 = vsub.s32 0, %v504
      %v506 = vrot.slane %v496, %v505
      %v509 = vcombine.low %v502, %v506
      %v511 = vmul.f32 %v487, %v509
      %v513 = vcombine.high %v511, %v511
      %v516 = vcombine.high %v487, %v487
      %518 = vmatprep.subr.mxu0 0.0
      %519 = vmatpush1.xpose.msra.mxu0 0.0
      %520 = vmatprep.subr.mxu0 0.0
      %521 = vmatpush1.xpose.msra.mxu0 0.0
      %522 = vmatprep.subr.mxu0 0.0
      %523 = vmatpush1.xpose.msra.mxu0 0.0
      %524 = vmatprep.subr.mxu0 0.0
      %525 = vmatpush1.xpose.msra.mxu0 0.0
      %526 = vmatprep.subr.mxu0 0.0
      %527 = vmatpush1.xpose.msra.mxu0 0.0
      %528 = vmatprep.subr.mxu0 0.0
      %529 = vmatpush1.xpose.msra.mxu0 0.0
      %530 = vmatprep.subr.mxu0 0.0
      %531 = vmatpush1.xpose.msra.mxu0 0.0
      %532 = vmatprep.subr.mxu0 0.0
      %533 = vmatpush1.xpose.msra.mxu0 0.0
      %534 = vmatprep.subr.mxu0 0.0
      %535 = vmatpush1.xpose.msra.mxu0 0.0
      %536 = vmatprep.subr.mxu0 0.0
      %537 = vmatpush1.xpose.msra.mxu0 0.0
      %538 = vmatprep.subr.mxu0 0.0
      %539 = vmatpush1.xpose.msra.mxu0 0.0
      %540 = vmatprep.subr.mxu0 0.0
      %541 = vmatpush1.xpose.msra.mxu0 0.0
      %542 = vmatprep.subr.mxu0 0.0
      %543 = vmatpush1.xpose.msra.mxu0 0.0
      %544 = vmatprep.subr.mxu0 0.0
      %545 = vmatpush1.xpose.msra.mxu0 0.0
      %546 = vmatprep.subr.mxu0 0.0
      %547 = vmatpush1.xpose.msra.mxu0 0.0
      %548 = vmatprep.subr.mxu0 %v516
      %549 = vmatpush1.xpose.msra.mxu0 %v487
      %550 = vmatprep.subr.mxu0 0.0
      %551 = vmatpush2.xpose.msra.mxu0 0.0
      %552 = vmatprep.subr.mxu0 0.0
      %553 = vmatpush2.xpose.msra.mxu0 0.0
      %554 = vmatprep.subr.mxu0 0.0
      %555 = vmatpush2.xpose.msra.mxu0 0.0
      %556 = vmatprep.subr.mxu0 0.0
      %557 = vmatpush2.xpose.msra.mxu0 0.0
      %558 = vmatprep.subr.mxu0 0.0
      %559 = vmatpush2.xpose.msra.mxu0 0.0
      %560 = vmatprep.subr.mxu0 0.0
      %561 = vmatpush2.xpose.msra.mxu0 0.0
      %562 = vmatprep.subr.mxu0 0.0
      %563 = vmatpush2.xpose.msra.mxu0 0.0
      %564 = vmatprep.subr.mxu0 0.0
      %565 = vmatpush2.xpose.msra.mxu0 0.0
      %566 = vmatprep.subr.mxu0 0.0
      %567 = vmatpush2.xpose.msra.mxu0 0.0
      %568 = vmatprep.subr.mxu0 0.0
      %569 = vmatpush2.xpose.msra.mxu0 0.0
      %570 = vmatprep.subr.mxu0 0.0
      %571 = vmatpush2.xpose.msra.mxu0 0.0
      %572 = vmatprep.subr.mxu0 0.0
      %573 = vmatpush2.xpose.msra.mxu0 0.0
      %574 = vmatprep.subr.mxu0 0.0
      %575 = vmatpush2.xpose.msra.mxu0 0.0
      %576 = vmatprep.subr.mxu0 0.0
      %577 = vmatpush2.xpose.msra.mxu0 0.0
      %578 = vmatprep.subr.mxu0 0.0
      %579 = vmatpush2.xpose.msra.mxu0 0.0
      %580 = vmatprep.subr.mxu0 0.0
      %581 = vmatpush2.xpose.msra.mxu0 0.0
      %582 = vmatprep.mubr.f32.mxu0 %v513
      %583 = vmatmul.mubr.f32.gmra.mxu0 %v511
      %v584 = vpop.f32.mrf.mxu0
      %v585 = vadd.f32 0.0, %v584
      %v586 = vpop.f32.mrf.mxu0
      %587 = vdwg.mxu0
      %v588 = vld [vmem:[%s361] sm:$0x7]
      %v589 = vadd.f32 %v588, %v585
      %vm590 = vcmask 18432
      %591 = vst.msk [vmem:[%s361] sm:$0x7] %vm590, %v589
      %v592 = vcombine.high %v473, %v475
      %vm593 = vcmask 1040384
      %vm594 = vcmask 1044484
      %vm595 = vmor %vm593, %vm594
      %v596 = vrot.slane %v485, 7
      %v597 = vrot.slane %v596, 4
      %v598 = vrot.slane %v592, 7
      %v599 = vsel %vm595, %v597, %v598
      %v601 = vsub.f32 %v371, %v599
      %v602 = vlaneseq
      %v603 = vshrl.u32 %v602, 7
      %v604 = vsub.s32 1, %v603
      %v605 = vrot.slane %v389, %v604
      %v606 = vlaneseq
      %v607 = vshrl.u32 %v606, 7
      %v608 = vsub.s32 5, %v607
      %v609 = vrot.slane %v389, %v608
      %v612 = vlaneseq
      %v613 = vshrl.u32 %v612, 7
      %v614 = vsub.s32 1, %v613
      %v615 = vrot.slane %v605, %v614
      %v616 = vlaneseq
      %v617 = vshrl.u32 %v616, 7
      %v618 = vsub.s32 1, %v617
      %v619 = vrot.slane %v609, %v618
      %v622 = vcombine.low %v615, %v619
      %v624 = vmul.f32 %v601, %v622
      %v626 = vcombine.high %v624, %v624
      %v629 = vcombine.high %v601, %v601
      %631 = vmatprep.subr.mxu0 0.0
      %632 = vmatpush1.xpose.msra.mxu0 0.0
      %633 = vmatprep.subr.mxu0 0.0
      %634 = vmatpush1.xpose.msra.mxu0 0.0
      %635 = vmatprep.subr.mxu0 0.0
      %636 = vmatpush1.xpose.msra.mxu0 0.0
      %637 = vmatprep.subr.mxu0 0.0
      %638 = vmatpush1.xpose.msra.mxu0 0.0
      %639 = vmatprep.subr.mxu0 0.0
      %640 = vmatpush1.xpose.msra.mxu0 0.0
      %641 = vmatprep.subr.mxu0 0.0
      %642 = vmatpush1.xpose.msra.mxu0 0.0
      %643 = vmatprep.subr.mxu0 0.0
      %644 = vmatpush1.xpose.msra.mxu0 0.0
      %645 = vmatprep.subr.mxu0 0.0
      %646 = vmatpush1.xpose.msra.mxu0 0.0
      %647 = vmatprep.subr.mxu0 0.0
      %648 = vmatpush1.xpose.msra.mxu0 0.0
      %649 = vmatprep.subr.mxu0 0.0
      %650 = vmatpush1.xpose.msra.mxu0 0.0
      %651 = vmatprep.subr.mxu0 0.0
      %652 = vmatpush1.xpose.msra.mxu0 0.0
      %653 = vmatprep.subr.mxu0 0.0
      %654 = vmatpush1.xpose.msra.mxu0 0.0
      %655 = vmatprep.subr.mxu0 0.0
      %656 = vmatpush1.xpose.msra.mxu0 0.0
      %657 = vmatprep.subr.mxu0 0.0
      %658 = vmatpush1.xpose.msra.mxu0 0.0
      %659 = vmatprep.subr.mxu0 0.0
      %660 = vmatpush1.xpose.msra.mxu0 0.0
      %661 = vmatprep.subr.mxu0 %v629
      %662 = vmatpush1.xpose.msra.mxu0 %v601
      %663 = vmatprep.subr.mxu0 0.0
      %664 = vmatpush2.xpose.msra.mxu0 0.0
      %665 = vmatprep.subr.mxu0 0.0
      %666 = vmatpush2.xpose.msra.mxu0 0.0
      %667 = vmatprep.subr.mxu0 0.0
      %668 = vmatpush2.xpose.msra.mxu0 0.0
      %669 = vmatprep.subr.mxu0 0.0
      %670 = vmatpush2.xpose.msra.mxu0 0.0
      %671 = vmatprep.subr.mxu0 0.0
      %672 = vmatpush2.xpose.msra.mxu0 0.0
      %673 = vmatprep.subr.mxu0 0.0
      %674 = vmatpush2.xpose.msra.mxu0 0.0
      %675 = vmatprep.subr.mxu0 0.0
      %676 = vmatpush2.xpose.msra.mxu0 0.0
      %677 = vmatprep.subr.mxu0 0.0
      %678 = vmatpush2.xpose.msra.mxu0 0.0
      %679 = vmatprep.subr.mxu0 0.0
      %680 = vmatpush2.xpose.msra.mxu0 0.0
      %681 = vmatprep.subr.mxu0 0.0
      %682 = vmatpush2.xpose.msra.mxu0 0.0
      %683 = vmatprep.subr.mxu0 0.0
      %684 = vmatpush2.xpose.msra.mxu0 0.0
      %685 = vmatprep.subr.mxu0 0.0
      %686 = vmatpush2.xpose.msra.mxu0 0.0
      %687 = vmatprep.subr.mxu0 0.0
      %688 = vmatpush2.xpose.msra.mxu0 0.0
      %689 = vmatprep.subr.mxu0 0.0
      %690 = vmatpush2.xpose.msra.mxu0 0.0
      %691 = vmatprep.subr.mxu0 0.0
      %692 = vmatpush2.xpose.msra.mxu0 0.0
      %693 = vmatprep.subr.mxu0 0.0
      %694 = vmatpush2.xpose.msra.mxu0 0.0
      %695 = vmatprep.mubr.f32.mxu0 %v626
      %696 = vmatmul.mubr.f32.gmra.mxu0 %v624
      %v697 = vpop.f32.mrf.mxu0
      %v698 = vadd.f32 0.0, %v697
      %v699 = vpop.f32.mrf.mxu0
      %700 = vdwg.mxu0
      %s701 = scalar_lea.vmem %s361, 4
      %v702 = vld [vmem:[%s701] sm:$0x7]
      %v703 = vadd.f32 %v702, %v698
      %704 = vst.msk [vmem:[%s701] sm:$0x7] %vm590, %v703
      %v707 = vcombine.low %v479, %v481
      %vm708 = vcmask 1041408
      %vm709 = vcmask 1045508
      %vm710 = vmor %vm708, %vm709
      %v711 = vrot.slane %v592, 6
      %v712 = vrot.slane %v711, 4
      %v713 = vrot.slane %v707, 6
      %v714 = vsel %vm710, %v712, %v713
      %v716 = vsub.f32 %v371, %v714
      %v717 = vlaneseq
      %v718 = vshrl.u32 %v717, 7
      %v719 = vsub.s32 2, %v718
      %v720 = vrot.slane %v389, %v719
      %v721 = vlaneseq
      %v722 = vshrl.u32 %v721, 7
      %v723 = vsub.s32 6, %v722
      %v724 = vrot.slane %v389, %v723
      %v727 = vlaneseq
      %v728 = vshrl.u32 %v727, 7
      %v729 = vsub.s32 2, %v728
      %v730 = vrot.slane %v720, %v729
      %v731 = vlaneseq
      %v732 = vshrl.u32 %v731, 7
      %v733 = vsub.s32 2, %v732
      %v734 = vrot.slane %v724, %v733
      %v737 = vcombine.low %v730, %v734
      %v739 = vmul.f32 %v716, %v737
      %v741 = vcombine.high %v739, %v739
      %v744 = vcombine.high %v716, %v716
      %746 = vmatprep.subr.mxu0 0.0
      %747 = vmatpush1.xpose.msra.mxu0 0.0
      %748 = vmatprep.subr.mxu0 0.0
      %749 = vmatpush1.xpose.msra.mxu0 0.0
      %750 = vmatprep.subr.mxu0 0.0
      %751 = vmatpush1.xpose.msra.mxu0 0.0
      %752 = vmatprep.subr.mxu0 0.0
      %753 = vmatpush1.xpose.msra.mxu0 0.0
      %754 = vmatprep.subr.mxu0 0.0
      %755 = vmatpush1.xpose.msra.mxu0 0.0
      %756 = vmatprep.subr.mxu0 0.0
      %757 = vmatpush1.xpose.msra.mxu0 0.0
      %758 = vmatprep.subr.mxu0 0.0
      %759 = vmatpush1.xpose.msra.mxu0 0.0
      %760 = vmatprep.subr.mxu0 0.0
      %761 = vmatpush1.xpose.msra.mxu0 0.0
      %762 = vmatprep.subr.mxu0 0.0
      %763 = vmatpush1.xpose.msra.mxu0 0.0
      %764 = vmatprep.subr.mxu0 0.0
      %765 = vmatpush1.xpose.msra.mxu0 0.0
      %766 = vmatprep.subr.mxu0 0.0
      %767 = vmatpush1.xpose.msra.mxu0 0.0
      %768 = vmatprep.subr.mxu0 0.0
      %769 = vmatpush1.xpose.msra.mxu0 0.0
      %770 = vmatprep.subr.mxu0 0.0
      %771 = vmatpush1.xpose.msra.mxu0 0.0
      %772 = vmatprep.subr.mxu0 0.0
      %773 = vmatpush1.xpose.msra.mxu0 0.0
      %774 = vmatprep.subr.mxu0 0.0
      %775 = vmatpush1.xpose.msra.mxu0 0.0
      %776 = vmatprep.subr.mxu0 %v744
      %777 = vmatpush1.xpose.msra.mxu0 %v716
      %778 = vmatprep.subr.mxu0 0.0
      %779 = vmatpush2.xpose.msra.mxu0 0.0
      %780 = vmatprep.subr.mxu0 0.0
      %781 = vmatpush2.xpose.msra.mxu0 0.0
      %782 = vmatprep.subr.mxu0 0.0
      %783 = vmatpush2.xpose.msra.mxu0 0.0
      %784 = vmatprep.subr.mxu0 0.0
      %785 = vmatpush2.xpose.msra.mxu0 0.0
      %786 = vmatprep.subr.mxu0 0.0
      %787 = vmatpush2.xpose.msra.mxu0 0.0
      %788 = vmatprep.subr.mxu0 0.0
      %789 = vmatpush2.xpose.msra.mxu0 0.0
      %790 = vmatprep.subr.mxu0 0.0
      %791 = vmatpush2.xpose.msra.mxu0 0.0
      %792 = vmatprep.subr.mxu0 0.0
      %793 = vmatpush2.xpose.msra.mxu0 0.0
      %794 = vmatprep.subr.mxu0 0.0
      %795 = vmatpush2.xpose.msra.mxu0 0.0
      %796 = vmatprep.subr.mxu0 0.0
      %797 = vmatpush2.xpose.msra.mxu0 0.0
      %798 = vmatprep.subr.mxu0 0.0
      %799 = vmatpush2.xpose.msra.mxu0 0.0
      %800 = vmatprep.subr.mxu0 0.0
      %801 = vmatpush2.xpose.msra.mxu0 0.0
      %802 = vmatprep.subr.mxu0 0.0
      %803 = vmatpush2.xpose.msra.mxu0 0.0
      %804 = vmatprep.subr.mxu0 0.0
      %805 = vmatpush2.xpose.msra.mxu0 0.0
      %806 = vmatprep.subr.mxu0 0.0
      %807 = vmatpush2.xpose.msra.mxu0 0.0
      %808 = vmatprep.subr.mxu0 0.0
      %809 = vmatpush2.xpose.msra.mxu0 0.0
      %810 = vmatprep.mubr.f32.mxu0 %v741
      %811 = vmatmul.mubr.f32.gmra.mxu0 %v739
      %v812 = vpop.f32.mrf.mxu0
      %v813 = vadd.f32 0.0, %v812
      %v814 = vpop.f32.mrf.mxu0
      %815 = vdwg.mxu0
      %s816 = scalar_lea.vmem %s361, 8
      %v817 = vld [vmem:[%s816] sm:$0x7]
      %v818 = vadd.f32 %v817, %v813
      %819 = vst.msk [vmem:[%s816] sm:$0x7] %vm590, %v818
      %v820 = vrot.slane %v707, 5
      %v821 = vrot.slane %v820, 4
      %v823 = vsub.f32 %v371, %v821
      %v824 = vlaneseq
      %v825 = vshrl.u32 %v824, 7
      %v826 = vsub.s32 3, %v825
      %v827 = vrot.slane %v389, %v826
      %v828 = vlaneseq
      %v829 = vshrl.u32 %v828, 7
      %v830 = vsub.s32 7, %v829
      %v831 = vrot.slane %v389, %v830
      %v834 = vlaneseq
      %v835 = vshrl.u32 %v834, 7
      %v836 = vsub.s32 3, %v835
      %v837 = vrot.slane %v827, %v836
      %v838 = vlaneseq
      %v839 = vshrl.u32 %v838, 7
      %v840 = vsub.s32 3, %v839
      %v841 = vrot.slane %v831, %v840
      %v844 = vcombine.low %v837, %v841
      %v846 = vmul.f32 %v823, %v844
      %v848 = vcombine.high %v846, %v846
      %v851 = vcombine.high %v823, %v823
      %853 = vmatprep.subr.mxu0 0.0
      %854 = vmatpush1.xpose.msra.mxu0 0.0
      %855 = vmatprep.subr.mxu0 0.0
      %856 = vmatpush1.xpose.msra.mxu0 0.0
      %857 = vmatprep.subr.mxu0 0.0
      %858 = vmatpush1.xpose.msra.mxu0 0.0
      %859 = vmatprep.subr.mxu0 0.0
      %860 = vmatpush1.xpose.msra.mxu0 0.0
      %861 = vmatprep.subr.mxu0 0.0
      %862 = vmatpush1.xpose.msra.mxu0 0.0
      %863 = vmatprep.subr.mxu0 0.0
      %864 = vmatpush1.xpose.msra.mxu0 0.0
      %865 = vmatprep.subr.mxu0 0.0
      %866 = vmatpush1.xpose.msra.mxu0 0.0
      %867 = vmatprep.subr.mxu0 0.0
      %868 = vmatpush1.xpose.msra.mxu0 0.0
      %869 = vmatprep.subr.mxu0 0.0
      %870 = vmatpush1.xpose.msra.mxu0 0.0
      %871 = vmatprep.subr.mxu0 0.0
      %872 = vmatpush1.xpose.msra.mxu0 0.0
      %873 = vmatprep.subr.mxu0 0.0
      %874 = vmatpush1.xpose.msra.mxu0 0.0
      %875 = vmatprep.subr.mxu0 0.0
      %876 = vmatpush1.xpose.msra.mxu0 0.0
      %877 = vmatprep.subr.mxu0 0.0
      %878 = vmatpush1.xpose.msra.mxu0 0.0
      %879 = vmatprep.subr.mxu0 0.0
      %880 = vmatpush1.xpose.msra.mxu0 0.0
      %881 = vmatprep.subr.mxu0 0.0
      %882 = vmatpush1.xpose.msra.mxu0 0.0
      %883 = vmatprep.subr.mxu0 %v851
      %884 = vmatpush1.xpose.msra.mxu0 %v823
      %885 = vmatprep.subr.mxu0 0.0
      %886 = vmatpush2.xpose.msra.mxu0 0.0
      %887 = vmatprep.subr.mxu0 0.0
      %888 = vmatpush2.xpose.msra.mxu0 0.0
      %889 = vmatprep.subr.mxu0 0.0
      %890 = vmatpush2.xpose.msra.mxu0 0.0
      %891 = vmatprep.subr.mxu0 0.0
      %892 = vmatpush2.xpose.msra.mxu0 0.0
      %893 = vmatprep.subr.mxu0 0.0
      %894 = vmatpush2.xpose.msra.mxu0 0.0
      %895 = vmatprep.subr.mxu0 0.0
      %896 = vmatpush2.xpose.msra.mxu0 0.0
      %897 = vmatprep.subr.mxu0 0.0
      %898 = vmatpush2.xpose.msra.mxu0 0.0
      %899 = vmatprep.subr.mxu0 0.0
      %900 = vmatpush2.xpose.msra.mxu0 0.0
      %901 = vmatprep.subr.mxu0 0.0
      %902 = vmatpush2.xpose.msra.mxu0 0.0
      %903 = vmatprep.subr.mxu0 0.0
      %904 = vmatpush2.xpose.msra.mxu0 0.0
      %905 = vmatprep.subr.mxu0 0.0
      %906 = vmatpush2.xpose.msra.mxu0 0.0
      %907 = vmatprep.subr.mxu0 0.0
      %908 = vmatpush2.xpose.msra.mxu0 0.0
      %909 = vmatprep.subr.mxu0 0.0
      %910 = vmatpush2.xpose.msra.mxu0 0.0
      %911 = vmatprep.subr.mxu0 0.0
      %912 = vmatpush2.xpose.msra.mxu0 0.0
      %913 = vmatprep.subr.mxu0 0.0
      %914 = vmatpush2.xpose.msra.mxu0 0.0
      %915 = vmatprep.subr.mxu0 0.0
      %916 = vmatpush2.xpose.msra.mxu0 0.0
      %917 = vmatprep.mubr.f32.mxu0 %v848
      %918 = vmatmul.mubr.f32.gmra.mxu0 %v846
      %v919 = vpop.f32.mrf.mxu0
      %v920 = vadd.f32 0.0, %v919
      %v921 = vpop.f32.mrf.mxu0
      %922 = vdwg.mxu0
      %s923 = scalar_lea.vmem %s361, 12
      %v924 = vld [vmem:[%s923] sm:$0x7]
      %v925 = vadd.f32 %v924, %v920
      %926 = vst.msk [vmem:[%s923] sm:$0x7] %vm590, %v925
      %p927 = scmp.lt.s32.totalorder %s20, 1
      %s928 = scalar_select %p927, %s20, 1
      %s929 = smul.addr %s928, 4
      %s930 = smul.addr %s929, 4
      %s931 = scalar_lea.vmem %s5, %s930
      // Predicated region
      $region45: #{em_mask_generator.7} parent=39 // pred_check
        %p932 = pneg %p182
      $region46: #{em_mask_generator.7} parent=39 // pred_check_branch
        %934 = sbr.rel (%p932) target = $region48
      $region47: #{em_mask_generator.7} parent=39 // pred_region
        _
      $region48: #{em_mask_generator.7} parent=39 // pred_fallthru
        _
    $region40: #{em_mask_generator.7} parent=5 // pred_fallthru
      _
    %p935 = scmp.le.s32.totalorder 2, %s11
    // Predicated region
    $region49: #{em_mask_generator.7} parent=5 // pred_check
      %p936 = pneg %p935
    $region50: #{em_mask_generator.7} parent=5 // pred_check_branch
      %938 = sbr.rel (%p936) target = $region52
    $region51: #{em_mask_generator.7} parent=5 // pred_region
      %s939 = ssub.s32 %s11, 2
      // Predicated region
      $region53: #{em_mask_generator.7} parent=51 // pred_check
        %p940 = pneg %p188
      $region54: #{em_mask_generator.7} parent=51 // pred_check_branch
        %942 = sbr.rel (%p940) target = $region56
      $region55: #{em_mask_generator.7} parent=51 // pred_region
        %p943 = scmp.lt.s32.totalorder %s22, 1
        %s944 = scalar_select %p943, %s22, 1
        %s945 = smul.addr %s944, 4
        %s946 = smul.addr %s945, 4
        %s947 = scalar_lea.vmem %s5, %s946
      $region56: #{em_mask_generator.7} parent=51 // pred_fallthru
        _
    $region52: #{em_mask_generator.7} parent=5 // pred_fallthru
      _
  $region6: #{em_mask_generator.7} parent=0 // loop_footer
    %s15 = sadd.s32 1, %s11
  $region7: #{em_mask_generator.7} parent=0 // loop_footer_branch
    %10 = sbr.rel target = $region3
  $region8: #{em_mask_generator.7} parent=0 // loop_exit
    _

// kernel: custom-call.67
$region0: #{custom-call.67}
  %s0 = inlined_call_operand.vmem [shape: f32[2,4,1,3,3], index: 0, kind: input, shape index: {}]
  %s1 = inlined_call_operand.vmem [shape: f32[2,4,1,3,3], index: 1, kind: output, shape index: {}]
  $region1: #{custom-call.67} parent=0
    #allocation0 [shape = 'u8[4096]{0}', space=vmem, size = 0x1000, scoped, tag = 'operand span for operand 0']
    #allocation1 [shape = 'u8[4096]{0}', space=vmem, size = 0x1000, scoped, tag = 'packed  for operand 0']
    #allocation2 [shape = 'u8[4096]{0}', space=vmem, size = 0x1000, scoped, tag = 'operand span for operand 1']
    #allocation3 [shape = 'u8[4096]{0}', space=vmem, size = 0x1000, scoped, tag = 'packed  for operand 1']
    loop: start=0, step=1, limit=10
    $region2: #{custom-call.67} parent=1 // loop_pre_header
      _
    $region3: #{custom-call.67} parent=1 // loop_header
      %s3 = sphi 0, %s7
      %p4 = scmp.ge.s32.totalorder %s3, 10
      %s10 = sphi 0, %s43
      %s11 = sphi 0, %s39
      %s12 = sphi 0, %s35
      %s13 = sphi 0, %s31
      %s14 = sphi 0, %s27
      %s15 = sphi 0, %s10
      %s16 = sphi 0, %s11
      %s17 = sphi 0, %s12
      %s18 = sphi 0, %s13
      %s19 = sphi 0, %s14
      %s20 = sphi 0, %s15
      %s21 = sphi 0, %s16
      %s22 = sphi 0, %s17
      %s23 = sphi 0, %s18
      %s24 = sphi 0, %s19
    $region4: #{custom-call.67} parent=1 // loop_header_branch
      %6 = sbr.rel (%p4) target = $region8
    $region5: #{custom-call.67} parent=1 // loop_body
      %s8 = ssub.s32 %s3, 1
      %s9 = ssub.s32 %s3, 2
      %s25 = sadd.s32 1, %s14
      %p26 = scmp.ge.s32.totalorder %s25, 1
      %s27 = scalar_select %p26, 0, %s25
      %s28 = sadd.s32 1, %s13
      %s29 = scalar_select %p26, %s28, %s13
      %p30 = scmp.ge.s32.totalorder %s29, 1
      %s31 = scalar_select %p30, 0, %s29
      %s32 = sadd.s32 1, %s12
      %s33 = scalar_select %p30, %s32, %s12
      %p34 = scmp.ge.s32.totalorder %s33, 1
      %s35 = scalar_select %p34, 0, %s33
      %s36 = sadd.s32 1, %s11
      %s37 = scalar_select %p34, %s36, %s11
      %p38 = scmp.ge.s32.totalorder %s37, 4
      %s39 = scalar_select %p38, 0, %s37
      %s40 = sadd.s32 1, %s10
      %s41 = scalar_select %p38, %s40, %s10
      %p42 = scmp.ge.s32.totalorder %s41, 2
      %s43 = scalar_select %p42, 0, %s41
      %p44 = scmp.le.s32.totalorder 1, %s3
      %p45 = scmp.lt.s32.totalorder %s3, 9
      %p46 = pnand %p44, %p45
      %p47 = pneg %p46
      // Predicated region
      $region9: #{custom-call.67} parent=5 // pred_check
        _
      $region10: #{custom-call.67} parent=5 // pred_check_branch
        %49 = sbr.rel (%p46) target = $region12
      $region11: #{custom-call.67} parent=5 // pred_region
        %s50 = ssub.s32 %s3, 1
      $region12: #{custom-call.67} parent=5 // pred_fallthru
        _
      %p51 = scmp.lt.s32.totalorder %s3, 8
      // Predicated region
      $region13: #{custom-call.67} parent=5 // pred_check
        %p52 = pneg %p51
      $region14: #{custom-call.67} parent=5 // pred_check_branch
        %54 = sbr.rel (%p52) target = $region16
      $region15: #{custom-call.67} parent=5 // pred_region
        %s55 = sand.u32 %s3, 1
        %s56 = sand.u32 %s3, 1
        %s57 = smul.addr %s56, 4
        %s58 = scalar_lea.vmem [#allocation1], %s57
        %s59 = sadd.s32 %s14, %s13
        %s60 = sadd.s32 %s59, %s12
        %s61 = sadd.s32 %s60, %s11
        %s62 = smul.addr %s10, 4
        %s63 = sadd.s32 %s61, %s62
        %s64 = smul.addr %s63, 4
        %s65 = scalar_lea.vmem %s0, %s64
        // Predicated region
        $region17: #{custom-call.67} parent=15 // pred_check
          _
        $region18: #{custom-call.67} parent=15 // pred_check_branch
          %67 = sbr.rel (0) target = $region20
        $region19: #{custom-call.67} parent=15 // pred_region
          // Predicated region
          $region21: #{custom-call.67} parent=19 // pred_check
            _
          $region22: #{custom-call.67} parent=19 // pred_check_branch
            %69 = sbr.rel target = $region24
          $region23: #{custom-call.67} parent=19 // pred_region
            // Predicated region
            $region36: #{custom-call.67} parent=23 // pred_check
              _
            $region37: #{custom-call.67} parent=23 // pred_check_branch
              %85 = sbr.rel (0) target = $region39
            $region38: #{custom-call.67} parent=23 // pred_region
              %s87 = ssub.s32 16, 1
              loop: start=0, step=1, limit=1
              $region40: #{custom-call.67} parent=38 // loop_pre_header
                _
              $region41: #{custom-call.67} parent=38 // loop_header
                %s89 = sphi 0, %s93
                %p90 = scmp.ge.s32.totalorder %s89, 1
                %s94 = sphi %s65, %s65
                %s95 = sphi %s58, %s58
              $region42: #{custom-call.67} parent=38 // loop_header_branch
                %92 = sbr.rel (%p90) target = $region46
              $region43: #{custom-call.67} parent=38 // loop_body
                %v96 = vld [vmem:[%s94] sm:%s87]
                %97 = vst [vmem:[%s95] sm:%s87] %v96
              $region44: #{custom-call.67} parent=38 // loop_footer
                %s93 = sadd.s32 1, %s89
              $region45: #{custom-call.67} parent=38 // loop_footer_branch
                %88 = sbr.rel target = $region41
              $region46: #{custom-call.67} parent=38 // loop_exit
                _
            $region39: #{custom-call.67} parent=23 // pred_fallthru
              _
          $region24: #{custom-call.67} parent=19 // pred_fallthru
            _
          // Predicated region
          $region25: #{custom-call.67} parent=19 // pred_check
            _
          $region26: #{custom-call.67} parent=19 // pred_check_branch
            %71 = sbr.rel (0) target = $region28
          $region27: #{custom-call.67} parent=19 // pred_region
            %s73 = ssub.s32 16, 1
            loop: start=0, step=1, limit=1
            $region29: #{custom-call.67} parent=27 // loop_pre_header
              _
            $region30: #{custom-call.67} parent=27 // loop_header
              %s75 = sphi 0, %s79
              %p76 = scmp.ge.s32.totalorder %s75, 1
              %s80 = sphi %s65, %s65
              %s81 = sphi %s58, %s58
            $region31: #{custom-call.67} parent=27 // loop_header_branch
              %78 = sbr.rel (%p76) target = $region35
            $region32: #{custom-call.67} parent=27 // loop_body
              %v82 = vld [vmem:[%s80] sm:%s73]
              %83 = vst [vmem:[%s81] sm:%s73] %v82
            $region33: #{custom-call.67} parent=27 // loop_footer
              %s79 = sadd.s32 1, %s75
            $region34: #{custom-call.67} parent=27 // loop_footer_branch
              %74 = sbr.rel target = $region30
            $region35: #{custom-call.67} parent=27 // loop_exit
              _
          $region28: #{custom-call.67} parent=19 // pred_fallthru
            _
        $region20: #{custom-call.67} parent=15 // pred_fallthru
          _
        %98 = vnop
      $region16: #{custom-call.67} parent=5 // pred_fallthru
        _
      %p99 = scmp.le.s32.totalorder 1, %s3
      %p100 = scmp.lt.s32.totalorder %s3, 9
      %p101 = pnand %p99, %p100
      %p102 = pneg %p101
      // Predicated region
      $region47: #{custom-call.67} parent=5 // pred_check
        _
      $region48: #{custom-call.67} parent=5 // pred_check_branch
        %104 = sbr.rel (%p101) target = $region50
      $region49: #{custom-call.67} parent=5 // pred_region
        #allocation4 [shape = 'f32[3,3]{1,0}', space=vmem, size = 0x1000, scoped, tag = 'rescaled input a']
        %s105 = ssub.s32 %s3, 1
        %s106 = sand.u32 %s8, 1
        %s107 = sand.u32 %s8, 1
        %s108 = smul.addr %s107, 4
        %s109 = scalar_lea.vmem [#allocation1], %s108
        %s110 = sand.u32 %s8, 1
        %s111 = sand.u32 %s8, 1
        %s112 = smul.addr %s111, 4
        %s113 = scalar_lea.vmem [#allocation1], %s112
        %s114 = sand.u32 %s8, 1
        %s115 = sand.u32 %s8, 1
        %s116 = smul.addr %s115, 4
        %s117 = scalar_lea.vmem [#allocation3], %s116
        %s119 = sshll.u32 1, 4
        %s120 = ssub.s32 %s119, 1
        %v121 = vld [vmem:[%s113] sm:%s120]
        %122 = vst [vmem:[#allocation0] sm:%s120] %v121
        %v123 = vlaneseq
        %v124 = vand.u32 %v123, 127
        %vm125 = vcmp.lt.s32.totalorder %v124, 3
        %v126 = vlaneseq
        %v127 = vshrl.u32 %v126, 7
        %vm129 = vcmp.eq.s32.totalorder %v127, %v124
        %v130 = vld [vmem:[#allocation0] sm:$0xff]
        %v131 = vsel %vm129, %v130, 0.0
        %132 = vadd.xlane.f32.xlu0 %v131
        %v133 = vpop.xlane.xlu0 %132
        %vm134 = vcmp.le.s32.totalorder %v127, %v124
        %vm135 = vmand %vm134, %vm125
        %v136 = vsel %vm135, %v130, 0.0
        %v137 = vrcp.pop %v133
        %v138 = vmul.f32 %v136, %v137
        %139 = vst [vmem:[#allocation4] sm:$0xff] %v138
        %v140 = vlaneseq
        %v141 = vand.u32 %v140, 127
        %v142 = vlaneseq
        %v143 = vshrl.u32 %v142, 7
        %vm145 = vcmp.eq.s32.totalorder %v141, %v143
        %v146 = vlaneseq
        %v147 = vand.u32 %v146, 127
        %vm148 = vcmp.eq.s32.totalorder %v147, 2
        %v149 = vsel %vm148, 1.0, -1.0
        %v150 = vsel %vm145, %v149, 0.0
        %s151 = scalar_lea.vmem [#allocation4], 1
        %v152 = vld [vmem:[%s151] ss:$0 sm:$0xff]
        %v153 = vxor.u32 %v152, 2147483648
        %v154 = vlaneseq
        %v155 = vand.u32 %v154, 127
        %vm156 = vcmp.eq.s32.totalorder %v155, 1
        %v157 = vmul.f32 %v153, %v150
        %158 = vadd.xlane.f32.xlu0 %v157
        %v159 = vpop.xlane.xlu0 %158
        %v160 = vsel %vm156, %v159, %v150
        %v161 = vld [vmem:[#allocation4] ss:$0 sm:$0xff]
        %v162 = vxor.u32 %v161, 2147483648
        %v163 = vlaneseq
        %v164 = vand.u32 %v163, 127
        %vm165 = vcmp.eq.s32.totalorder %v164, 0
        %v166 = vmul.f32 %v162, %v160
        %167 = vadd.xlane.f32.xlu0 %v166
        %v168 = vpop.xlane.xlu0 %167
        %v169 = vsel %vm165, %v168, %v160
        %v170 = vrcp.pop %v133
        %v171 = vmul.f32 %v169, %v170
        %vm172 = vweird.f32 %v133
        %v173 = vsel %vm172, %v169, %v171
        %174 = vst [vmem:[#allocation2] sm:$0xff] %v173
        %s176 = sshll.u32 1, 4
        %s177 = ssub.s32 %s176, 1
        %v179 = vld [vmem:[#allocation2] sm:%s177]
        %s180 = sshll.u32 1, 4
        %s181 = ssub.s32 %s180, 1
        %182 = vst [vmem:[%s117] sm:%s181] %v179
        %s183 = sand.u32 %s8, 1
        %s184 = sand.u32 %s8, 1
        %s185 = smul.addr %s184, 4
        %s186 = scalar_lea.vmem [#allocation3], %s185
        %s187 = sadd.s32 %s19, %s18
        %s188 = sadd.s32 %s187, %s17
        %s189 = sadd.s32 %s188, %s16
        %s190 = smul.addr %s15, 4
        %s191 = sadd.s32 %s189, %s190
        %s192 = smul.addr %s191, 4
        %s193 = scalar_lea.vmem %s1, %s192
        // Predicated region
        $region51: #{custom-call.67} parent=49 // pred_check
          _
        $region52: #{custom-call.67} parent=49 // pred_check_branch
          %195 = sbr.rel (0) target = $region54
        $region53: #{custom-call.67} parent=49 // pred_region
          // Predicated region
          $region55: #{custom-call.67} parent=53 // pred_check
            _
          $region56: #{custom-call.67} parent=53 // pred_check_branch
            %197 = sbr.rel target = $region58
          $region57: #{custom-call.67} parent=53 // pred_region
            // Predicated region
            $region70: #{custom-call.67} parent=57 // pred_check
              _
            $region71: #{custom-call.67} parent=57 // pred_check_branch
              %213 = sbr.rel (0) target = $region73
            $region72: #{custom-call.67} parent=57 // pred_region
              %s215 = ssub.s32 16, 1
              loop: start=0, step=1, limit=1
              $region74: #{custom-call.67} parent=72 // loop_pre_header
                _
              $region75: #{custom-call.67} parent=72 // loop_header
                %s217 = sphi 0, %s221
                %p218 = scmp.ge.s32.totalorder %s217, 1
                %s222 = sphi %s186, %s186
                %s223 = sphi %s193, %s193
              $region76: #{custom-call.67} parent=72 // loop_header_branch
                %220 = sbr.rel (%p218) target = $region80
              $region77: #{custom-call.67} parent=72 // loop_body
                %v224 = vld [vmem:[%s222] sm:%s215]
                %225 = vst [vmem:[%s223] sm:%s215] %v224
              $region78: #{custom-call.67} parent=72 // loop_footer
                %s221 = sadd.s32 1, %s217
              $region79: #{custom-call.67} parent=72 // loop_footer_branch
                %216 = sbr.rel target = $region75
              $region80: #{custom-call.67} parent=72 // loop_exit
                _
            $region73: #{custom-call.67} parent=57 // pred_fallthru
              _
          $region58: #{custom-call.67} parent=53 // pred_fallthru
            _
          // Predicated region
          $region59: #{custom-call.67} parent=53 // pred_check
            _
          $region60: #{custom-call.67} parent=53 // pred_check_branch
            %199 = sbr.rel (0) target = $region62
          $region61: #{custom-call.67} parent=53 // pred_region
            %s201 = ssub.s32 16, 1
            loop: start=0, step=1, limit=1
            $region63: #{custom-call.67} parent=61 // loop_pre_header
              _
            $region64: #{custom-call.67} parent=61 // loop_header
              %s203 = sphi 0, %s207
              %p204 = scmp.ge.s32.totalorder %s203, 1
              %s208 = sphi %s186, %s186
              %s209 = sphi %s193, %s193
            $region65: #{custom-call.67} parent=61 // loop_header_branch
              %206 = sbr.rel (%p204) target = $region69
            $region66: #{custom-call.67} parent=61 // loop_body
              %v210 = vld [vmem:[%s208] sm:%s201]
              %211 = vst [vmem:[%s209] sm:%s201] %v210
            $region67: #{custom-call.67} parent=61 // loop_footer
              %s207 = sadd.s32 1, %s203
            $region68: #{custom-call.67} parent=61 // loop_footer_branch
              %202 = sbr.rel target = $region64
            $region69: #{custom-call.67} parent=61 // loop_exit
              _
          $region62: #{custom-call.67} parent=53 // pred_fallthru
            _
        $region54: #{custom-call.67} parent=49 // pred_fallthru
          _
        %226 = vnop
      $region50: #{custom-call.67} parent=5 // pred_fallthru
        _
      %p227 = scmp.le.s32.totalorder 2, %s3
      // Predicated region
      $region81: #{custom-call.67} parent=5 // pred_check
        %p228 = pneg %p227
      $region82: #{custom-call.67} parent=5 // pred_check_branch
        %230 = sbr.rel (%p228) target = $region84
      $region83: #{custom-call.67} parent=5 // pred_region
        %s231 = ssub.s32 %s3, 2
        %s232 = sand.u32 %s9, 1
        %s233 = sand.u32 %s9, 1
        %s234 = smul.addr %s233, 4
        %s235 = scalar_lea.vmem [#allocation3], %s234
      $region84: #{custom-call.67} parent=5 // pred_fallthru
        _
    $region6: #{custom-call.67} parent=1 // loop_footer
      %s7 = sadd.s32 1, %s3
    $region7: #{custom-call.67} parent=1 // loop_footer_branch
      %2 = sbr.rel target = $region3
    $region8: #{custom-call.67} parent=1 // loop_exit
      _

// kernel: em_mask_generator.8
$region0: #{em_mask_generator.8}
  #allocation0 [shape = 'u32[]', space=smem, size = 0x4, offset = 0x4, fixed_abs, tag = 'smem constant byte address 0x4 - core index']
  #allocation1 [shape = 'u32[144,128]{1,0:T(1,128)}', space=vmem, size = 0x12000, scoped, tag = 'internal scratch']
  %s0 = inlined_call_operand.vmem [shape: f32[2,3,256], index: 0, kind: input, shape index: {}]
  %s1 = inlined_call_operand.vmem [shape: f32[2,4,256], index: 1, kind: input, shape index: {}]
  %s2 = inlined_call_operand.vmem [shape: f32[2,12,4], index: 2, kind: input, shape index: {}]
  %s3 = inlined_call_operand.vmem [shape: f32[2,4,3,3], index: 3, kind: input, shape index: {}]
  %s4 = inlined_call_operand.vmem [shape: f32[2,4,1], index: 4, kind: input, shape index: {}]
  %s5 = inlined_call_operand.vmem [shape: f32[2,4,256], index: 5, kind: output, shape index: {}]
  %s6 = sld [smem:[#allocation0]]
  $region53: #{em_mask_generator.8} parent=0
    _
  %s8 = ssub.s32 1, %s6
  %s9 = scalar_select 0, %s8, %s6
  loop: start=0, step=1, limit=4
  $region2: #{em_mask_generator.8} parent=0 // loop_pre_header
    _
  $region3: #{em_mask_generator.8} parent=0 // loop_header
    %s11 = sphi 0, %s15
    %p12 = scmp.ge.s32.totalorder %s11, 4
    %s18 = sphi 0, %s30
    %s19 = sphi 0, %s26
    %s20 = sphi 0, %s18
    %s21 = sphi 0, %s19
    %s22 = sphi 0, %s20
    %s23 = sphi 0, %s21
    %s35 = sphi 0, %s37
    %s38 = sphi 0, %s35
    %s39 = sphi 0, %s38
    %s55 = sphi 0, %s39
    %s63 = sphi 0, %s65
    %s66 = sphi 0, %s63
    %s67 = sphi 0, %s66
    %s83 = sphi 0, %s67
    %s89 = sphi 0, %s91
    %s92 = sphi 0, %s89
    %s93 = sphi 0, %s92
    %s109 = sphi 0, %s93
    %s115 = sphi 0, %s117
    %s118 = sphi 0, %s115
    %s119 = sphi 0, %s118
    %s135 = sphi 0, %s119
    %s141 = sphi 0, %s143
    %s144 = sphi 0, %s141
    %s145 = sphi 0, %s144
    %s161 = sphi 0, %s145
    %s169 = sphi 0, %s171
    %s172 = sphi 0, %s169
    %s173 = sphi 0, %s172
    %s189 = sphi 0, %s173
  $region4: #{em_mask_generator.8} parent=0 // loop_header_branch
    %14 = sbr.rel (%p12) target = $region8
  $region5: #{em_mask_generator.8} parent=0 // loop_body
    %s16 = ssub.s32 %s11, 1
    %s17 = ssub.s32 %s11, 2
    %s24 = sadd.s32 1, %s19
    %p25 = scmp.ge.s32.totalorder %s24, 1
    %s26 = scalar_select %p25, 0, %s24
    %s27 = sadd.s32 1, %s18
    %s28 = scalar_select %p25, %s27, %s18
    %p29 = scmp.ge.s32.totalorder %s28, 2
    %s30 = scalar_select %p29, 0, %s28
    %s31 = ssub.s32 %s18, %s30
    %s32 = ssub.s32 %s19, %s26
    %s33 = sor.u32 %s31, %s32
    %p34 = scmp.eq.s32.totalorder %s33, 0
    %s36 = sadd.s32 %s35, 1
    %s37 = scalar_select %p34, %s35, %s36
    %p40 = pneg %p34
    %p41 = scmp.eq.s32.totalorder %s11, 1
    %p42 = por %p40, %p41
    %p43 = scmp.ne.s32.totalorder %s35, %s38
    %p44 = scmp.eq.s32.totalorder %s11, 0
    %p45 = por %p43, %p44
    %p46 = scmp.ne.s32.totalorder %s35, %s38
    %p47 = scmp.eq.s32.totalorder %s16, 1
    %p48 = por %p46, %p47
    %p49 = scmp.ne.s32.totalorder %s38, %s39
    %p50 = scmp.eq.s32.totalorder %s16, 0
    %p51 = por %p49, %p50
    %p52 = scmp.ne.s32.totalorder %s38, %s39
    %p53 = scmp.eq.s32.totalorder %s17, 1
    %p54 = por %p52, %p53
    %p56 = scmp.ne.s32.totalorder %s39, %s55
    %p57 = scmp.eq.s32.totalorder %s17, 0
    %p58 = por %p56, %p57
    %s59 = ssub.s32 %s18, %s30
    %s60 = ssub.s32 %s19, %s26
    %s61 = sor.u32 %s59, %s60
    %p62 = scmp.eq.s32.totalorder %s61, 0
    %s64 = sadd.s32 %s63, 1
    %s65 = scalar_select %p62, %s63, %s64
    %p68 = pneg %p62
    %p69 = scmp.eq.s32.totalorder %s11, 1
    %p70 = por %p68, %p69
    %p71 = scmp.ne.s32.totalorder %s63, %s66
    %p72 = scmp.eq.s32.totalorder %s11, 0
    %p73 = por %p71, %p72
    %p74 = scmp.ne.s32.totalorder %s63, %s66
    %p75 = scmp.eq.s32.totalorder %s16, 1
    %p76 = por %p74, %p75
    %p77 = scmp.ne.s32.totalorder %s66, %s67
    %p78 = scmp.eq.s32.totalorder %s16, 0
    %p79 = por %p77, %p78
    %p80 = scmp.ne.s32.totalorder %s66, %s67
    %p81 = scmp.eq.s32.totalorder %s17, 1
    %p82 = por %p80, %p81
    %p84 = scmp.ne.s32.totalorder %s67, %s83
    %p85 = scmp.eq.s32.totalorder %s17, 0
    %p86 = por %p84, %p85
    %s87 = ssub.s32 %s18, %s30
    %p88 = scmp.eq.s32.totalorder %s87, 0
    %s90 = sadd.s32 %s89, 1
    %s91 = scalar_select %p88, %s89, %s90
    %p94 = pneg %p88
    %p95 = scmp.eq.s32.totalorder %s11, 1
    %p96 = por %p94, %p95
    %p97 = scmp.ne.s32.totalorder %s89, %s92
    %p98 = scmp.eq.s32.totalorder %s11, 0
    %p99 = por %p97, %p98
    %p100 = scmp.ne.s32.totalorder %s89, %s92
    %p101 = scmp.eq.s32.totalorder %s16, 1
    %p102 = por %p100, %p101
    %p103 = scmp.ne.s32.totalorder %s92, %s93
    %p104 = scmp.eq.s32.totalorder %s16, 0
    %p105 = por %p103, %p104
    %p106 = scmp.ne.s32.totalorder %s92, %s93
    %p107 = scmp.eq.s32.totalorder %s17, 1
    %p108 = por %p106, %p107
    %p110 = scmp.ne.s32.totalorder %s93, %s109
    %p111 = scmp.eq.s32.totalorder %s17, 0
    %p112 = por %p110, %p111
    %s113 = ssub.s32 %s18, %s30
    %p114 = scmp.eq.s32.totalorder %s113, 0
    %s116 = sadd.s32 %s115, 1
    %s117 = scalar_select %p114, %s115, %s116
    %p120 = pneg %p114
    %p121 = scmp.eq.s32.totalorder %s11, 1
    %p122 = por %p120, %p121
    %p123 = scmp.ne.s32.totalorder %s115, %s118
    %p124 = scmp.eq.s32.totalorder %s11, 0
    %p125 = por %p123, %p124
    %p126 = scmp.ne.s32.totalorder %s115, %s118
    %p127 = scmp.eq.s32.totalorder %s16, 1
    %p128 = por %p126, %p127
    %p129 = scmp.ne.s32.totalorder %s118, %s119
    %p130 = scmp.eq.s32.totalorder %s16, 0
    %p131 = por %p129, %p130
    %p132 = scmp.ne.s32.totalorder %s118, %s119
    %p133 = scmp.eq.s32.totalorder %s17, 1
    %p134 = por %p132, %p133
    %p136 = scmp.ne.s32.totalorder %s119, %s135
    %p137 = scmp.eq.s32.totalorder %s17, 0
    %p138 = por %p136, %p137
    %s139 = ssub.s32 %s18, %s30
    %p140 = scmp.eq.s32.totalorder %s139, 0
    %s142 = sadd.s32 %s141, 1
    %s143 = scalar_select %p140, %s141, %s142
    %p146 = pneg %p140
    %p147 = scmp.eq.s32.totalorder %s11, 1
    %p148 = por %p146, %p147
    %p149 = scmp.ne.s32.totalorder %s141, %s144
    %p150 = scmp.eq.s32.totalorder %s11, 0
    %p151 = por %p149, %p150
    %p152 = scmp.ne.s32.totalorder %s141, %s144
    %p153 = scmp.eq.s32.totalorder %s16, 1
    %p154 = por %p152, %p153
    %p155 = scmp.ne.s32.totalorder %s144, %s145
    %p156 = scmp.eq.s32.totalorder %s16, 0
    %p157 = por %p155, %p156
    %p158 = scmp.ne.s32.totalorder %s144, %s145
    %p159 = scmp.eq.s32.totalorder %s17, 1
    %p160 = por %p158, %p159
    %p162 = scmp.ne.s32.totalorder %s145, %s161
    %p163 = scmp.eq.s32.totalorder %s17, 0
    %p164 = por %p162, %p163
    %s165 = ssub.s32 %s18, %s30
    %s166 = ssub.s32 %s19, %s26
    %s167 = sor.u32 %s165, %s166
    %p168 = scmp.eq.s32.totalorder %s167, 0
    %s170 = sadd.s32 %s169, 1
    %s171 = scalar_select %p168, %s169, %s170
    %p174 = pneg %p168
    %p175 = scmp.eq.s32.totalorder %s11, 1
    %p176 = por %p174, %p175
    %p177 = scmp.ne.s32.totalorder %s169, %s172
    %p178 = scmp.eq.s32.totalorder %s11, 0
    %p179 = por %p177, %p178
    %p180 = scmp.ne.s32.totalorder %s169, %s172
    %p181 = scmp.eq.s32.totalorder %s16, 1
    %p182 = por %p180, %p181
    %p183 = scmp.ne.s32.totalorder %s172, %s173
    %p184 = scmp.eq.s32.totalorder %s16, 0
    %p185 = por %p183, %p184
    %p186 = scmp.ne.s32.totalorder %s172, %s173
    %p187 = scmp.eq.s32.totalorder %s17, 1
    %p188 = por %p186, %p187
    %p190 = scmp.ne.s32.totalorder %s173, %s189
    %p191 = scmp.eq.s32.totalorder %s17, 0
    %p192 = por %p190, %p191
    %p193 = scmp.le.s32.totalorder 1, %s11
    %p194 = scmp.lt.s32.totalorder %s11, 3
    %p195 = pnand %p193, %p194
    %p196 = pneg %p195
    // Predicated region
    $region9: #{em_mask_generator.8} parent=5 // pred_check
      _
    $region10: #{em_mask_generator.8} parent=5 // pred_check_branch
      %198 = sbr.rel (%p195) target = $region12
    $region11: #{em_mask_generator.8} parent=5 // pred_region
      %s199 = ssub.s32 %s11, 1
    $region12: #{em_mask_generator.8} parent=5 // pred_fallthru
      _
    %p200 = scmp.lt.s32.totalorder %s11, 2
    // Predicated region
    $region13: #{em_mask_generator.8} parent=5 // pred_check
      %p201 = pneg %p200
    $region14: #{em_mask_generator.8} parent=5 // pred_check_branch
      %203 = sbr.rel (%p201) target = $region16
    $region15: #{em_mask_generator.8} parent=5 // pred_region
      // Predicated region
      $region17: #{em_mask_generator.8} parent=15 // pred_check
        %p204 = pneg %p45
      $region18: #{em_mask_generator.8} parent=15 // pred_check_branch
        %206 = sbr.rel (%p204) target = $region20
      $region19: #{em_mask_generator.8} parent=15 // pred_region
        %s207 = smul.u32 2, %s19
        %p208 = scmp.lt.s32.totalorder %s18, 1
        %s209 = scalar_select %p208, %s18, 1
        %p210 = scmp.lt.s32.totalorder %s207, 1
        %s211 = scalar_select %p210, %s207, 1
        %s212 = smul.addr %s209, 2
        %s213 = sadd.s32 %s211, %s212
        %s214 = smul.addr %s213, 4
        %s215 = scalar_lea.vmem %s0, %s214
        %s216 = smul.u32 2, %s19
      $region20: #{em_mask_generator.8} parent=15 // pred_fallthru
        _
      // Predicated region
      $region21: #{em_mask_generator.8} parent=15 // pred_check
        %p217 = pneg %p73
      $region22: #{em_mask_generator.8} parent=15 // pred_check_branch
        %219 = sbr.rel (%p217) target = $region24
      $region23: #{em_mask_generator.8} parent=15 // pred_region
        %s220 = smul.u32 2, %s19
        %p221 = scmp.lt.s32.totalorder %s18, 1
        %s222 = scalar_select %p221, %s18, 1
        %p223 = scmp.lt.s32.totalorder %s220, 1
        %s224 = scalar_select %p223, %s220, 1
        %s225 = smul.addr %s222, 2
        %s226 = sadd.s32 %s224, %s225
        %s227 = smul.addr %s226, 4
        %s228 = scalar_lea.vmem %s1, %s227
        %s229 = smul.u32 2, %s19
      $region24: #{em_mask_generator.8} parent=15 // pred_fallthru
        _
      // Predicated region
      $region25: #{em_mask_generator.8} parent=15 // pred_check
        %p230 = pneg %p99
      $region26: #{em_mask_generator.8} parent=15 // pred_check_branch
        %232 = sbr.rel (%p230) target = $region28
      $region27: #{em_mask_generator.8} parent=15 // pred_region
        %p233 = scmp.lt.s32.totalorder %s18, 1
        %s234 = scalar_select %p233, %s18, 1
        %s235 = smul.addr %s234, 2
        %s236 = smul.addr %s235, 8
        %s237 = scalar_lea.vmem %s2, %s236
      $region28: #{em_mask_generator.8} parent=15 // pred_fallthru
        _
      // Predicated region
      $region29: #{em_mask_generator.8} parent=15 // pred_check
        %p238 = pneg %p125
      $region30: #{em_mask_generator.8} parent=15 // pred_check_branch
        %240 = sbr.rel (%p238) target = $region32
      $region31: #{em_mask_generator.8} parent=15 // pred_region
        %p241 = scmp.lt.s32.totalorder %s18, 1
        %s242 = scalar_select %p241, %s18, 1
        %s243 = smul.addr %s242, 4
        %s244 = smul.addr %s243, 4
        %s245 = scalar_lea.vmem %s3, %s244
      $region32: #{em_mask_generator.8} parent=15 // pred_fallthru
        _
      // Predicated region
      $region33: #{em_mask_generator.8} parent=15 // pred_check
        %p246 = pneg %p151
      $region34: #{em_mask_generator.8} parent=15 // pred_check_branch
        %248 = sbr.rel (%p246) target = $region36
      $region35: #{em_mask_generator.8} parent=15 // pred_region
        %p249 = scmp.lt.s32.totalorder %s18, 1
        %s250 = scalar_select %p249, %s18, 1
        %s251 = smul.addr %s250, 4
        %s252 = scalar_lea.vmem %s4, %s251
      $region36: #{em_mask_generator.8} parent=15 // pred_fallthru
        _
    $region16: #{em_mask_generator.8} parent=5 // pred_fallthru
      _
    %p253 = scmp.le.s32.totalorder 1, %s11
    %p254 = scmp.lt.s32.totalorder %s11, 3
    %p255 = pnand %p253, %p254
    %p256 = pneg %p255
    // Predicated region
    $region37: #{em_mask_generator.8} parent=5 // pred_check
      _
    $region38: #{em_mask_generator.8} parent=5 // pred_check_branch
      %258 = sbr.rel (%p255) target = $region40
    $region39: #{em_mask_generator.8} parent=5 // pred_region
      %s259 = ssub.s32 %s11, 1
      %s260 = smul.u32 2, %s21
      %p261 = scmp.lt.s32.totalorder %s20, 1
      %s262 = scalar_select %p261, %s20, 1
      %p263 = scmp.lt.s32.totalorder %s260, 1
      %s264 = scalar_select %p263, %s260, 1
      %s265 = smul.addr %s262, 2
      %s266 = sadd.s32 %s264, %s265
      %s267 = smul.addr %s266, 4
      %s268 = scalar_lea.vmem %s0, %s267
      %p269 = pneg %p51
      %p270 = pneg %p48
      %s271 = smul.u32 2, %s21
      %p272 = scmp.lt.s32.totalorder %s20, 1
      %s273 = scalar_select %p272, %s20, 1
      %p274 = scmp.lt.s32.totalorder %s271, 1
      %s275 = scalar_select %p274, %s271, 1
      %s276 = smul.addr %s273, 2
      %s277 = sadd.s32 %s275, %s276
      %s278 = smul.addr %s277, 4
      %s279 = scalar_lea.vmem %s1, %s278
      %p280 = pneg %p79
      %p281 = pneg %p76
      %p282 = scmp.lt.s32.totalorder %s20, 1
      %s283 = scalar_select %p282, %s20, 1
      %s284 = smul.addr %s283, 2
      %s285 = smul.addr %s284, 8
      %s286 = scalar_lea.vmem %s2, %s285
      %p287 = pneg %p105
      %p288 = pneg %p102
      %p289 = scmp.lt.s32.totalorder %s20, 1
      %s290 = scalar_select %p289, %s20, 1
      %s291 = smul.addr %s290, 4
      %s292 = smul.addr %s291, 4
      %s293 = scalar_lea.vmem %s3, %s292
      %p294 = pneg %p131
      %p295 = pneg %p128
      %p296 = scmp.lt.s32.totalorder %s20, 1
      %s297 = scalar_select %p296, %s20, 1
      %s298 = smul.addr %s297, 4
      %s299 = scalar_lea.vmem %s4, %s298
      %p300 = pneg %p157
      %p301 = pneg %p154
      %p302 = pneg %p185
      %p303 = pneg %p182
      %s304 = smul.u32 2, %s21
      %p305 = scmp.lt.s32.totalorder %s20, 1
      %s306 = scalar_select %p305, %s20, 1
      %p307 = scmp.lt.s32.totalorder %s304, 1
      %s308 = scalar_select %p307, %s304, 1
      %s309 = smul.addr %s306, 2
      %s310 = sadd.s32 %s308, %s309
      %s311 = smul.addr %s310, 4
      %s312 = scalar_lea.vmem %s5, %s311
      %s313 = smul.u32 2, %s21
      %p314 = scmp.lt.s32.totalorder %s20, 1
      %s315 = scalar_select %p314, %s20, 1
      %p316 = scmp.lt.s32.totalorder %s313, 1
      %s317 = scalar_select %p316, %s313, 1
      %s318 = smul.addr %s315, 2
      %s319 = sadd.s32 %s317, %s318
      %s320 = smul.addr %s319, 4
      %s321 = scalar_lea.vmem %s0, %s320
      %s322 = smul.u32 2, %s21
      %s323 = smul.u32 2, %s21
      %p324 = scmp.lt.s32.totalorder %s20, 1
      %s325 = scalar_select %p324, %s20, 1
      %p326 = scmp.lt.s32.totalorder %s323, 1
      %s327 = scalar_select %p326, %s323, 1
      %s328 = smul.addr %s325, 2
      %s329 = sadd.s32 %s327, %s328
      %s330 = smul.addr %s329, 4
      %s331 = scalar_lea.vmem %s1, %s330
      %s332 = smul.u32 2, %s21
      %p333 = scmp.lt.s32.totalorder %s20, 1
      %s334 = scalar_select %p333, %s20, 1
      %s335 = smul.addr %s334, 2
      %s336 = smul.addr %s335, 8
      %s337 = scalar_lea.vmem %s2, %s336
      %p338 = scmp.lt.s32.totalorder %s20, 1
      %s339 = scalar_select %p338, %s20, 1
      %s340 = smul.addr %s339, 4
      %s341 = smul.addr %s340, 4
      %s342 = scalar_lea.vmem %s3, %s341
      %p343 = scmp.lt.s32.totalorder %s20, 1
      %s344 = scalar_select %p343, %s20, 1
      %s345 = smul.addr %s344, 4
      %s346 = scalar_lea.vmem %s4, %s345
      %s347 = smul.u32 2, %s21
      %p348 = scmp.lt.s32.totalorder %s20, 1
      %s349 = scalar_select %p348, %s20, 1
      %p350 = scmp.lt.s32.totalorder %s347, 1
      %s351 = scalar_select %p350, %s347, 1
      %s352 = smul.addr %s349, 2
      %s353 = sadd.s32 %s351, %s352
      %s354 = smul.addr %s353, 4
      %s355 = scalar_lea.vmem %s5, %s354
      %s356 = smul.u32 2, %s21
      %v357 = vld [vmem:[%s321] sm:$0x77]
      %v358 = vld [vmem:[%s331] sm:$0xff]
      %v359 = vld [vmem:[%s337] sm:$0xff]
      %v360 = vld [vmem:[%s337 + $0x8] sm:$0xf]
      %v362 = vcombine.high %v358, %v358
      %vm363 = vcmask 31744
      %v365 = vsel %vm363, %v359, 0
      %v368 = vsel %vm363, %v360, 0
      %vm370 = vcmask 1043456
      %v371 = vsel %vm370, %v358, 0
      %v373 = vsel %vm370, %v362, 0
      %375 = vmatprep.subr.mxu0 0.0
      %376 = vmatpush1.msra.mxu0 0.0
      %377 = vmatprep.subr.mxu0 0.0
      %378 = vmatpush1.msra.mxu0 0.0
      %379 = vmatprep.subr.mxu0 0.0
      %380 = vmatpush1.msra.mxu0 0.0
      %381 = vmatprep.subr.mxu0 0.0
      %382 = vmatpush1.msra.mxu0 0.0
      %383 = vmatprep.subr.mxu0 0.0
      %384 = vmatpush1.msra.mxu0 0.0
      %385 = vmatprep.subr.mxu0 0.0
      %386 = vmatpush1.msra.mxu0 0.0
      %387 = vmatprep.subr.mxu0 0.0
      %388 = vmatpush1.msra.mxu0 0.0
      %389 = vmatprep.subr.mxu0 0.0
      %390 = vmatpush1.msra.mxu0 0.0
      %391 = vmatprep.subr.mxu0 0.0
      %392 = vmatpush1.msra.mxu0 0.0
      %393 = vmatprep.subr.mxu0 0.0
      %394 = vmatpush1.msra.mxu0 0.0
      %395 = vmatprep.subr.mxu0 0.0
      %396 = vmatpush1.msra.mxu0 0.0
      %397 = vmatprep.subr.mxu0 0.0
      %398 = vmatpush1.msra.mxu0 0.0
      %399 = vmatprep.subr.mxu0 0.0
      %400 = vmatpush1.msra.mxu0 0.0
      %401 = vmatprep.subr.mxu0 0.0
      %402 = vmatpush1.msra.mxu0 0.0
      %403 = vmatprep.subr.mxu0 0.0
      %404 = vmatpush1.msra.mxu0 0.0
      %405 = vmatprep.subr.mxu0 %v373
      %406 = vmatpush1.msra.mxu0 %v371
      %407 = vmatprep.subr.mxu0 0.0
      %408 = vmatpush2.msra.mxu0 0.0
      %409 = vmatprep.subr.mxu0 0.0
      %410 = vmatpush2.msra.mxu0 0.0
      %411 = vmatprep.subr.mxu0 0.0
      %412 = vmatpush2.msra.mxu0 0.0
      %413 = vmatprep.subr.mxu0 0.0
      %414 = vmatpush2.msra.mxu0 0.0
      %415 = vmatprep.subr.mxu0 0.0
      %416 = vmatpush2.msra.mxu0 0.0
      %417 = vmatprep.subr.mxu0 0.0
      %418 = vmatpush2.msra.mxu0 0.0
      %419 = vmatprep.subr.mxu0 0.0
      %420 = vmatpush2.msra.mxu0 0.0
      %421 = vmatprep.subr.mxu0 0.0
      %422 = vmatpush2.msra.mxu0 0.0
      %423 = vmatprep.subr.mxu0 0.0
      %424 = vmatpush2.msra.mxu0 0.0
      %425 = vmatprep.subr.mxu0 0.0
      %426 = vmatpush2.msra.mxu0 0.0
      %427 = vmatprep.subr.mxu0 0.0
      %428 = vmatpush2.msra.mxu0 0.0
      %429 = vmatprep.subr.mxu0 0.0
      %430 = vmatpush2.msra.mxu0 0.0
      %431 = vmatprep.subr.mxu0 0.0
      %432 = vmatpush2.msra.mxu0 0.0
      %433 = vmatprep.subr.mxu0 0.0
      %434 = vmatpush2.msra.mxu0 0.0
      %435 = vmatprep.subr.mxu0 0.0
      %436 = vmatpush2.msra.mxu0 0.0
      %437 = vmatprep.subr.mxu0 0.0
      %438 = vmatpush2.msra.mxu0 0.0
      %439 = vmatprep.mubr.f32.mxu0 0.0
      %440 = vmatmul.mubr.f32.gmra.mxu0 %v365
      %v441 = vpop.f32.mrf.mxu0
      %v442 = vadd.f32 0.0, %v441
      %v443 = vpop.f32.mrf.mxu0
      %v444 = vadd.f32 0.0, %v443
      %445 = vmatprep.mubr.f32.mxu0 0.0
      %446 = vmatmul.mubr.f32.gmra.mxu0 %v368
      %v447 = vpop.f32.mrf.mxu0
      %v448 = vadd.f32 0.0, %v447
      %v449 = vpop.f32.mrf.mxu0
      %v450 = vadd.f32 0.0, %v449
      %451 = vdwg.mxu0
      %v452 = vld [vmem:[%s346] sm:$0xf]
      %v455 = vcombine.low %v442, %v444
      %v457 = vsub.f32 %v357, %v455
      %v458 = vld [vmem:[%s342] sm:$0x7]
      %v459 = vmul.f32 %v457, %v457
      %461 = vset.pattern.permute.xlu0 0
      %462 = vperm.xlu0 %461, %v458
      %v463 = vpop.permute.xlu0 %462
      %v466 = vlaneseq
      %v467 = vshrl.u32 %v466, 7
      %v468 = vsub.s32 0, %v467
      %v469 = vrot.slane %v459, %v468
      %v470 = vlaneseq
      %v471 = vshrl.u32 %v470, 7
      %v472 = vsub.s32 4, %v471
      %v473 = vrot.slane %v459, %v472
      %v476 = vmul.f32 %v463, %v469
      %v477 = vmul.f32 %v463, %v473
      %v478 = vadd.f32 %v476, 0.0
      %v479 = vadd.f32 %v477, 0.0
      %v480 = vmul.f32 %v458, 2.0
      %v482 = vrot.slane %v457, 5
      %v483 = vrot.slane %v482, 4
      %v485 = vmul.f32 %v457, %v483
      %487 = vset.pattern.permute.xlu0 1
      %488 = vperm.xlu0 %487, %v480
      %v489 = vpop.permute.xlu0 %488
      %v492 = vlaneseq
      %v493 = vshrl.u32 %v492, 7
      %v494 = vsub.s32 0, %v493
      %v495 = vrot.slane %v485, %v494
      %v496 = vlaneseq
      %v497 = vshrl.u32 %v496, 7
      %v498 = vsub.s32 4, %v497
      %v499 = vrot.slane %v485, %v498
      %v502 = vmul.f32 %v489, %v495
      %v503 = vmul.f32 %v489, %v499
      %v504 = vadd.f32 %v478, %v502
      %v505 = vadd.f32 %v479, %v503
      %v506 = vrot.slane %v457, 6
      %v507 = vrot.slane %v506, 4
      %v509 = vmul.f32 %v457, %v507
      %510 = vset.pattern.permute.xlu0 2
      %511 = vperm.xlu0 %510, %v480
      %v512 = vpop.permute.xlu0 %511
      %v515 = vlaneseq
      %v516 = vshrl.u32 %v515, 7
      %v517 = vsub.s32 0, %v516
      %v518 = vrot.slane %v509, %v517
      %v519 = vlaneseq
      %v520 = vshrl.u32 %v519, 7
      %v521 = vsub.s32 4, %v520
      %v522 = vrot.slane %v509, %v521
      %v525 = vmul.f32 %v512, %v518
      %v526 = vmul.f32 %v512, %v522
      %v527 = vadd.f32 %v504, %v525
      %v528 = vadd.f32 %v505, %v526
      %529 = vset.pattern.permute.xlu0 1
      %530 = vperm.xlu0 %529, %v458
      %v531 = vpop.permute.xlu0 %530
      %v533 = vlaneseq
      %v534 = vshrl.u32 %v533, 7
      %v535 = vsub.s32 1, %v534
      %v536 = vrot.slane %v459, %v535
      %v537 = vlaneseq
      %v538 = vshrl.u32 %v537, 7
      %v539 = vsub.s32 5, %v538
      %v540 = vrot.slane %v459, %v539
      %v543 = vmul.f32 %v531, %v536
      %v544 = vmul.f32 %v531, %v540
      %v547 = vrot.slane %v543, 1
      %v548 = vrot.slane %v544, 1
      %v551 = vadd.f32 %v527, %v547
      %v552 = vadd.f32 %v528, %v548
      %v553 = vlaneseq
      %v554 = vshrl.u32 %v553, 7
      %v555 = vsub.s32 1, %v554
      %v556 = vrot.slane %v485, %v555
      %v557 = vlaneseq
      %v558 = vshrl.u32 %v557, 7
      %v559 = vsub.s32 5, %v558
      %v560 = vrot.slane %v485, %v559
      %v563 = vmul.f32 %v512, %v556
      %v564 = vmul.f32 %v512, %v560
      %v567 = vrot.slane %v563, 1
      %v568 = vrot.slane %v564, 1
      %v571 = vadd.f32 %v551, %v567
      %v572 = vadd.f32 %v552, %v568
      %573 = vset.pattern.permute.xlu0 2
      %574 = vperm.xlu0 %573, %v458
      %v575 = vpop.permute.xlu0 %574
      %v577 = vlaneseq
      %v578 = vshrl.u32 %v577, 7
      %v579 = vsub.s32 2, %v578
      %v580 = vrot.slane %v459, %v579
      %v581 = vlaneseq
      %v582 = vshrl.u32 %v581, 7
      %v583 = vsub.s32 6, %v582
      %v584 = vrot.slane %v459, %v583
      %v587 = vmul.f32 %v575, %v580
      %v588 = vmul.f32 %v575, %v584
      %v591 = vrot.slane %v587, 2
      %v592 = vrot.slane %v588, 2
      %v595 = vadd.f32 %v571, %v591
      %v596 = vadd.f32 %v572, %v592
      %v597 = vmul.f32 %v595, -0.5
      %v598 = vmul.f32 %v596, -0.5
      %v599 = vmul.f32 %v452, 0.5
      %601 = vset.pattern.permute.xlu0 0
      %602 = vperm.xlu0 %601, %v599
      %v603 = vpop.permute.xlu0 %602
      %v605 = vsub.f32 %v597, %v603
      %v606 = vsub.f32 %v598, %v603
      %v609 = vcombine.low %v605, %v606
      %v611 = vunpack.c.l.s4 1966171168
      %v612 = vunpack.c.0.s8 %v611
      %v613 = vlaneseq
      %v614 = vshrl.u32 %v613, 7
      %v615 = vsub.s32 %v612, %v614
      %v616 = vrot.slane %v609, %v615
      %v618 = vunpack.c.l.s4 1966171168
      %v619 = vunpack.c.0.s8 %v618
      %v620 = vlaneseq
      %v621 = vshrl.u32 %v620, 7
      %v622 = vsub.s32 %v619, %v621
      %v623 = vrot.slane %v616, %v622
      %v625 = vlaneseq
      %vm626 = vcmp.ge.s32.totalorder %v625, 0
      %vm627 = vcmp.lt.s32.totalorder %v625, 256
      %vm628 = vmand %vm626, %vm627
      %629 = vst.msk [vmem:[%s355] ss:$4 sm:$0x3] %vm628, %v623
      %v630 = vcombine.high %v442, %v444
      %vm631 = vcmask 1040384
      %vm632 = vcmask 1044484
      %vm633 = vmor %vm631, %vm632
      %v634 = vrot.slane %v455, 7
      %v635 = vrot.slane %v634, 4
      %v636 = vrot.slane %v630, 7
      %v637 = vsel %vm633, %v635, %v636
      %v639 = vsub.f32 %v357, %v637
      %s640 = scalar_lea.vmem %s342, 4
      %v641 = vld [vmem:[%s640] sm:$0x7]
      %v642 = vmul.f32 %v639, %v639
      %644 = vset.pattern.permute.xlu0 0
      %645 = vperm.xlu0 %644, %v641
      %v646 = vpop.permute.xlu0 %645
      %v649 = vlaneseq
      %v650 = vshrl.u32 %v649, 7
      %v651 = vsub.s32 0, %v650
      %v652 = vrot.slane %v642, %v651
      %v653 = vlaneseq
      %v654 = vshrl.u32 %v653, 7
      %v655 = vsub.s32 4, %v654
      %v656 = vrot.slane %v642, %v655
      %v659 = vmul.f32 %v646, %v652
      %v660 = vmul.f32 %v646, %v656
      %v661 = vadd.f32 %v659, 0.0
      %v662 = vadd.f32 %v660, 0.0
      %v663 = vmul.f32 %v641, 2.0
      %v665 = vrot.slane %v639, 5
      %v666 = vrot.slane %v665, 4
      %v668 = vmul.f32 %v639, %v666
      %670 = vset.pattern.permute.xlu0 1
      %671 = vperm.xlu0 %670, %v663
      %v672 = vpop.permute.xlu0 %671
      %v675 = vlaneseq
      %v676 = vshrl.u32 %v675, 7
      %v677 = vsub.s32 0, %v676
      %v678 = vrot.slane %v668, %v677
      %v679 = vlaneseq
      %v680 = vshrl.u32 %v679, 7
      %v681 = vsub.s32 4, %v680
      %v682 = vrot.slane %v668, %v681
      %v685 = vmul.f32 %v672, %v678
      %v686 = vmul.f32 %v672, %v682
      %v687 = vadd.f32 %v661, %v685
      %v688 = vadd.f32 %v662, %v686
      %v689 = vrot.slane %v639, 6
      %v690 = vrot.slane %v689, 4
      %v692 = vmul.f32 %v639, %v690
      %693 = vset.pattern.permute.xlu0 2
      %694 = vperm.xlu0 %693, %v663
      %v695 = vpop.permute.xlu0 %694
      %v698 = vlaneseq
      %v699 = vshrl.u32 %v698, 7
      %v700 = vsub.s32 0, %v699
      %v701 = vrot.slane %v692, %v700
      %v702 = vlaneseq
      %v703 = vshrl.u32 %v702, 7
      %v704 = vsub.s32 4, %v703
      %v705 = vrot.slane %v692, %v704
      %v708 = vmul.f32 %v695, %v701
      %v709 = vmul.f32 %v695, %v705
      %v710 = vadd.f32 %v687, %v708
      %v711 = vadd.f32 %v688, %v709
      %712 = vset.pattern.permute.xlu0 1
      %713 = vperm.xlu0 %712, %v641
      %v714 = vpop.permute.xlu0 %713
      %v716 = vlaneseq
      %v717 = vshrl.u32 %v716, 7
      %v718 = vsub.s32 1, %v717
      %v719 = vrot.slane %v642, %v718
      %v720 = vlaneseq
      %v721 = vshrl.u32 %v720, 7
      %v722 = vsub.s32 5, %v721
      %v723 = vrot.slane %v642, %v722
      %v726 = vmul.f32 %v714, %v719
      %v727 = vmul.f32 %v714, %v723
      %v730 = vrot.slane %v726, 1
      %v731 = vrot.slane %v727, 1
      %v734 = vadd.f32 %v710, %v730
      %v735 = vadd.f32 %v711, %v731
      %v736 = vlaneseq
      %v737 = vshrl.u32 %v736, 7
      %v738 = vsub.s32 1, %v737
      %v739 = vrot.slane %v668, %v738
      %v740 = vlaneseq
      %v741 = vshrl.u32 %v740, 7
      %v742 = vsub.s32 5, %v741
      %v743 = vrot.slane %v668, %v742
      %v746 = vmul.f32 %v695, %v739
      %v747 = vmul.f32 %v695, %v743
      %v750 = vrot.slane %v746, 1
      %v751 = vrot.slane %v747, 1
      %v754 = vadd.f32 %v734, %v750
      %v755 = vadd.f32 %v735, %v751
      %756 = vset.pattern.permute.xlu0 2
      %757 = vperm.xlu0 %756, %v641
      %v758 = vpop.permute.xlu0 %757
      %v760 = vlaneseq
      %v761 = vshrl.u32 %v760, 7
      %v762 = vsub.s32 2, %v761
      %v763 = vrot.slane %v642, %v762
      %v764 = vlaneseq
      %v765 = vshrl.u32 %v764, 7
      %v766 = vsub.s32 6, %v765
      %v767 = vrot.slane %v642, %v766
      %v770 = vmul.f32 %v758, %v763
      %v771 = vmul.f32 %v758, %v767
      %v774 = vrot.slane %v770, 2
      %v775 = vrot.slane %v771, 2
      %v778 = vadd.f32 %v754, %v774
      %v779 = vadd.f32 %v755, %v775
      %v780 = vmul.f32 %v778, -0.5
      %v781 = vmul.f32 %v779, -0.5
      %v782 = vrot.slane %v603, 1
      %v784 = vsub.f32 %v780, %v782
      %v785 = vsub.f32 %v781, %v782
      %v788 = vcombine.low %v784, %v785
      %v790 = vunpack.c.l.s4 1966171168
      %v791 = vunpack.c.0.s8 %v790
      %v792 = vlaneseq
      %v793 = vshrl.u32 %v792, 7
      %v794 = vsub.s32 %v791, %v793
      %v795 = vrot.slane %v788, %v794
      %v797 = vunpack.c.l.s4 1966171168
      %v798 = vunpack.c.0.s8 %v797
      %v799 = vlaneseq
      %v800 = vshrl.u32 %v799, 7
      %v801 = vsub.s32 %v798, %v800
      %v802 = vrot.slane %v795, %v801
      %s804 = scalar_lea.vmem %s355, 1
      %805 = vst.msk [vmem:[%s804] ss:$4 sm:$0x3] %vm628, %v802
      %v808 = vcombine.low %v448, %v450
      %vm809 = vcmask 1041408
      %vm810 = vcmask 1045508
      %vm811 = vmor %vm809, %vm810
      %v812 = vrot.slane %v630, 6
      %v813 = vrot.slane %v812, 4
      %v814 = vrot.slane %v808, 6
      %v815 = vsel %vm811, %v813, %v814
      %v817 = vsub.f32 %v357, %v815
      %s818 = scalar_lea.vmem %s342, 8
      %v819 = vld [vmem:[%s818] sm:$0x7]
      %v820 = vmul.f32 %v817, %v817
      %822 = vset.pattern.permute.xlu0 0
      %823 = vperm.xlu0 %822, %v819
      %v824 = vpop.permute.xlu0 %823
      %v827 = vlaneseq
      %v828 = vshrl.u32 %v827, 7
      %v829 = vsub.s32 0, %v828
      %v830 = vrot.slane %v820, %v829
      %v831 = vlaneseq
      %v832 = vshrl.u32 %v831, 7
      %v833 = vsub.s32 4, %v832
      %v834 = vrot.slane %v820, %v833
      %v837 = vmul.f32 %v824, %v830
      %v838 = vmul.f32 %v824, %v834
      %v839 = vadd.f32 %v837, 0.0
      %v840 = vadd.f32 %v838, 0.0
      %v841 = vmul.f32 %v819, 2.0
      %v843 = vrot.slane %v817, 5
      %v844 = vrot.slane %v843, 4
      %v846 = vmul.f32 %v817, %v844
      %848 = vset.pattern.permute.xlu0 1
      %849 = vperm.xlu0 %848, %v841
      %v850 = vpop.permute.xlu0 %849
      %v853 = vlaneseq
      %v854 = vshrl.u32 %v853, 7
      %v855 = vsub.s32 0, %v854
      %v856 = vrot.slane %v846, %v855
      %v857 = vlaneseq
      %v858 = vshrl.u32 %v857, 7
      %v859 = vsub.s32 4, %v858
      %v860 = vrot.slane %v846, %v859
      %v863 = vmul.f32 %v850, %v856
      %v864 = vmul.f32 %v850, %v860
      %v865 = vadd.f32 %v839, %v863
      %v866 = vadd.f32 %v840, %v864
      %v867 = vrot.slane %v817, 6
      %v868 = vrot.slane %v867, 4
      %v870 = vmul.f32 %v817, %v868
      %871 = vset.pattern.permute.xlu0 2
      %872 = vperm.xlu0 %871, %v841
      %v873 = vpop.permute.xlu0 %872
      %v876 = vlaneseq
      %v877 = vshrl.u32 %v876, 7
      %v878 = vsub.s32 0, %v877
      %v879 = vrot.slane %v870, %v878
      %v880 = vlaneseq
      %v881 = vshrl.u32 %v880, 7
      %v882 = vsub.s32 4, %v881
      %v883 = vrot.slane %v870, %v882
      %v886 = vmul.f32 %v873, %v879
      %v887 = vmul.f32 %v873, %v883
      %v888 = vadd.f32 %v865, %v886
      %v889 = vadd.f32 %v866, %v887
      %890 = vset.pattern.permute.xlu0 1
      %891 = vperm.xlu0 %890, %v819
      %v892 = vpop.permute.xlu0 %891
      %v894 = vlaneseq
      %v895 = vshrl.u32 %v894, 7
      %v896 = vsub.s32 1, %v895
      %v897 = vrot.slane %v820, %v896
      %v898 = vlaneseq
      %v899 = vshrl.u32 %v898, 7
      %v900 = vsub.s32 5, %v899
      %v901 = vrot.slane %v820, %v900
      %v904 = vmul.f32 %v892, %v897
      %v905 = vmul.f32 %v892, %v901
      %v908 = vrot.slane %v904, 1
      %v909 = vrot.slane %v905, 1
      %v912 = vadd.f32 %v888, %v908
      %v913 = vadd.f32 %v889, %v909
      %v914 = vlaneseq
      %v915 = vshrl.u32 %v914, 7
      %v916 = vsub.s32 1, %v915
      %v917 = vrot.slane %v846, %v916
      %v918 = vlaneseq
      %v919 = vshrl.u32 %v918, 7
      %v920 = vsub.s32 5, %v919
      %v921 = vrot.slane %v846, %v920
      %v924 = vmul.f32 %v873, %v917
      %v925 = vmul.f32 %v873, %v921
      %v928 = vrot.slane %v924, 1
      %v929 = vrot.slane %v925, 1
      %v932 = vadd.f32 %v912, %v928
      %v933 = vadd.f32 %v913, %v929
      %934 = vset.pattern.permute.xlu0 2
      %935 = vperm.xlu0 %934, %v819
      %v936 = vpop.permute.xlu0 %935
      %v938 = vlaneseq
      %v939 = vshrl.u32 %v938, 7
      %v940 = vsub.s32 2, %v939
      %v941 = vrot.slane %v820, %v940
      %v942 = vlaneseq
      %v943 = vshrl.u32 %v942, 7
      %v944 = vsub.s32 6, %v943
      %v945 = vrot.slane %v820, %v944
      %v948 = vmul.f32 %v936, %v941
      %v949 = vmul.f32 %v936, %v945
      %v952 = vrot.slane %v948, 2
      %v953 = vrot.slane %v949, 2
      %v956 = vadd.f32 %v932, %v952
      %v957 = vadd.f32 %v933, %v953
      %v958 = vmul.f32 %v956, -0.5
      %v959 = vmul.f32 %v957, -0.5
      %v960 = vrot.slane %v603, 2
      %v962 = vsub.f32 %v958, %v960
      %v963 = vsub.f32 %v959, %v960
      %v966 = vcombine.low %v962, %v963
      %v968 = vunpack.c.l.s4 1966171168
      %v969 = vunpack.c.0.s8 %v968
      %v970 = vlaneseq
      %v971 = vshrl.u32 %v970, 7
      %v972 = vsub.s32 %v969, %v971
      %v973 = vrot.slane %v966, %v972
      %v975 = vunpack.c.l.s4 1966171168
      %v976 = vunpack.c.0.s8 %v975
      %v977 = vlaneseq
      %v978 = vshrl.u32 %v977, 7
      %v979 = vsub.s32 %v976, %v978
      %v980 = vrot.slane %v973, %v979
      %s982 = scalar_lea.vmem %s355, 2
      %983 = vst.msk [vmem:[%s982] ss:$4 sm:$0x3] %vm628, %v980
      %v984 = vrot.slane %v808, 5
      %v985 = vrot.slane %v984, 4
      %v987 = vsub.f32 %v357, %v985
      %s988 = scalar_lea.vmem %s342, 12
      %v989 = vld [vmem:[%s988] sm:$0x7]
      %v990 = vmul.f32 %v987, %v987
      %992 = vset.pattern.permute.xlu0 0
      %993 = vperm.xlu0 %992, %v989
      %v994 = vpop.permute.xlu0 %993
      %v997 = vlaneseq
      %v998 = vshrl.u32 %v997, 7
      %v999 = vsub.s32 0, %v998
      %v1000 = vrot.slane %v990, %v999
      %v1001 = vlaneseq
      %v1002 = vshrl.u32 %v1001, 7
      %v1003 = vsub.s32 4, %v1002
      %v1004 = vrot.slane %v990, %v1003
      %v1007 = vmul.f32 %v994, %v1000
      %v1008 = vmul.f32 %v994, %v1004
      %v1009 = vadd.f32 %v1007, 0.0
      %v1010 = vadd.f32 %v1008, 0.0
      %v1011 = vmul.f32 %v989, 2.0
      %v1013 = vrot.slane %v987, 5
      %v1014 = vrot.slane %v1013, 4
      %v1016 = vmul.f32 %v987, %v1014
      %1018 = vset.pattern.permute.xlu0 1
      %1019 = vperm.xlu0 %1018, %v1011
      %v1020 = vpop.permute.xlu0 %1019
      %v1023 = vlaneseq
      %v1024 = vshrl.u32 %v1023, 7
      %v1025 = vsub.s32 0, %v1024
      %v1026 = vrot.slane %v1016, %v1025
      %v1027 = vlaneseq
      %v1028 = vshrl.u32 %v1027, 7
      %v1029 = vsub.s32 4, %v1028
      %v1030 = vrot.slane %v1016, %v1029
      %v1033 = vmul.f32 %v1020, %v1026
      %v1034 = vmul.f32 %v1020, %v1030
      %v1035 = vadd.f32 %v1009, %v1033
      %v1036 = vadd.f32 %v1010, %v1034
      %v1037 = vrot.slane %v987, 6
      %v1038 = vrot.slane %v1037, 4
      %v1040 = vmul.f32 %v987, %v1038
      %1041 = vset.pattern.permute.xlu0 2
      %1042 = vperm.xlu0 %1041, %v1011
      %v1043 = vpop.permute.xlu0 %1042
      %v1046 = vlaneseq
      %v1047 = vshrl.u32 %v1046, 7
      %v1048 = vsub.s32 0, %v1047
      %v1049 = vrot.slane %v1040, %v1048
      %v1050 = vlaneseq
      %v1051 = vshrl.u32 %v1050, 7
      %v1052 = vsub.s32 4, %v1051
      %v1053 = vrot.slane %v1040, %v1052
      %v1056 = vmul.f32 %v1043, %v1049
      %v1057 = vmul.f32 %v1043, %v1053
      %v1058 = vadd.f32 %v1035, %v1056
      %v1059 = vadd.f32 %v1036, %v1057
      %1060 = vset.pattern.permute.xlu0 1
      %1061 = vperm.xlu0 %1060, %v989
      %v1062 = vpop.permute.xlu0 %1061
      %v1064 = vlaneseq
      %v1065 = vshrl.u32 %v1064, 7
      %v1066 = vsub.s32 1, %v1065
      %v1067 = vrot.slane %v990, %v1066
      %v1068 = vlaneseq
      %v1069 = vshrl.u32 %v1068, 7
      %v1070 = vsub.s32 5, %v1069
      %v1071 = vrot.slane %v990, %v1070
      %v1074 = vmul.f32 %v1062, %v1067
      %v1075 = vmul.f32 %v1062, %v1071
      %v1078 = vrot.slane %v1074, 1
      %v1079 = vrot.slane %v1075, 1
      %v1082 = vadd.f32 %v1058, %v1078
      %v1083 = vadd.f32 %v1059, %v1079
      %v1084 = vlaneseq
      %v1085 = vshrl.u32 %v1084, 7
      %v1086 = vsub.s32 1, %v1085
      %v1087 = vrot.slane %v1016, %v1086
      %v1088 = vlaneseq
      %v1089 = vshrl.u32 %v1088, 7
      %v1090 = vsub.s32 5, %v1089
      %v1091 = vrot.slane %v1016, %v1090
      %v1094 = vmul.f32 %v1043, %v1087
      %v1095 = vmul.f32 %v1043, %v1091
      %v1098 = vrot.slane %v1094, 1
      %v1099 = vrot.slane %v1095, 1
      %v1102 = vadd.f32 %v1082, %v1098
      %v1103 = vadd.f32 %v1083, %v1099
      %1104 = vset.pattern.permute.xlu0 2
      %1105 = vperm.xlu0 %1104, %v989
      %v1106 = vpop.permute.xlu0 %1105
      %v1108 = vlaneseq
      %v1109 = vshrl.u32 %v1108, 7
      %v1110 = vsub.s32 2, %v1109
      %v1111 = vrot.slane %v990, %v1110
      %v1112 = vlaneseq
      %v1113 = vshrl.u32 %v1112, 7
      %v1114 = vsub.s32 6, %v1113
      %v1115 = vrot.slane %v990, %v1114
      %v1118 = vmul.f32 %v1106, %v1111
      %v1119 = vmul.f32 %v1106, %v1115
      %v1122 = vrot.slane %v1118, 2
      %v1123 = vrot.slane %v1119, 2
      %v1126 = vadd.f32 %v1102, %v1122
      %v1127 = vadd.f32 %v1103, %v1123
      %v1128 = vmul.f32 %v1126, -0.5
      %v1129 = vmul.f32 %v1127, -0.5
      %v1130 = vrot.slane %v603, 3
      %v1132 = vsub.f32 %v1128, %v1130
      %v1133 = vsub.f32 %v1129, %v1130
      %v1136 = vcombine.low %v1132, %v1133
      %v1138 = vunpack.c.l.s4 1966171168
      %v1139 = vunpack.c.0.s8 %v1138
      %v1140 = vlaneseq
      %v1141 = vshrl.u32 %v1140, 7
      %v1142 = vsub.s32 %v1139, %v1141
      %v1143 = vrot.slane %v1136, %v1142
      %v1145 = vunpack.c.l.s4 1966171168
      %v1146 = vunpack.c.0.s8 %v1145
      %v1147 = vlaneseq
      %v1148 = vshrl.u32 %v1147, 7
      %v1149 = vsub.s32 %v1146, %v1148
      %v1150 = vrot.slane %v1143, %v1149
      %s1152 = scalar_lea.vmem %s355, 3
      %1153 = vst.msk [vmem:[%s1152] ss:$4 sm:$0x3] %vm628, %v1150
      %s1154 = smul.u32 2, %s21
      %p1155 = scmp.lt.s32.totalorder %s20, 1
      %s1156 = scalar_select %p1155, %s20, 1
      %p1157 = scmp.lt.s32.totalorder %s1154, 1
      %s1158 = scalar_select %p1157, %s1154, 1
      %s1159 = smul.addr %s1156, 2
      %s1160 = sadd.s32 %s1158, %s1159
      %s1161 = smul.addr %s1160, 4
      %s1162 = scalar_lea.vmem %s5, %s1161
      // Predicated region
      $region41: #{em_mask_generator.8} parent=39 // pred_check
        %p1163 = pneg %p182
      $region42: #{em_mask_generator.8} parent=39 // pred_check_branch
        %1165 = sbr.rel (%p1163) target = $region44
      $region43: #{em_mask_generator.8} parent=39 // pred_region
        %s1166 = smul.u32 2, %s21
      $region44: #{em_mask_generator.8} parent=39 // pred_fallthru
        _
    $region40: #{em_mask_generator.8} parent=5 // pred_fallthru
      _
    %p1167 = scmp.le.s32.totalorder 2, %s11
    // Predicated region
    $region45: #{em_mask_generator.8} parent=5 // pred_check
      %p1168 = pneg %p1167
    $region46: #{em_mask_generator.8} parent=5 // pred_check_branch
      %1170 = sbr.rel (%p1168) target = $region48
    $region47: #{em_mask_generator.8} parent=5 // pred_region
      %s1171 = ssub.s32 %s11, 2
      // Predicated region
      $region49: #{em_mask_generator.8} parent=47 // pred_check
        %p1172 = pneg %p188
      $region50: #{em_mask_generator.8} parent=47 // pred_check_branch
        %1174 = sbr.rel (%p1172) target = $region52
      $region51: #{em_mask_generator.8} parent=47 // pred_region
        %s1175 = smul.u32 2, %s23
        %p1176 = scmp.lt.s32.totalorder %s22, 1
        %s1177 = scalar_select %p1176, %s22, 1
        %p1178 = scmp.lt.s32.totalorder %s1175, 1
        %s1179 = scalar_select %p1178, %s1175, 1
        %s1180 = smul.addr %s1177, 2
        %s1181 = sadd.s32 %s1179, %s1180
        %s1182 = smul.addr %s1181, 4
        %s1183 = scalar_lea.vmem %s5, %s1182
      $region52: #{em_mask_generator.8} parent=47 // pred_fallthru
        _
    $region48: #{em_mask_generator.8} parent=5 // pred_fallthru
      _
  $region6: #{em_mask_generator.8} parent=0 // loop_footer
    %s15 = sadd.s32 1, %s11
  $region7: #{em_mask_generator.8} parent=0 // loop_footer_branch
    %10 = sbr.rel target = $region3
  $region8: #{em_mask_generator.8} parent=0 // loop_exit
    _

</llo_original>
